<compile_context>
chip_gen: v5e
topology: v5e:2x2
jax: 0.10.0
libtpu: 0.0.40
codegen_flags: <defaults>
</compile_context>

<pallas_src>
import functools

import jax
import jax.numpy as jnp
from jax.experimental import pallas as pl
from jax.experimental.pallas import tpu as pltpu


def _round_up(v, m):
    return ((v + m - 1) // m) * m


# ----------------------------------------------------------------------------
# Fused kernel: one (batch image, row tile) per grid step.
# ----------------------------------------------------------------------------
def _bottleneck_kernel(xc_ref, xt_ref, xb_ref, w1_ref, b1_ref, w2_ref, b2_ref,
                       o_ref, y1_ref, acc_ref, *, add):
    """Refs:
      xc_ref : (1, TH, W, c1) f32   core rows of x for this tile
      xt_ref : (1, 1, W, c1)  f32   x row just above the tile (clamped at top)
      xb_ref : (1, 1, W, c1)  f32   x row just below the tile (clamped at bot)
      w1_ref : (c1, c_)       bf16  cv1 weight, BN scale folded
      b1_ref : (1, c_)        f32   cv1 folded BN bias
      w2_ref : (3, 3, c_, c2) bf16  cv2 weight (HWIO), BN scale folded
      b2_ref : (1, c2)        f32   cv2 folded BN bias
      o_ref  : (1, TH, W, c2)       output tile
      y1_ref : (NP, c_)       bf16  flat row-major y1 buffer (TH+2 rows + pad)
      acc_ref: (TH*W, c2)     f32   cv2 accumulator
    """
    _, TH, W, c1 = xc_ref.shape
    HW = TH * W
    base = 8                                   # leading pad rows in y1 buffer

    rt = pl.program_id(1)
    is_top = rt == 0
    is_bot = rt == pl.num_programs(1) - 1

    w1 = w1_ref[...]                           # bf16
    b1 = b1_ref[...]                           # f32

    # ---- cv1: 1x1 conv (bf16 MXU) + folded-BN bias + SiLU (f32 epilogue) ---
    def cv1(x2d_f32):
        y = jnp.dot(x2d_f32.astype(jnp.bfloat16), w1,
                    preferred_element_type=jnp.float32)
        y = y + b1
        return y * jax.nn.sigmoid(y)           # SiLU (EUP)

    xc_f32 = xc_ref[0].reshape(HW, c1)         # kept in f32 for the residual
    y1_core = cv1(xc_f32)                      # (TH*W, c_)

    # Halo rows of y1: computed from neighbouring x rows, or zero padding when
    # this tile touches the image top / bottom (conv pads cv1's OUTPUT with 0).
    y1_top = jnp.where(is_top, 0.0, cv1(xt_ref[0, 0]))   # (W, c_)
    y1_bot = jnp.where(is_bot, 0.0, cv1(xb_ref[0, 0]))   # (W, c_)

    # ---- store y1 once into the flat buffer (3 contiguous stores, no fill) -
    y1_ref[pl.ds(base, W), :] = y1_top.astype(jnp.bfloat16)
    y1_ref[pl.ds(base + W, HW), :] = y1_core.astype(jnp.bfloat16)
    y1_ref[pl.ds(base + (TH + 1) * W, W), :] = y1_bot.astype(jnp.bfloat16)

    # ---- cv2: 3x3 conv = 9 contiguous flat slices x MXU matmuls ------------
    # Tap (dy, dx) of output pixel i = h*W + w is y1[base + dy*W + dx - 1 + i];
    # dx=0 / dx=2 wrap across rows, so mask the first / last column (hoisted
    # iota, VPU select) instead of materializing shifted copies.
    col = jax.lax.broadcasted_iota(jnp.int32, (HW, 1), 0) % W
    not_left = col != 0
    not_right = col != (W - 1)

    first = True
    for dy in range(3):
        s = base + dy * W
        for dx in range(3):
            patch = y1_ref[pl.ds(s + dx - 1, HW), :]          # contiguous read
            if dx == 0:
                patch = jnp.where(not_left, patch, 0)
            elif dx == 2:
                patch = jnp.where(not_right, patch, 0)
            contrib = jnp.dot(patch.astype(jnp.bfloat16), w2_ref[dy, dx],
                              preferred_element_type=jnp.float32)
            if first:
                acc_ref[...] = contrib
                first = False
            else:
                acc_ref[...] += contrib

    # ---- BN bias + SiLU + optional residual (all f32), single output store -
    y2 = acc_ref[...] + b2_ref[...]
    y2 = y2 * jax.nn.sigmoid(y2)
    if add:
        y2 = y2 + xc_f32                       # residual reuses loaded x tile
    o_ref[0] = y2.reshape(TH, W, y2.shape[-1]).astype(o_ref.dtype)


# ----------------------------------------------------------------------------
# Wrapper: VMEM budgeting, row-tile selection, BN fold, bf16 cast.
# ----------------------------------------------------------------------------
def _step_vmem_bytes(TH, W, c1, c_, c2):
    NP = _round_up(8 + (TH + 2) * W + 8, 8)
    est = 0
    est += 2 * TH * W * c1 * 4                 # x core block (double-buffered)
    est += 2 * 2 * W * c1 * 4                  # two halo-row blocks
    est += 2 * TH * W * c2 * 4                 # output block (double-buffered)
    est += NP * c_ * 2                         # flat y1 scratch (bf16)
    est += TH * W * c2 * 4                     # f32 conv accumulator scratch
    est += 2 * ((c1 * c_ + 9 * c_ * c2) * 2 + (c_ + c2) * 4)  # weights + biases
    return est


def _vmem_capacity_bytes():
    try:
        return int(pltpu.get_tpu_info().vmem_capacity_bytes)
    except Exception:
        return 64 * 1024 * 1024                # v7x per-TensorCore (most restrictive)


def _choose_row_tile(H, W, c1, c_, c2, budget):
    best = 1
    for th in range(1, H + 1):
        if H % th == 0 and _step_vmem_bytes(th, W, c1, c_, c2) <= budget:
            best = th
    return best


def bottleneck_pallas(x_nhwc, params, add, row_tile=None):
    B, H, W, c1 = x_nhwc.shape
    w1, s1, b1 = params["w1"], params["s1"], params["b1"]
    w2, s2, b2 = params["w2"], params["s2"], params["b2"]
    c_ = w1.shape[1]
    c2 = w2.shape[3]

    # Fold the BN scale into the conv weights (pure pre-compute) and cast the
    # MXU operands to bfloat16; biases stay f32 for the in-kernel epilogue.
    w1f = (w1 * s1).astype(jnp.bfloat16)                      # (c1, c_)
    w2f = (w2 * s2[0]).astype(jnp.bfloat16)                   # (3, 3, c_, c2)
    b1f = b1.astype(jnp.float32)                              # (1, c_)
    b2f = b2.astype(jnp.float32)                              # (1, c2)

    cap = _vmem_capacity_bytes()
    if row_tile is None:
        TH = _choose_row_tile(H, W, c1, c_, c2, budget=cap // 2)
    else:
        assert H % row_tile == 0, "row_tile must divide H"
        TH = int(row_tile)
    n_rt = H // TH
    NP = _round_up(8 + (TH + 2) * W + 8, 8)

    est = _step_vmem_bytes(TH, W, c1, c_, c2)
    vmem_limit = min(int(cap * 0.85), max(int(est * 1.5) + (2 << 20), 8 << 20))

    kernel = functools.partial(_bottleneck_kernel, add=add)

    return pl.pallas_call(
        kernel,
        out_shape=jax.ShapeDtypeStruct((B, H, W, c2), x_nhwc.dtype),
        grid=(B, n_rt),
        in_specs=[
            # core rows of x for this tile
            pl.BlockSpec((1, TH, W, c1), lambda b, r: (b, r, 0, 0)),
            # halo row above (clamped at image top; kernel zeroes it there)
            pl.BlockSpec((1, 1, W, c1),
                         lambda b, r: (b, jnp.maximum(r * TH - 1, 0), 0, 0)),
            # halo row below (clamped at image bottom; kernel zeroes it there)
            pl.BlockSpec((1, 1, W, c1),
                         lambda b, r: (b, jnp.minimum(r * TH + TH, H - 1), 0, 0)),
            pl.BlockSpec((c1, c_), lambda b, r: (0, 0)),            # w1
            pl.BlockSpec((1, c_), lambda b, r: (0, 0)),             # b1
            pl.BlockSpec((3, 3, c_, c2), lambda b, r: (0, 0, 0, 0)),  # w2
            pl.BlockSpec((1, c2), lambda b, r: (0, 0)),             # b2
        ],
        out_specs=pl.BlockSpec((1, TH, W, c2), lambda b, r: (b, r, 0, 0)),
        scratch_shapes=[
            pltpu.VMEM((NP, c_), jnp.bfloat16),       # flat y1 (rows + halos)
            pltpu.VMEM((TH * W, c2), jnp.float32),    # cv2 accumulator
        ],
        compiler_params=pltpu.CompilerParams(
            dimension_semantics=("parallel", "parallel"),
            vmem_limit_bytes=vmem_limit,
        ),
    )(x_nhwc, x_nhwc, x_nhwc, w1f, b1f, w2f, b2f)


# ----------------------------------------------------------------------------
# Parameter construction (deterministic, BN folded to inference scale/bias)
# ----------------------------------------------------------------------------
def fold_bn(gamma, beta, mean, var, eps=1e-5):
    scale = gamma / jnp.sqrt(var + eps)
    bias = beta - mean * scale
    return scale[None, :], bias[None, :]


def init_bottleneck_params(key, c1, c2, e=0.5):
    c_ = int(c2 * e)
    k1, k2, k3, k4, k5, k6 = jax.random.split(key, 6)
    w1 = 0.3 * jax.random.normal(k1, (c1, c_), jnp.float32)          # 1x1 conv
    w2 = 0.3 * jax.random.normal(k2, (3, 3, c_, c2), jnp.float32)    # 3x3 HWIO
    g1 = 1.0 + 0.1 * jax.random.normal(k3, (c_,), jnp.float32)
    b1 = 0.1 * jax.random.normal(k4, (c_,), jnp.float32)
    m1 = jnp.zeros((c_,), jnp.float32)
    v1 = jnp.ones((c_,), jnp.float32)
    g2 = 1.0 + 0.1 * jax.random.normal(k5, (c2,), jnp.float32)
    b2 = 0.1 * jax.random.normal(k6, (c2,), jnp.float32)
    m2 = jnp.zeros((c2,), jnp.float32)
    v2 = jnp.ones((c2,), jnp.float32)
    s1, bb1 = fold_bn(g1, b1, m1, v1)
    s2, bb2 = fold_bn(g2, b2, m2, v2)
    return dict(w1=w1, s1=s1, b1=bb1, w2=w2, s2=s2, b2=bb2)


def bottleneck_forward(x_nchw, params, shortcut=True, row_tile=None):
    """x_nchw: (B, C1, H, W) float32 -> (B, C2, H, W)."""
    _, c1, _, _ = x_nchw.shape
    c2 = params["w2"].shape[3]
    add = bool(shortcut) and (c1 == c2)
    x_nhwc = jnp.transpose(x_nchw, (0, 2, 3, 1))            # NCHW -> NHWC glue
    out_nhwc = bottleneck_pallas(x_nhwc, params, add, row_tile=row_tile)
    return jnp.transpose(out_nhwc, (0, 3, 1, 2))            # NHWC -> NCHW glue


# ----------------------------------------------------------------------------
# Pure-JAX f32 reference (verification only)
# ----------------------------------------------------------------------------
def bottleneck_reference(x_nchw, params, shortcut=True):
    b, c1, h, w = x_nchw.shape
    c2 = params["w2"].shape[3]
    add = bool(shortcut) and (c1 == c2)
    x = jnp.transpose(x_nchw, (0, 2, 3, 1))
    y = jnp.einsum("bhwc,cd->bhwd", x, params["w1"]) * params["s1"][0] + params["b1"][0]
    y = y * jax.nn.sigmoid(y)
    yp = jnp.pad(y, ((0, 0), (1, 1), (1, 1), (0, 0)))
    acc = jnp.zeros((b, h, w, c2), jnp.float32)
    for dy in range(3):
        for dx in range(3):
            acc = acc + jnp.einsum("bhwc,cd->bhwd",
                                   yp[:, dy:dy + h, dx:dx + w, :],
                                   params["w2"][dy, dx])
    z = acc * params["s2"][0] + params["b2"][0]
    z = z * jax.nn.sigmoid(z)
    if add:
        z = z + x
    return jnp.transpose(z, (0, 3, 1, 2))


if __name__ == "__main__":
    key = jax.random.PRNGKey(0)
    kx, kp1, kp2 = jax.random.split(key, 3)

    B, C1, H, W = 2, 4, 16, 16
    x = jax.random.normal(kx, (B, C1, H, W), jnp.float32)

    # bf16 MXU operands vs f32 reference -> loosened tolerances.
    TOL = dict(atol=3e-2, rtol=3e-2)

    # Case 1: c1 == c2, shortcut=True -> residual path.  row_tile=8 exercises
    # both boundary (zero-pad) and interior (computed) halo rows.
    C2 = 4
    params = init_bottleneck_params(kp1, C1, C2, e=0.5)
    out = jax.block_until_ready(bottleneck_forward(x, params, shortcut=True, row_tile=8))
    ref = bottleneck_reference(x, params, shortcut=True)
    assert out.shape == (B, C2, H, W)
    assert jnp.allclose(out, ref, **TOL), "mismatch (add=True, row_tile=8)"

    # Case 1b: auto row-tile selection.
    out_b = jax.block_until_ready(bottleneck_forward(x, params, shortcut=True))
    assert jnp.allclose(out_b, ref, **TOL), "mismatch (add=True, auto tile)"

    # Case 2: c1 != c2 -> no residual (add=False kernel variant).
    C2b = 8
    params2 = init_bottleneck_params(kp2, C1, C2b, e=0.5)
    out2 = jax.block_until_ready(bottleneck_forward(x, params2, shortcut=True, row_tile=8))
    ref2 = bottleneck_reference(x, params2, shortcut=True)
    assert out2.shape == (B, C2b, H, W)
    assert jnp.allclose(out2, ref2, **TOL), "mismatch (add=False)"

    print("KERNEL_OK")
</pallas_src>

<mosaic_0001>
module attributes {stable_mosaic.version = 11 : i64} {
  func.func @_bottleneck_kernel(%arg0: i32, %arg1: i32, %arg2: memref<1x8x16x4xf32, #tpu.memory_space<vmem>>, %arg3: memref<1x1x16x4xf32, #tpu.memory_space<vmem>>, %arg4: memref<1x1x16x4xf32, #tpu.memory_space<vmem>>, %arg5: memref<4x2xbf16, #tpu.memory_space<vmem>>, %arg6: memref<1x2xf32, #tpu.memory_space<vmem>>, %arg7: memref<3x3x2x4xbf16, #tpu.memory_space<vmem>>, %arg8: memref<1x4xf32, #tpu.memory_space<vmem>>, %arg9: memref<1x8x16x4xf32, #tpu.memory_space<vmem>>, %arg10: memref<176x2xbf16, #tpu.memory_space<vmem>>, %arg11: memref<128x4xf32, #tpu.memory_space<vmem>>) attributes {dimension_semantics = [#tpu.dimension_semantics<parallel>, #tpu.dimension_semantics<parallel>], iteration_bounds = array<i64: 2, 2>, scalar_prefetch = 0 : i64, scratch_operands = 2 : i64, tpu.core_type = #tpu.core_type<tc>, window_params = [{transform_indices = @transform_0, window_bounds = array<i64: 1, 8, 16, 4>}, {transform_indices = @transform_1, window_bounds = array<i64: 1, 1, 16, 4>}, {transform_indices = @transform_2, window_bounds = array<i64: 1, 1, 16, 4>}, {pipeline_mode = #tpu.pipeline_mode<synchronous>, transform_indices = @transform_3, window_bounds = array<i64: 4, 2>}, {pipeline_mode = #tpu.pipeline_mode<synchronous>, transform_indices = @transform_4, window_bounds = array<i64: 1, 2>}, {pipeline_mode = #tpu.pipeline_mode<synchronous>, transform_indices = @transform_5, window_bounds = array<i64: 3, 3, 2, 4>}, {pipeline_mode = #tpu.pipeline_mode<synchronous>, transform_indices = @transform_6, window_bounds = array<i64: 1, 4>}, {transform_indices = @transform_7, window_bounds = array<i64: 1, 8, 16, 4>}]} {
    %c0_i32 = arith.constant 0 : i32
    %0 = arith.cmpi eq, %arg1, %c0_i32 : i32
    %c1_i32 = arith.constant 1 : i32
    %1 = arith.cmpi eq, %arg1, %c1_i32 : i32
    %c0 = arith.constant 0 : index
    %c0_0 = arith.constant 0 : index
    %2 = vector.load %arg5[%c0, %c0_0] : memref<4x2xbf16, #tpu.memory_space<vmem>>, vector<4x2xbf16>
    %c0_1 = arith.constant 0 : index
    %c0_2 = arith.constant 0 : index
    %3 = vector.load %arg6[%c0_1, %c0_2] : memref<1x2xf32, #tpu.memory_space<vmem>>, vector<1x2xf32>
    %c0_3 = arith.constant 0 : index
    %c0_4 = arith.constant 0 : index
    %c0_5 = arith.constant 0 : index
    %c0_6 = arith.constant 0 : index
    %4 = vector.load %arg2[%c0_3, %c0_4, %c0_5, %c0_6] : memref<1x8x16x4xf32, #tpu.memory_space<vmem>>, vector<1x8x16x4xf32>
    %5 = vector.shape_cast %4 : vector<1x8x16x4xf32> to vector<8x16x4xf32>
    %6 = vector.shape_cast %5 : vector<8x16x4xf32> to vector<128x4xf32>
    %7 = arith.truncf %6 : vector<128x4xf32> to vector<128x4xbf16>
    %cst = arith.constant dense<0.000000e+00> : vector<128x2xf32>
    %8 = tpu.matmul %7, %2, %cst {dimension_numbers = #tpu.dot_dimension_numbers<[1], [0], [0], [1], [0, 0, 1, 1], [], []>} : vector<128x4xbf16>, vector<4x2xbf16>, vector<128x2xf32> -> vector<128x2xf32>
    %9 = vector.broadcast %3 : vector<1x2xf32> to vector<128x2xf32>
    %10 = arith.addf %8, %9 : vector<128x2xf32>
    %11 = arith.negf %10 : vector<128x2xf32>
    %12 = math.exp %11 : vector<128x2xf32>
    %cst_7 = arith.constant 1.000000e+00 : f32
    %13 = vector.broadcast %cst_7 : f32 to vector<128x2xf32>
    %14 = arith.addf %13, %12 : vector<128x2xf32>
    %15 = arith.divf %13, %14 : vector<128x2xf32>
    %16 = arith.mulf %10, %15 : vector<128x2xf32>
    %c0_8 = arith.constant 0 : index
    %c0_9 = arith.constant 0 : index
    %c0_10 = arith.constant 0 : index
    %c0_11 = arith.constant 0 : index
    %17 = vector.load %arg3[%c0_8, %c0_9, %c0_10, %c0_11] : memref<1x1x16x4xf32, #tpu.memory_space<vmem>>, vector<1x1x16x4xf32>
    %18 = vector.shape_cast %17 : vector<1x1x16x4xf32> to vector<16x4xf32>
    %19 = arith.truncf %18 : vector<16x4xf32> to vector<16x4xbf16>
    %cst_12 = arith.constant dense<0.000000e+00> : vector<16x2xf32>
    %20 = tpu.matmul %19, %2, %cst_12 {dimension_numbers = #tpu.dot_dimension_numbers<[1], [0], [0], [1], [0, 0, 1, 1], [], []>} : vector<16x4xbf16>, vector<4x2xbf16>, vector<16x2xf32> -> vector<16x2xf32>
    %21 = vector.broadcast %3 : vector<1x2xf32> to vector<16x2xf32>
    %22 = arith.addf %20, %21 : vector<16x2xf32>
    %23 = arith.negf %22 : vector<16x2xf32>
    %24 = math.exp %23 : vector<16x2xf32>
    %cst_13 = arith.constant 1.000000e+00 : f32
    %25 = vector.broadcast %cst_13 : f32 to vector<16x2xf32>
    %26 = arith.addf %25, %24 : vector<16x2xf32>
    %27 = arith.divf %25, %26 : vector<16x2xf32>
    %28 = arith.mulf %22, %27 : vector<16x2xf32>
    %cst_14 = arith.constant 0.000000e+00 : f32
    %29 = vector.broadcast %cst_14 : f32 to vector<16x2xf32>
    %30 = arith.select %0, %29, %28 : vector<16x2xf32>
    %c0_15 = arith.constant 0 : index
    %c0_16 = arith.constant 0 : index
    %c0_17 = arith.constant 0 : index
    %c0_18 = arith.constant 0 : index
    %31 = vector.load %arg4[%c0_15, %c0_16, %c0_17, %c0_18] : memref<1x1x16x4xf32, #tpu.memory_space<vmem>>, vector<1x1x16x4xf32>
    %32 = vector.shape_cast %31 : vector<1x1x16x4xf32> to vector<16x4xf32>
    %33 = arith.truncf %32 : vector<16x4xf32> to vector<16x4xbf16>
    %cst_19 = arith.constant dense<0.000000e+00> : vector<16x2xf32>
    %34 = tpu.matmul %33, %2, %cst_19 {dimension_numbers = #tpu.dot_dimension_numbers<[1], [0], [0], [1], [0, 0, 1, 1], [], []>} : vector<16x4xbf16>, vector<4x2xbf16>, vector<16x2xf32> -> vector<16x2xf32>
    %35 = vector.broadcast %3 : vector<1x2xf32> to vector<16x2xf32>
    %36 = arith.addf %34, %35 : vector<16x2xf32>
    %37 = arith.negf %36 : vector<16x2xf32>
    %38 = math.exp %37 : vector<16x2xf32>
    %cst_20 = arith.constant 1.000000e+00 : f32
    %39 = vector.broadcast %cst_20 : f32 to vector<16x2xf32>
    %40 = arith.addf %39, %38 : vector<16x2xf32>
    %41 = arith.divf %39, %40 : vector<16x2xf32>
    %42 = arith.mulf %36, %41 : vector<16x2xf32>
    %cst_21 = arith.constant 0.000000e+00 : f32
    %43 = vector.broadcast %cst_21 : f32 to vector<16x2xf32>
    %44 = arith.select %1, %43, %42 : vector<16x2xf32>
    %45 = arith.truncf %30 : vector<16x2xf32> to vector<16x2xbf16>
    %c8 = arith.constant 8 : index
    %c0_22 = arith.constant 0 : index
    %46 = vector.load %arg10[%c8, %c0_22] : memref<176x2xbf16, #tpu.memory_space<vmem>>, vector<16x2xbf16>
    tpu.vector_store %arg10[%c8, %c0_22], %45 {strides = array<i32>} : memref<176x2xbf16, #tpu.memory_space<vmem>>, vector<16x2xbf16>,
    %47 = arith.truncf %16 : vector<128x2xf32> to vector<128x2xbf16>
    %c24 = arith.constant 24 : index
    %c0_23 = arith.constant 0 : index
    %48 = vector.load %arg10[%c24, %c0_23] : memref<176x2xbf16, #tpu.memory_space<vmem>>, vector<128x2xbf16>
    tpu.vector_store %arg10[%c24, %c0_23], %47 {strides = array<i32>} : memref<176x2xbf16, #tpu.memory_space<vmem>>, vector<128x2xbf16>,
    %49 = arith.truncf %44 : vector<16x2xf32> to vector<16x2xbf16>
    %c152 = arith.constant 152 : index
    %c0_24 = arith.constant 0 : index
    %50 = vector.load %arg10[%c152, %c0_24] : memref<176x2xbf16, #tpu.memory_space<vmem>>, vector<16x2xbf16>
    tpu.vector_store %arg10[%c152, %c0_24], %49 {strides = array<i32>} : memref<176x2xbf16, #tpu.memory_space<vmem>>, vector<16x2xbf16>,
    %51 = tpu.iota {dimensions = array<i32: 0>} : vector<128x1xi32>
    %c16_i32 = arith.constant 16 : i32
    %c0_i32_25 = arith.constant 0 : i32
    %52 = arith.cmpi eq, %c16_i32, %c0_i32_25 : i32
    %c1_i32_26 = arith.constant 1 : i32
    %53 = arith.select %52, %c1_i32_26, %c16_i32 : i32
    %54 = vector.broadcast %53 : i32 to vector<128x1xi32>
    %55 = arith.remsi %51, %54 : vector<128x1xi32>
    %c0_i32_27 = arith.constant 0 : i32
    %56 = vector.broadcast %c0_i32_27 : i32 to vector<128x1xi32>
    %57 = arith.cmpi ne, %55, %56 : vector<128x1xi32>
    %c0_i32_28 = arith.constant 0 : i32
    %58 = vector.broadcast %c0_i32_28 : i32 to vector<128x1xi32>
    %59 = arith.cmpi slt, %55, %58 : vector<128x1xi32>
    %c0_i32_29 = arith.constant 0 : i32
    %60 = arith.cmpi slt, %53, %c0_i32_29 : i32
    %61 = vector.broadcast %60 : i1 to vector<128x1xi1>
    %62 = vector.broadcast %61 : vector<128x1xi1> to vector<128x1xi1>
    %63 = arith.xori %59, %62 : vector<128x1xi1>
    %64 = arith.andi %63, %57 : vector<128x1xi1>
    %65 = vector.broadcast %53 : i32 to vector<128x1xi32>
    %66 = arith.addi %55, %65 : vector<128x1xi32>
    %67 = arith.select %64, %66, %55 : vector<128x1xi1>, vector<128x1xi32>
    %c0_i32_30 = arith.constant 0 : i32
    %68 = vector.broadcast %c0_i32_30 : i32 to vector<128x1xi32>
    %69 = arith.cmpi ne, %67, %68 : vector<128x1xi32>
    %c15_i32 = arith.constant 15 : i32
    %70 = vector.broadcast %c15_i32 : i32 to vector<128x1xi32>
    %71 = arith.cmpi ne, %67, %70 : vector<128x1xi32>
    %c7 = arith.constant 7 : index
    %c0_31 = arith.constant 0 : index
    %72 = vector.load %arg10[%c7, %c0_31] : memref<176x2xbf16, #tpu.memory_space<vmem>>, vector<128x2xbf16>
    %c0_i32_32 = arith.constant 0 : i32
    %73 = arith.sitofp %c0_i32_32 : i32 to bf16
    %74 = vector.shape_cast %69 : vector<128x1xi1> to vector<128x1xi1>
    %75 = vector.broadcast %74 : vector<128x1xi1> to vector<128x2xi1>
    %76 = vector.broadcast %73 : bf16 to vector<128x2xbf16>
    %77 = arith.select %75, %72, %76 : vector<128x2xi1>, vector<128x2xbf16>
    %c0_33 = arith.constant 0 : index
    %c0_34 = arith.constant 0 : index
    %c0_35 = arith.constant 0 : index
    %c0_36 = arith.constant 0 : index
    %78 = vector.load %arg7[%c0_33, %c0_34, %c0_35, %c0_36] : memref<3x3x2x4xbf16, #tpu.memory_space<vmem>>, vector<1x1x2x4xbf16>
    %79 = vector.shape_cast %78 : vector<1x1x2x4xbf16> to vector<2x4xbf16>
    %cst_37 = arith.constant dense<0.000000e+00> : vector<128x4xf32>
    %80 = tpu.matmul %77, %79, %cst_37 {dimension_numbers = #tpu.dot_dimension_numbers<[1], [0], [0], [1], [0, 0, 1, 1], [], []>} : vector<128x2xbf16>, vector<2x4xbf16>, vector<128x4xf32> -> vector<128x4xf32>
    %c0_38 = arith.constant 0 : index
    %c0_39 = arith.constant 0 : index
    %81 = vector.load %arg11[%c0_38, %c0_39] : memref<128x4xf32, #tpu.memory_space<vmem>>, vector<128x4xf32>
    tpu.vector_store %arg11[%c0_38, %c0_39], %80 {strides = array<i32>} : memref<128x4xf32, #tpu.memory_space<vmem>>, vector<128x4xf32>,
    %c8_40 = arith.constant 8 : index
    %c0_41 = arith.constant 0 : index
    %82 = vector.load %arg10[%c8_40, %c0_41] : memref<176x2xbf16, #tpu.memory_space<vmem>>, vector<128x2xbf16>
    %c0_42 = arith.constant 0 : index
    %c1 = arith.constant 1 : index
    %c0_43 = arith.constant 0 : index
    %c0_44 = arith.constant 0 : index
    %83 = vector.load %arg7[%c0_42, %c1, %c0_43, %c0_44] : memref<3x3x2x4xbf16, #tpu.memory_space<vmem>>, vector<1x1x2x4xbf16>
    %84 = vector.shape_cast %83 : vector<1x1x2x4xbf16> to vector<2x4xbf16>
    %cst_45 = arith.constant dense<0.000000e+00> : vector<128x4xf32>
    %85 = tpu.matmul %82, %84, %cst_45 {dimension_numbers = #tpu.dot_dimension_numbers<[1], [0], [0], [1], [0, 0, 1, 1], [], []>} : vector<128x2xbf16>, vector<2x4xbf16>, vector<128x4xf32> -> vector<128x4xf32>
    %c0_46 = arith.constant 0 : index
    %c0_47 = arith.constant 0 : index
    %86 = vector.load %arg11[%c0_46, %c0_47] : memref<128x4xf32, #tpu.memory_space<vmem>>, vector<128x4xf32>
    %87 = arith.addf %86, %85 : vector<128x4xf32>
    %c0_48 = arith.constant 0 : index
    %c0_49 = arith.constant 0 : index
    %88 = vector.load %arg11[%c0_48, %c0_49] : memref<128x4xf32, #tpu.memory_space<vmem>>, vector<128x4xf32>
    tpu.vector_store %arg11[%c0_48, %c0_49], %87 {strides = array<i32>} : memref<128x4xf32, #tpu.memory_space<vmem>>, vector<128x4xf32>,
    %c9 = arith.constant 9 : index
    %c0_50 = arith.constant 0 : index
    %89 = vector.load %arg10[%c9, %c0_50] : memref<176x2xbf16, #tpu.memory_space<vmem>>, vector<128x2xbf16>
    %c0_i32_51 = arith.constant 0 : i32
    %90 = arith.sitofp %c0_i32_51 : i32 to bf16
    %91 = vector.shape_cast %71 : vector<128x1xi1> to vector<128x1xi1>
    %92 = vector.broadcast %91 : vector<128x1xi1> to vector<128x2xi1>
    %93 = vector.broadcast %90 : bf16 to vector<128x2xbf16>
    %94 = arith.select %92, %89, %93 : vector<128x2xi1>, vector<128x2xbf16>
    %c0_52 = arith.constant 0 : index
    %c2 = arith.constant 2 : index
    %c0_53 = arith.constant 0 : index
    %c0_54 = arith.constant 0 : index
    %95 = vector.load %arg7[%c0_52, %c2, %c0_53, %c0_54] : memref<3x3x2x4xbf16, #tpu.memory_space<vmem>>, vector<1x1x2x4xbf16>
    %96 = vector.shape_cast %95 : vector<1x1x2x4xbf16> to vector<2x4xbf16>
    %cst_55 = arith.constant dense<0.000000e+00> : vector<128x4xf32>
    %97 = tpu.matmul %94, %96, %cst_55 {dimension_numbers = #tpu.dot_dimension_numbers<[1], [0], [0], [1], [0, 0, 1, 1], [], []>} : vector<128x2xbf16>, vector<2x4xbf16>, vector<128x4xf32> -> vector<128x4xf32>
    %c0_56 = arith.constant 0 : index
    %c0_57 = arith.constant 0 : index
    %98 = vector.load %arg11[%c0_56, %c0_57] : memref<128x4xf32, #tpu.memory_space<vmem>>, vector<128x4xf32>
    %99 = arith.addf %98, %97 : vector<128x4xf32>
    %c0_58 = arith.constant 0 : index
    %c0_59 = arith.constant 0 : index
    %100 = vector.load %arg11[%c0_58, %c0_59] : memref<128x4xf32, #tpu.memory_space<vmem>>, vector<128x4xf32>
    tpu.vector_store %arg11[%c0_58, %c0_59], %99 {strides = array<i32>} : memref<128x4xf32, #tpu.memory_space<vmem>>, vector<128x4xf32>,
    %c23 = arith.constant 23 : index
    %c0_60 = arith.constant 0 : index
    %101 = vector.load %arg10[%c23, %c0_60] : memref<176x2xbf16, #tpu.memory_space<vmem>>, vector<128x2xbf16>
    %c0_i32_61 = arith.constant 0 : i32
    %102 = arith.sitofp %c0_i32_61 : i32 to bf16
    %103 = vector.shape_cast %69 : vector<128x1xi1> to vector<128x1xi1>
    %104 = vector.broadcast %103 : vector<128x1xi1> to vector<128x2xi1>
    %105 = vector.broadcast %102 : bf16 to vector<128x2xbf16>
    %106 = arith.select %104, %101, %105 : vector<128x2xi1>, vector<128x2xbf16>
    %c1_62 = arith.constant 1 : index
    %c0_63 = arith.constant 0 : index
    %c0_64 = arith.constant 0 : index
    %c0_65 = arith.constant 0 : index
    %107 = vector.load %arg7[%c1_62, %c0_63, %c0_64, %c0_65] : memref<3x3x2x4xbf16, #tpu.memory_space<vmem>>, vector<1x1x2x4xbf16>
    %108 = vector.shape_cast %107 : vector<1x1x2x4xbf16> to vector<2x4xbf16>
    %cst_66 = arith.constant dense<0.000000e+00> : vector<128x4xf32>
    %109 = tpu.matmul %106, %108, %cst_66 {dimension_numbers = #tpu.dot_dimension_numbers<[1], [0], [0], [1], [0, 0, 1, 1], [], []>} : vector<128x2xbf16>, vector<2x4xbf16>, vector<128x4xf32> -> vector<128x4xf32>
    %c0_67 = arith.constant 0 : index
    %c0_68 = arith.constant 0 : index
    %110 = vector.load %arg11[%c0_67, %c0_68] : memref<128x4xf32, #tpu.memory_space<vmem>>, vector<128x4xf32>
    %111 = arith.addf %110, %109 : vector<128x4xf32>
    %c0_69 = arith.constant 0 : index
    %c0_70 = arith.constant 0 : index
    %112 = vector.load %arg11[%c0_69, %c0_70] : memref<128x4xf32, #tpu.memory_space<vmem>>, vector<128x4xf32>
    tpu.vector_store %arg11[%c0_69, %c0_70], %111 {strides = array<i32>} : memref<128x4xf32, #tpu.memory_space<vmem>>, vector<128x4xf32>,
    %c24_71 = arith.constant 24 : index
    %c0_72 = arith.constant 0 : index
    %113 = vector.load %arg10[%c24_71, %c0_72] : memref<176x2xbf16, #tpu.memory_space<vmem>>, vector<128x2xbf16>
    %c1_73 = arith.constant 1 : index
    %c1_74 = arith.constant 1 : index
    %c0_75 = arith.constant 0 : index
    %c0_76 = arith.constant 0 : index
    %114 = vector.load %arg7[%c1_73, %c1_74, %c0_75, %c0_76] : memref<3x3x2x4xbf16, #tpu.memory_space<vmem>>, vector<1x1x2x4xbf16>
    %115 = vector.shape_cast %114 : vector<1x1x2x4xbf16> to vector<2x4xbf16>
    %cst_77 = arith.constant dense<0.000000e+00> : vector<128x4xf32>
    %116 = tpu.matmul %113, %115, %cst_77 {dimension_numbers = #tpu.dot_dimension_numbers<[1], [0], [0], [1], [0, 0, 1, 1], [], []>} : vector<128x2xbf16>, vector<2x4xbf16>, vector<128x4xf32> -> vector<128x4xf32>
    %c0_78 = arith.constant 0 : index
    %c0_79 = arith.constant 0 : index
    %117 = vector.load %arg11[%c0_78, %c0_79] : memref<128x4xf32, #tpu.memory_space<vmem>>, vector<128x4xf32>
    %118 = arith.addf %117, %116 : vector<128x4xf32>
    %c0_80 = arith.constant 0 : index
    %c0_81 = arith.constant 0 : index
    %119 = vector.load %arg11[%c0_80, %c0_81] : memref<128x4xf32, #tpu.memory_space<vmem>>, vector<128x4xf32>
    tpu.vector_store %arg11[%c0_80, %c0_81], %118 {strides = array<i32>} : memref<128x4xf32, #tpu.memory_space<vmem>>, vector<128x4xf32>,
    %c25 = arith.constant 25 : index
    %c0_82 = arith.constant 0 : index
    %120 = vector.load %arg10[%c25, %c0_82] : memref<176x2xbf16, #tpu.memory_space<vmem>>, vector<128x2xbf16>
    %c0_i32_83 = arith.constant 0 : i32
    %121 = arith.sitofp %c0_i32_83 : i32 to bf16
    %122 = vector.shape_cast %71 : vector<128x1xi1> to vector<128x1xi1>
    %123 = vector.broadcast %122 : vector<128x1xi1> to vector<128x2xi1>
    %124 = vector.broadcast %121 : bf16 to vector<128x2xbf16>
    %125 = arith.select %123, %120, %124 : vector<128x2xi1>, vector<128x2xbf16>
    %c1_84 = arith.constant 1 : index
    %c2_85 = arith.constant 2 : index
    %c0_86 = arith.constant 0 : index
    %c0_87 = arith.constant 0 : index
    %126 = vector.load %arg7[%c1_84, %c2_85, %c0_86, %c0_87] : memref<3x3x2x4xbf16, #tpu.memory_space<vmem>>, vector<1x1x2x4xbf16>
    %127 = vector.shape_cast %126 : vector<1x1x2x4xbf16> to vector<2x4xbf16>
    %cst_88 = arith.constant dense<0.000000e+00> : vector<128x4xf32>
    %128 = tpu.matmul %125, %127, %cst_88 {dimension_numbers = #tpu.dot_dimension_numbers<[1], [0], [0], [1], [0, 0, 1, 1], [], []>} : vector<128x2xbf16>, vector<2x4xbf16>, vector<128x4xf32> -> vector<128x4xf32>
    %c0_89 = arith.constant 0 : index
    %c0_90 = arith.constant 0 : index
    %129 = vector.load %arg11[%c0_89, %c0_90] : memref<128x4xf32, #tpu.memory_space<vmem>>, vector<128x4xf32>
    %130 = arith.addf %129, %128 : vector<128x4xf32>
    %c0_91 = arith.constant 0 : index
    %c0_92 = arith.constant 0 : index
    %131 = vector.load %arg11[%c0_91, %c0_92] : memref<128x4xf32, #tpu.memory_space<vmem>>, vector<128x4xf32>
    tpu.vector_store %arg11[%c0_91, %c0_92], %130 {strides = array<i32>} : memref<128x4xf32, #tpu.memory_space<vmem>>, vector<128x4xf32>,
    %c39 = arith.constant 39 : index
    %c0_93 = arith.constant 0 : index
    %132 = vector.load %arg10[%c39, %c0_93] : memref<176x2xbf16, #tpu.memory_space<vmem>>, vector<128x2xbf16>
    %c0_i32_94 = arith.constant 0 : i32
    %133 = arith.sitofp %c0_i32_94 : i32 to bf16
    %134 = vector.shape_cast %69 : vector<128x1xi1> to vector<128x1xi1>
    %135 = vector.broadcast %134 : vector<128x1xi1> to vector<128x2xi1>
    %136 = vector.broadcast %133 : bf16 to vector<128x2xbf16>
    %137 = arith.select %135, %132, %136 : vector<128x2xi1>, vector<128x2xbf16>
    %c2_95 = arith.constant 2 : index
    %c0_96 = arith.constant 0 : index
    %c0_97 = arith.constant 0 : index
    %c0_98 = arith.constant 0 : index
    %138 = vector.load %arg7[%c2_95, %c0_96, %c0_97, %c0_98] : memref<3x3x2x4xbf16, #tpu.memory_space<vmem>>, vector<1x1x2x4xbf16>
    %139 = vector.shape_cast %138 : vector<1x1x2x4xbf16> to vector<2x4xbf16>
    %cst_99 = arith.constant dense<0.000000e+00> : vector<128x4xf32>
    %140 = tpu.matmul %137, %139, %cst_99 {dimension_numbers = #tpu.dot_dimension_numbers<[1], [0], [0], [1], [0, 0, 1, 1], [], []>} : vector<128x2xbf16>, vector<2x4xbf16>, vector<128x4xf32> -> vector<128x4xf32>
    %c0_100 = arith.constant 0 : index
    %c0_101 = arith.constant 0 : index
    %141 = vector.load %arg11[%c0_100, %c0_101] : memref<128x4xf32, #tpu.memory_space<vmem>>, vector<128x4xf32>
    %142 = arith.addf %141, %140 : vector<128x4xf32>
    %c0_102 = arith.constant 0 : index
    %c0_103 = arith.constant 0 : index
    %143 = vector.load %arg11[%c0_102, %c0_103] : memref<128x4xf32, #tpu.memory_space<vmem>>, vector<128x4xf32>
    tpu.vector_store %arg11[%c0_102, %c0_103], %142 {strides = array<i32>} : memref<128x4xf32, #tpu.memory_space<vmem>>, vector<128x4xf32>,
    %c40 = arith.constant 40 : index
    %c0_104 = arith.constant 0 : index
    %144 = vector.load %arg10[%c40, %c0_104] : memref<176x2xbf16, #tpu.memory_space<vmem>>, vector<128x2xbf16>
    %c2_105 = arith.constant 2 : index
    %c1_106 = arith.constant 1 : index
    %c0_107 = arith.constant 0 : index
    %c0_108 = arith.constant 0 : index
    %145 = vector.load %arg7[%c2_105, %c1_106, %c0_107, %c0_108] : memref<3x3x2x4xbf16, #tpu.memory_space<vmem>>, vector<1x1x2x4xbf16>
    %146 = vector.shape_cast %145 : vector<1x1x2x4xbf16> to vector<2x4xbf16>
    %cst_109 = arith.constant dense<0.000000e+00> : vector<128x4xf32>
    %147 = tpu.matmul %144, %146, %cst_109 {dimension_numbers = #tpu.dot_dimension_numbers<[1], [0], [0], [1], [0, 0, 1, 1], [], []>} : vector<128x2xbf16>, vector<2x4xbf16>, vector<128x4xf32> -> vector<128x4xf32>
    %c0_110 = arith.constant 0 : index
    %c0_111 = arith.constant 0 : index
    %148 = vector.load %arg11[%c0_110, %c0_111] : memref<128x4xf32, #tpu.memory_space<vmem>>, vector<128x4xf32>
    %149 = arith.addf %148, %147 : vector<128x4xf32>
    %c0_112 = arith.constant 0 : index
    %c0_113 = arith.constant 0 : index
    %150 = vector.load %arg11[%c0_112, %c0_113] : memref<128x4xf32, #tpu.memory_space<vmem>>, vector<128x4xf32>
    tpu.vector_store %arg11[%c0_112, %c0_113], %149 {strides = array<i32>} : memref<128x4xf32, #tpu.memory_space<vmem>>, vector<128x4xf32>,
    %c41 = arith.constant 41 : index
    %c0_114 = arith.constant 0 : index
    %151 = vector.load %arg10[%c41, %c0_114] : memref<176x2xbf16, #tpu.memory_space<vmem>>, vector<128x2xbf16>
    %c0_i32_115 = arith.constant 0 : i32
    %152 = arith.sitofp %c0_i32_115 : i32 to bf16
    %153 = vector.shape_cast %71 : vector<128x1xi1> to vector<128x1xi1>
    %154 = vector.broadcast %153 : vector<128x1xi1> to vector<128x2xi1>
    %155 = vector.broadcast %152 : bf16 to vector<128x2xbf16>
    %156 = arith.select %154, %151, %155 : vector<128x2xi1>, vector<128x2xbf16>
    %c2_116 = arith.constant 2 : index
    %c2_117 = arith.constant 2 : index
    %c0_118 = arith.constant 0 : index
    %c0_119 = arith.constant 0 : index
    %157 = vector.load %arg7[%c2_116, %c2_117, %c0_118, %c0_119] : memref<3x3x2x4xbf16, #tpu.memory_space<vmem>>, vector<1x1x2x4xbf16>
    %158 = vector.shape_cast %157 : vector<1x1x2x4xbf16> to vector<2x4xbf16>
    %cst_120 = arith.constant dense<0.000000e+00> : vector<128x4xf32>
    %159 = tpu.matmul %156, %158, %cst_120 {dimension_numbers = #tpu.dot_dimension_numbers<[1], [0], [0], [1], [0, 0, 1, 1], [], []>} : vector<128x2xbf16>, vector<2x4xbf16>, vector<128x4xf32> -> vector<128x4xf32>
    %c0_121 = arith.constant 0 : index
    %c0_122 = arith.constant 0 : index
    %160 = vector.load %arg11[%c0_121, %c0_122] : memref<128x4xf32, #tpu.memory_space<vmem>>, vector<128x4xf32>
    %161 = arith.addf %160, %159 : vector<128x4xf32>
    %c0_123 = arith.constant 0 : index
    %c0_124 = arith.constant 0 : index
    %162 = vector.load %arg11[%c0_123, %c0_124] : memref<128x4xf32, #tpu.memory_space<vmem>>, vector<128x4xf32>
    tpu.vector_store %arg11[%c0_123, %c0_124], %161 {strides = array<i32>} : memref<128x4xf32, #tpu.memory_space<vmem>>, vector<128x4xf32>,
    %c0_125 = arith.constant 0 : index
    %c0_126 = arith.constant 0 : index
    %163 = vector.load %arg11[%c0_125, %c0_126] : memref<128x4xf32, #tpu.memory_space<vmem>>, vector<128x4xf32>
    %c0_127 = arith.constant 0 : index
    %c0_128 = arith.constant 0 : index
    %164 = vector.load %arg8[%c0_127, %c0_128] : memref<1x4xf32, #tpu.memory_space<vmem>>, vector<1x4xf32>
    %165 = vector.broadcast %164 : vector<1x4xf32> to vector<128x4xf32>
    %166 = arith.addf %163, %165 : vector<128x4xf32>
    %167 = arith.negf %166 : vector<128x4xf32>
    %168 = math.exp %167 : vector<128x4xf32>
    %cst_129 = arith.constant 1.000000e+00 : f32
    %169 = vector.broadcast %cst_129 : f32 to vector<128x4xf32>
    %170 = arith.addf %169, %168 : vector<128x4xf32>
    %171 = arith.divf %169, %170 : vector<128x4xf32>
    %172 = arith.mulf %166, %171 : vector<128x4xf32>
    %173 = arith.addf %172, %6 : vector<128x4xf32>
    %174 = vector.shape_cast %173 : vector<128x4xf32> to vector<8x16x4xf32>
    %c0_130 = arith.constant 0 : index
    %c0_131 = arith.constant 0 : index
    %c0_132 = arith.constant 0 : index
    %c0_133 = arith.constant 0 : index
    %175 = vector.load %arg9[%c0_130, %c0_131, %c0_132, %c0_133] : memref<1x8x16x4xf32, #tpu.memory_space<vmem>>, vector<1x8x16x4xf32>
    %176 = vector.shape_cast %175 : vector<1x8x16x4xf32> to vector<8x16x4xf32>
    %177 = vector.shape_cast %174 : vector<8x16x4xf32> to vector<1x8x16x4xf32>
    tpu.vector_store %arg9[%c0_130, %c0_131, %c0_132, %c0_133], %177 {strides = array<i32>} : memref<1x8x16x4xf32, #tpu.memory_space<vmem>>, vector<1x8x16x4xf32>,
    return
  }
  func.func @transform_0(%arg0: i32, %arg1: i32) -> (i32, i32, i32, i32) {
    %c0_i32 = arith.constant 0 : i32
    %c0_i32_0 = arith.constant 0 : i32
    %c0_i32_1 = arith.constant 0 : i32
    return %arg0, %arg1, %c0_i32, %c0_i32_0 : i32, i32, i32, i32
  }
  func.func @transform_1(%arg0: i32, %arg1: i32) -> (i32, i32, i32, i32) {
    %c8_i32 = arith.constant 8 : i32
    %0 = arith.muli %arg1, %c8_i32 : i32
    %c1_i32 = arith.constant 1 : i32
    %1 = arith.subi %0, %c1_i32 : i32
    %c0_i32 = arith.constant 0 : i32
    %2 = arith.maxsi %1, %c0_i32 : i32
    %c0_i32_0 = arith.constant 0 : i32
    %c0_i32_1 = arith.constant 0 : i32
    %c0_i32_2 = arith.constant 0 : i32
    return %arg0, %2, %c0_i32_0, %c0_i32_1 : i32, i32, i32, i32
  }
  func.func @transform_2(%arg0: i32, %arg1: i32) -> (i32, i32, i32, i32) {
    %c8_i32 = arith.constant 8 : i32
    %0 = arith.muli %arg1, %c8_i32 : i32
    %c8_i32_0 = arith.constant 8 : i32
    %1 = arith.addi %0, %c8_i32_0 : i32
    %c15_i32 = arith.constant 15 : i32
    %2 = arith.minsi %1, %c15_i32 : i32
    %c0_i32 = arith.constant 0 : i32
    %c0_i32_1 = arith.constant 0 : i32
    %c0_i32_2 = arith.constant 0 : i32
    return %arg0, %2, %c0_i32, %c0_i32_1 : i32, i32, i32, i32
  }
  func.func @transform_3(%arg0: i32, %arg1: i32) -> (i32, i32) {
    %c0_i32 = arith.constant 0 : i32
    %c0_i32_0 = arith.constant 0 : i32
    %c0_i32_1 = arith.constant 0 : i32
    return %c0_i32, %c0_i32_0 : i32, i32
  }
  func.func @transform_4(%arg0: i32, %arg1: i32) -> (i32, i32) {
    %c0_i32 = arith.constant 0 : i32
    %c0_i32_0 = arith.constant 0 : i32
    %c0_i32_1 = arith.constant 0 : i32
    return %c0_i32, %c0_i32_0 : i32, i32
  }
  func.func @transform_5(%arg0: i32, %arg1: i32) -> (i32, i32, i32, i32) {
    %c0_i32 = arith.constant 0 : i32
    %c0_i32_0 = arith.constant 0 : i32
    %c0_i32_1 = arith.constant 0 : i32
    %c0_i32_2 = arith.constant 0 : i32
    %c0_i32_3 = arith.constant 0 : i32
    return %c0_i32, %c0_i32_0, %c0_i32_1, %c0_i32_2 : i32, i32, i32, i32
  }
  func.func @transform_6(%arg0: i32, %arg1: i32) -> (i32, i32) {
    %c0_i32 = arith.constant 0 : i32
    %c0_i32_0 = arith.constant 0 : i32
    %c0_i32_1 = arith.constant 0 : i32
    return %c0_i32, %c0_i32_0 : i32, i32
  }
  func.func @transform_7(%arg0: i32, %arg1: i32) -> (i32, i32, i32, i32) {
    %c0_i32 = arith.constant 0 : i32
    %c0_i32_0 = arith.constant 0 : i32
    %c0_i32_1 = arith.constant 0 : i32
    return %arg0, %arg1, %c0_i32, %c0_i32_0 : i32, i32, i32, i32
  }
}

</mosaic_0001>

<llo_original>
// kernel: tpu_custom_call.1
$region0: #{tpu_custom_call.1}
  #allocation0 [shape = 'u32[]', space=smem, size = 0x4, offset = 0x4, fixed_abs, tag = 'smem constant byte address 0x4 - core index']
  #allocation1 [shape = 'u32[72,128]{1,0:T(1,128)}', space=vmem, size = 0x9000, scoped, tag = 'internal scratch']
  #allocation2 [shape = 'bf16[176,2]{1,0:T(8,128)(2,1)}', space=vmem, size = 0xb000, scoped, tag = 'scratch operand']
  #allocation3 [shape = 'f32[128,4]{1,0:T(8,128)}', space=vmem, size = 0x10000, scoped, tag = 'scratch operand']
  %s0 = inlined_call_operand.vmem [shape: f32[2,16,16,4], index: 0, kind: input, shape index: {}]
  %s1 = inlined_call_operand.vmem [shape: f32[2,16,16,4], index: 1, kind: input, shape index: {}]
  %s2 = inlined_call_operand.vmem [shape: f32[2,16,16,4], index: 2, kind: input, shape index: {}]
  %s3 = inlined_call_operand.vmem [shape: bf16[4,2], index: 3, kind: input, shape index: {}]
  %s4 = inlined_call_operand.vmem [shape: f32[1,2], index: 4, kind: input, shape index: {}]
  %s5 = inlined_call_operand.vmem [shape: bf16[3,3,2,4], index: 5, kind: input, shape index: {}]
  %s6 = inlined_call_operand.vmem [shape: f32[1,4], index: 6, kind: input, shape index: {}]
  %s7 = inlined_call_operand.vmem [shape: f32[2,16,16,4], index: 7, kind: output, shape index: {}]
  %s8 = sld [smem:[#allocation0]]
  $region61: #{tpu_custom_call.1} parent=0
    _
  %s10 = ssub.s32 1, %s8
  %s11 = scalar_select 0, %s10, %s8
  loop: start=0, step=1, limit=6
  $region2: #{tpu_custom_call.1} parent=0 // loop_pre_header
    _
  $region3: #{tpu_custom_call.1} parent=0 // loop_header
    %s13 = sphi 0, %s17
    %p14 = scmp.ge.s32.totalorder %s13, 6
    %s20 = sphi 0, %s32
    %s21 = sphi 0, %s28
    %s22 = sphi 0, %s20
    %s23 = sphi 0, %s21
    %s24 = sphi 0, %s22
    %s25 = sphi 0, %s23
    %s37 = sphi 0, %s39
    %s40 = sphi 0, %s37
    %s41 = sphi 0, %s40
    %s57 = sphi 0, %s41
    %s73 = sphi 0, %s75
    %s76 = sphi 0, %s73
    %s77 = sphi 0, %s76
    %s93 = sphi 0, %s77
    %s109 = sphi 0, %s111
    %s112 = sphi 0, %s109
    %s113 = sphi 0, %s112
    %s129 = sphi 0, %s113
    %s133 = sphi 0, %s133
    %s135 = sphi 0, %s133
    %s136 = sphi 0, %s135
    %s150 = sphi 0, %s136
    %s154 = sphi 0, %s154
    %s156 = sphi 0, %s154
    %s157 = sphi 0, %s156
    %s171 = sphi 0, %s157
    %s175 = sphi 0, %s175
    %s177 = sphi 0, %s175
    %s178 = sphi 0, %s177
    %s192 = sphi 0, %s178
    %s196 = sphi 0, %s196
    %s198 = sphi 0, %s196
    %s199 = sphi 0, %s198
    %s213 = sphi 0, %s199
    %s221 = sphi 0, %s223
    %s224 = sphi 0, %s221
    %s225 = sphi 0, %s224
    %s241 = sphi 0, %s225
  $region4: #{tpu_custom_call.1} parent=0 // loop_header_branch
    %16 = sbr.rel (%p14) target = $region8
  $region5: #{tpu_custom_call.1} parent=0 // loop_body
    %s18 = ssub.s32 %s13, 1
    %s19 = ssub.s32 %s13, 2
    %s26 = sadd.s32 1, %s21
    %p27 = scmp.ge.s32.totalorder %s26, 2
    %s28 = scalar_select %p27, 0, %s26
    %s29 = sadd.s32 1, %s20
    %s30 = scalar_select %p27, %s29, %s20
    %p31 = scmp.ge.s32.totalorder %s30, 2
    %s32 = scalar_select %p31, 0, %s30
    %s33 = ssub.s32 %s20, %s32
    %s34 = ssub.s32 %s21, %s28
    %s35 = sor.u32 %s33, %s34
    %p36 = scmp.eq.s32.totalorder %s35, 0
    %s38 = sadd.s32 %s37, 1
    %s39 = scalar_select %p36, %s37, %s38
    %p42 = pneg %p36
    %p43 = scmp.eq.s32.totalorder %s13, 3
    %p44 = por %p42, %p43
    %p45 = scmp.ne.s32.totalorder %s37, %s40
    %p46 = scmp.eq.s32.totalorder %s13, 0
    %p47 = por %p45, %p46
    %p48 = scmp.ne.s32.totalorder %s37, %s40
    %p49 = scmp.eq.s32.totalorder %s18, 3
    %p50 = por %p48, %p49
    %p51 = scmp.ne.s32.totalorder %s40, %s41
    %p52 = scmp.eq.s32.totalorder %s18, 0
    %p53 = por %p51, %p52
    %p54 = scmp.ne.s32.totalorder %s40, %s41
    %p55 = scmp.eq.s32.totalorder %s19, 3
    %p56 = por %p54, %p55
    %p58 = scmp.ne.s32.totalorder %s41, %s57
    %p59 = scmp.eq.s32.totalorder %s19, 0
    %p60 = por %p58, %p59
    %s61 = smul.u32 %s21, 8
    %s62 = ssub.s32 %s61, 1
    %p63 = scmp.gt.s32.totalorder %s62, 0
    %s64 = scalar_select %p63, %s62, 0
    %s65 = smul.u32 %s28, 8
    %s66 = ssub.s32 %s65, 1
    %p67 = scmp.gt.s32.totalorder %s66, 0
    %s68 = scalar_select %p67, %s66, 0
    %s69 = ssub.s32 %s20, %s32
    %s70 = ssub.s32 %s64, %s68
    %s71 = sor.u32 %s69, %s70
    %p72 = scmp.eq.s32.totalorder %s71, 0
    %s74 = sadd.s32 %s73, 1
    %s75 = scalar_select %p72, %s73, %s74
    %p78 = pneg %p72
    %p79 = scmp.eq.s32.totalorder %s13, 3
    %p80 = por %p78, %p79
    %p81 = scmp.ne.s32.totalorder %s73, %s76
    %p82 = scmp.eq.s32.totalorder %s13, 0
    %p83 = por %p81, %p82
    %p84 = scmp.ne.s32.totalorder %s73, %s76
    %p85 = scmp.eq.s32.totalorder %s18, 3
    %p86 = por %p84, %p85
    %p87 = scmp.ne.s32.totalorder %s76, %s77
    %p88 = scmp.eq.s32.totalorder %s18, 0
    %p89 = por %p87, %p88
    %p90 = scmp.ne.s32.totalorder %s76, %s77
    %p91 = scmp.eq.s32.totalorder %s19, 3
    %p92 = por %p90, %p91
    %p94 = scmp.ne.s32.totalorder %s77, %s93
    %p95 = scmp.eq.s32.totalorder %s19, 0
    %p96 = por %p94, %p95
    %s97 = smul.u32 %s21, 8
    %s98 = sadd.s32 %s97, 8
    %p99 = scmp.lt.s32.totalorder %s98, 15
    %s100 = scalar_select %p99, %s98, 15
    %s101 = smul.u32 %s28, 8
    %s102 = sadd.s32 %s101, 8
    %p103 = scmp.lt.s32.totalorder %s102, 15
    %s104 = scalar_select %p103, %s102, 15
    %s105 = ssub.s32 %s20, %s32
    %s106 = ssub.s32 %s100, %s104
    %s107 = sor.u32 %s105, %s106
    %p108 = scmp.eq.s32.totalorder %s107, 0
    %s110 = sadd.s32 %s109, 1
    %s111 = scalar_select %p108, %s109, %s110
    %p114 = pneg %p108
    %p115 = scmp.eq.s32.totalorder %s13, 3
    %p116 = por %p114, %p115
    %p117 = scmp.ne.s32.totalorder %s109, %s112
    %p118 = scmp.eq.s32.totalorder %s13, 0
    %p119 = por %p117, %p118
    %p120 = scmp.ne.s32.totalorder %s109, %s112
    %p121 = scmp.eq.s32.totalorder %s18, 3
    %p122 = por %p120, %p121
    %p123 = scmp.ne.s32.totalorder %s112, %s113
    %p124 = scmp.eq.s32.totalorder %s18, 0
    %p125 = por %p123, %p124
    %p126 = scmp.ne.s32.totalorder %s112, %s113
    %p127 = scmp.eq.s32.totalorder %s19, 3
    %p128 = por %p126, %p127
    %p130 = scmp.ne.s32.totalorder %s113, %s129
    %p131 = scmp.eq.s32.totalorder %s19, 0
    %p132 = por %p130, %p131
    %s134 = sadd.s32 %s133, 1
    %p137 = scmp.eq.s32.totalorder %s13, 3
    %p138 = scmp.ne.s32.totalorder %s133, %s135
    %p139 = scmp.eq.s32.totalorder %s13, 0
    %p140 = por %p138, %p139
    %p141 = scmp.ne.s32.totalorder %s133, %s135
    %p142 = scmp.eq.s32.totalorder %s18, 3
    %p143 = por %p141, %p142
    %p144 = scmp.ne.s32.totalorder %s135, %s136
    %p145 = scmp.eq.s32.totalorder %s18, 0
    %p146 = por %p144, %p145
    %p147 = scmp.ne.s32.totalorder %s135, %s136
    %p148 = scmp.eq.s32.totalorder %s19, 3
    %p149 = por %p147, %p148
    %p151 = scmp.ne.s32.totalorder %s136, %s150
    %p152 = scmp.eq.s32.totalorder %s19, 0
    %p153 = por %p151, %p152
    %s155 = sadd.s32 %s154, 1
    %p158 = scmp.eq.s32.totalorder %s13, 3
    %p159 = scmp.ne.s32.totalorder %s154, %s156
    %p160 = scmp.eq.s32.totalorder %s13, 0
    %p161 = por %p159, %p160
    %p162 = scmp.ne.s32.totalorder %s154, %s156
    %p163 = scmp.eq.s32.totalorder %s18, 3
    %p164 = por %p162, %p163
    %p165 = scmp.ne.s32.totalorder %s156, %s157
    %p166 = scmp.eq.s32.totalorder %s18, 0
    %p167 = por %p165, %p166
    %p168 = scmp.ne.s32.totalorder %s156, %s157
    %p169 = scmp.eq.s32.totalorder %s19, 3
    %p170 = por %p168, %p169
    %p172 = scmp.ne.s32.totalorder %s157, %s171
    %p173 = scmp.eq.s32.totalorder %s19, 0
    %p174 = por %p172, %p173
    %s176 = sadd.s32 %s175, 1
    %p179 = scmp.eq.s32.totalorder %s13, 3
    %p180 = scmp.ne.s32.totalorder %s175, %s177
    %p181 = scmp.eq.s32.totalorder %s13, 0
    %p182 = por %p180, %p181
    %p183 = scmp.ne.s32.totalorder %s175, %s177
    %p184 = scmp.eq.s32.totalorder %s18, 3
    %p185 = por %p183, %p184
    %p186 = scmp.ne.s32.totalorder %s177, %s178
    %p187 = scmp.eq.s32.totalorder %s18, 0
    %p188 = por %p186, %p187
    %p189 = scmp.ne.s32.totalorder %s177, %s178
    %p190 = scmp.eq.s32.totalorder %s19, 3
    %p191 = por %p189, %p190
    %p193 = scmp.ne.s32.totalorder %s178, %s192
    %p194 = scmp.eq.s32.totalorder %s19, 0
    %p195 = por %p193, %p194
    %s197 = sadd.s32 %s196, 1
    %p200 = scmp.eq.s32.totalorder %s13, 3
    %p201 = scmp.ne.s32.totalorder %s196, %s198
    %p202 = scmp.eq.s32.totalorder %s13, 0
    %p203 = por %p201, %p202
    %p204 = scmp.ne.s32.totalorder %s196, %s198
    %p205 = scmp.eq.s32.totalorder %s18, 3
    %p206 = por %p204, %p205
    %p207 = scmp.ne.s32.totalorder %s198, %s199
    %p208 = scmp.eq.s32.totalorder %s18, 0
    %p209 = por %p207, %p208
    %p210 = scmp.ne.s32.totalorder %s198, %s199
    %p211 = scmp.eq.s32.totalorder %s19, 3
    %p212 = por %p210, %p211
    %p214 = scmp.ne.s32.totalorder %s199, %s213
    %p215 = scmp.eq.s32.totalorder %s19, 0
    %p216 = por %p214, %p215
    %s217 = ssub.s32 %s20, %s32
    %s218 = ssub.s32 %s21, %s28
    %s219 = sor.u32 %s217, %s218
    %p220 = scmp.eq.s32.totalorder %s219, 0
    %s222 = sadd.s32 %s221, 1
    %s223 = scalar_select %p220, %s221, %s222
    %p226 = pneg %p220
    %p227 = scmp.eq.s32.totalorder %s13, 3
    %p228 = por %p226, %p227
    %p229 = scmp.ne.s32.totalorder %s221, %s224
    %p230 = scmp.eq.s32.totalorder %s13, 0
    %p231 = por %p229, %p230
    %p232 = scmp.ne.s32.totalorder %s221, %s224
    %p233 = scmp.eq.s32.totalorder %s18, 3
    %p234 = por %p232, %p233
    %p235 = scmp.ne.s32.totalorder %s224, %s225
    %p236 = scmp.eq.s32.totalorder %s18, 0
    %p237 = por %p235, %p236
    %p238 = scmp.ne.s32.totalorder %s224, %s225
    %p239 = scmp.eq.s32.totalorder %s19, 3
    %p240 = por %p238, %p239
    %p242 = scmp.ne.s32.totalorder %s225, %s241
    %p243 = scmp.eq.s32.totalorder %s19, 0
    %p244 = por %p242, %p243
    %p245 = scmp.le.s32.totalorder 1, %s13
    %p246 = scmp.lt.s32.totalorder %s13, 5
    %p247 = pnand %p245, %p246
    %p248 = pneg %p247
    // Predicated region
    $region9: #{tpu_custom_call.1} parent=5 // pred_check
      _
    $region10: #{tpu_custom_call.1} parent=5 // pred_check_branch
      %250 = sbr.rel (%p247) target = $region12
    $region11: #{tpu_custom_call.1} parent=5 // pred_region
      %s251 = ssub.s32 %s13, 1
      // Predicated region
      $region13: #{tpu_custom_call.1} parent=11 // pred_check
        %p252 = pneg %p146
      $region14: #{tpu_custom_call.1} parent=11 // pred_check_branch
        %254 = sbr.rel (%p252) target = $region16
      $region15: #{tpu_custom_call.1} parent=11 // pred_region
        _
      $region16: #{tpu_custom_call.1} parent=11 // pred_fallthru
        _
      // Predicated region
      $region17: #{tpu_custom_call.1} parent=11 // pred_check
        %p255 = pneg %p167
      $region18: #{tpu_custom_call.1} parent=11 // pred_check_branch
        %257 = sbr.rel (%p255) target = $region20
      $region19: #{tpu_custom_call.1} parent=11 // pred_region
        _
      $region20: #{tpu_custom_call.1} parent=11 // pred_fallthru
        _
      // Predicated region
      $region21: #{tpu_custom_call.1} parent=11 // pred_check
        %p258 = pneg %p188
      $region22: #{tpu_custom_call.1} parent=11 // pred_check_branch
        %260 = sbr.rel (%p258) target = $region24
      $region23: #{tpu_custom_call.1} parent=11 // pred_region
        _
      $region24: #{tpu_custom_call.1} parent=11 // pred_fallthru
        _
      // Predicated region
      $region25: #{tpu_custom_call.1} parent=11 // pred_check
        %p261 = pneg %p209
      $region26: #{tpu_custom_call.1} parent=11 // pred_check_branch
        %263 = sbr.rel (%p261) target = $region28
      $region27: #{tpu_custom_call.1} parent=11 // pred_region
        _
      $region28: #{tpu_custom_call.1} parent=11 // pred_fallthru
        _
    $region12: #{tpu_custom_call.1} parent=5 // pred_fallthru
      _
    %p264 = scmp.lt.s32.totalorder %s13, 4
    // Predicated region
    $region29: #{tpu_custom_call.1} parent=5 // pred_check
      %p265 = pneg %p264
    $region30: #{tpu_custom_call.1} parent=5 // pred_check_branch
      %267 = sbr.rel (%p265) target = $region32
    $region31: #{tpu_custom_call.1} parent=5 // pred_region
      // Predicated region
      $region33: #{tpu_custom_call.1} parent=31 // pred_check
        %p268 = pneg %p47
      $region34: #{tpu_custom_call.1} parent=31 // pred_check_branch
        %270 = sbr.rel (%p268) target = $region36
      $region35: #{tpu_custom_call.1} parent=31 // pred_region
        %s271 = smul.u32 8, %s21
        %p272 = scmp.lt.s32.totalorder %s20, 1
        %s273 = scalar_select %p272, %s20, 1
        %p274 = scmp.lt.s32.totalorder %s271, 15
        %s275 = scalar_select %p274, %s271, 15
        %s276 = smul.addr %s275, 2
        %s277 = smul.addr %s273, 32
        %s278 = sadd.s32 %s276, %s277
        %s279 = smul.addr %s278, 8
        %s280 = scalar_lea.vmem %s0, %s279
        %s281 = smul.u32 8, %s21
      $region36: #{tpu_custom_call.1} parent=31 // pred_fallthru
        _
      // Predicated region
      $region37: #{tpu_custom_call.1} parent=31 // pred_check
        %p282 = pneg %p83
      $region38: #{tpu_custom_call.1} parent=31 // pred_check_branch
        %284 = sbr.rel (%p282) target = $region40
      $region39: #{tpu_custom_call.1} parent=31 // pred_region
        %s285 = smul.u32 %s21, 8
        %s286 = ssub.s32 %s285, 1
        %p287 = scmp.gt.s32.totalorder %s286, 0
        %s288 = scalar_select %p287, %s286, 0
        %p289 = scmp.lt.s32.totalorder %s20, 1
        %s290 = scalar_select %p289, %s20, 1
        %p291 = scmp.lt.s32.totalorder %s288, 15
        %s292 = scalar_select %p291, %s288, 15
        %s293 = smul.addr %s292, 2
        %s294 = smul.addr %s290, 32
        %s295 = sadd.s32 %s293, %s294
        %s296 = smul.addr %s295, 8
        %s297 = scalar_lea.vmem %s1, %s296
        %s298 = smul.u32 %s21, 8
        %s299 = ssub.s32 %s298, 1
        %p300 = scmp.gt.s32.totalorder %s299, 0
        %s301 = scalar_select %p300, %s299, 0
      $region40: #{tpu_custom_call.1} parent=31 // pred_fallthru
        _
      // Predicated region
      $region41: #{tpu_custom_call.1} parent=31 // pred_check
        %p302 = pneg %p119
      $region42: #{tpu_custom_call.1} parent=31 // pred_check_branch
        %304 = sbr.rel (%p302) target = $region44
      $region43: #{tpu_custom_call.1} parent=31 // pred_region
        %s305 = smul.u32 %s21, 8
        %s306 = sadd.s32 %s305, 8
        %p307 = scmp.lt.s32.totalorder %s306, 15
        %s308 = scalar_select %p307, %s306, 15
        %p309 = scmp.lt.s32.totalorder %s20, 1
        %s310 = scalar_select %p309, %s20, 1
        %p311 = scmp.lt.s32.totalorder %s308, 15
        %s312 = scalar_select %p311, %s308, 15
        %s313 = smul.addr %s312, 2
        %s314 = smul.addr %s310, 32
        %s315 = sadd.s32 %s313, %s314
        %s316 = smul.addr %s315, 8
        %s317 = scalar_lea.vmem %s2, %s316
        %s318 = smul.u32 %s21, 8
        %s319 = sadd.s32 %s318, 8
        %p320 = scmp.lt.s32.totalorder %s319, 15
        %s321 = scalar_select %p320, %s319, 15
      $region44: #{tpu_custom_call.1} parent=31 // pred_fallthru
        _
    $region32: #{tpu_custom_call.1} parent=5 // pred_fallthru
      _
    %p322 = scmp.le.s32.totalorder 1, %s13
    %p323 = scmp.lt.s32.totalorder %s13, 5
    %p324 = pnand %p322, %p323
    %p325 = pneg %p324
    // Predicated region
    $region45: #{tpu_custom_call.1} parent=5 // pred_check
      _
    $region46: #{tpu_custom_call.1} parent=5 // pred_check_branch
      %327 = sbr.rel (%p324) target = $region48
    $region47: #{tpu_custom_call.1} parent=5 // pred_region
      %s328 = ssub.s32 %s13, 1
      %s329 = smul.u32 8, %s23
      %p330 = scmp.lt.s32.totalorder %s22, 1
      %s331 = scalar_select %p330, %s22, 1
      %p332 = scmp.lt.s32.totalorder %s329, 15
      %s333 = scalar_select %p332, %s329, 15
      %s334 = smul.addr %s333, 2
      %s335 = smul.addr %s331, 32
      %s336 = sadd.s32 %s334, %s335
      %s337 = smul.addr %s336, 8
      %s338 = scalar_lea.vmem %s0, %s337
      %p339 = pneg %p53
      %p340 = pneg %p50
      %s341 = smul.u32 %s23, 8
      %s342 = ssub.s32 %s341, 1
      %p343 = scmp.gt.s32.totalorder %s342, 0
      %s344 = scalar_select %p343, %s342, 0
      %p345 = scmp.lt.s32.totalorder %s22, 1
      %s346 = scalar_select %p345, %s22, 1
      %p347 = scmp.lt.s32.totalorder %s344, 15
      %s348 = scalar_select %p347, %s344, 15
      %s349 = smul.addr %s348, 2
      %s350 = smul.addr %s346, 32
      %s351 = sadd.s32 %s349, %s350
      %s352 = smul.addr %s351, 8
      %s353 = scalar_lea.vmem %s1, %s352
      %p354 = pneg %p89
      %p355 = pneg %p86
      %s356 = smul.u32 %s23, 8
      %s357 = sadd.s32 %s356, 8
      %p358 = scmp.lt.s32.totalorder %s357, 15
      %s359 = scalar_select %p358, %s357, 15
      %p360 = scmp.lt.s32.totalorder %s22, 1
      %s361 = scalar_select %p360, %s22, 1
      %p362 = scmp.lt.s32.totalorder %s359, 15
      %s363 = scalar_select %p362, %s359, 15
      %s364 = smul.addr %s363, 2
      %s365 = smul.addr %s361, 32
      %s366 = sadd.s32 %s364, %s365
      %s367 = smul.addr %s366, 8
      %s368 = scalar_lea.vmem %s2, %s367
      %p369 = pneg %p125
      %p370 = pneg %p122
      %p371 = pneg %p146
      %p372 = pneg %p143
      %p373 = pneg %p167
      %p374 = pneg %p164
      %p375 = pneg %p188
      %p376 = pneg %p185
      %p377 = pneg %p209
      %p378 = pneg %p206
      %p379 = pneg %p237
      %p380 = pneg %p234
      %s381 = smul.u32 8, %s23
      %p382 = scmp.lt.s32.totalorder %s22, 1
      %s383 = scalar_select %p382, %s22, 1
      %p384 = scmp.lt.s32.totalorder %s381, 15
      %s385 = scalar_select %p384, %s381, 15
      %s386 = smul.addr %s385, 2
      %s387 = smul.addr %s383, 32
      %s388 = sadd.s32 %s386, %s387
      %s389 = smul.addr %s388, 8
      %s390 = scalar_lea.vmem %s7, %s389
      %s391 = smul.u32 8, %s23
      %p392 = scmp.lt.s32.totalorder %s22, 1
      %s393 = scalar_select %p392, %s22, 1
      %p394 = scmp.lt.s32.totalorder %s391, 15
      %s395 = scalar_select %p394, %s391, 15
      %s396 = smul.addr %s395, 2
      %s397 = smul.addr %s393, 32
      %s398 = sadd.s32 %s396, %s397
      %s399 = smul.addr %s398, 8
      %s400 = scalar_lea.vmem %s0, %s399
      %s401 = smul.u32 8, %s23
      %s402 = smul.u32 %s23, 8
      %s403 = ssub.s32 %s402, 1
      %p404 = scmp.gt.s32.totalorder %s403, 0
      %s405 = scalar_select %p404, %s403, 0
      %p406 = scmp.lt.s32.totalorder %s22, 1
      %s407 = scalar_select %p406, %s22, 1
      %p408 = scmp.lt.s32.totalorder %s405, 15
      %s409 = scalar_select %p408, %s405, 15
      %s410 = smul.addr %s409, 2
      %s411 = smul.addr %s407, 32
      %s412 = sadd.s32 %s410, %s411
      %s413 = smul.addr %s412, 8
      %s414 = scalar_lea.vmem %s1, %s413
      %s415 = smul.u32 %s23, 8
      %s416 = ssub.s32 %s415, 1
      %p417 = scmp.gt.s32.totalorder %s416, 0
      %s418 = scalar_select %p417, %s416, 0
      %s419 = smul.u32 %s23, 8
      %s420 = sadd.s32 %s419, 8
      %p421 = scmp.lt.s32.totalorder %s420, 15
      %s422 = scalar_select %p421, %s420, 15
      %p423 = scmp.lt.s32.totalorder %s22, 1
      %s424 = scalar_select %p423, %s22, 1
      %p425 = scmp.lt.s32.totalorder %s422, 15
      %s426 = scalar_select %p425, %s422, 15
      %s427 = smul.addr %s426, 2
      %s428 = smul.addr %s424, 32
      %s429 = sadd.s32 %s427, %s428
      %s430 = smul.addr %s429, 8
      %s431 = scalar_lea.vmem %s2, %s430
      %s432 = smul.u32 %s23, 8
      %s433 = sadd.s32 %s432, 8
      %p434 = scmp.lt.s32.totalorder %s433, 15
      %s435 = scalar_select %p434, %s433, 15
      %s436 = smul.u32 8, %s23
      %p437 = scmp.lt.s32.totalorder %s22, 1
      %s438 = scalar_select %p437, %s22, 1
      %p439 = scmp.lt.s32.totalorder %s436, 15
      %s440 = scalar_select %p439, %s436, 15
      %s441 = smul.addr %s440, 2
      %s442 = smul.addr %s438, 32
      %s443 = sadd.s32 %s441, %s442
      %s444 = smul.addr %s443, 8
      %s445 = scalar_lea.vmem %s7, %s444
      %s446 = smul.u32 8, %s23
      %p450 = scmp.eq.s32.totalorder %s23, 0
      %p451 = scmp.eq.s32.totalorder %s23, 1
      %v452 = vld [vmem:[%s3] sm:$0x3]
      %v453 = vld [vmem:[%s4] sm:$0x1]
      %v454 = vld [vmem:[%s400] sm:$0xff]
      %v455 = vld [vmem:[%s400 + $0x8] sm:$0xff]
      %v456 = vld [vmem:[%s400 + $0x10] sm:$0xff]
      %v457 = vld [vmem:[%s400 + $0x18] sm:$0xff]
      %v458 = vld [vmem:[%s400 + $0x20] sm:$0xff]
      %v459 = vld [vmem:[%s400 + $0x28] sm:$0xff]
      %v460 = vld [vmem:[%s400 + $0x30] sm:$0xff]
      %v461 = vld [vmem:[%s400 + $0x38] sm:$0xff]
      %v462 = vld [vmem:[%s400 + $0x40] sm:$0xff]
      %v463 = vld [vmem:[%s400 + $0x48] sm:$0xff]
      %v464 = vld [vmem:[%s400 + $0x50] sm:$0xff]
      %v465 = vld [vmem:[%s400 + $0x58] sm:$0xff]
      %v466 = vld [vmem:[%s400 + $0x60] sm:$0xff]
      %v467 = vld [vmem:[%s400 + $0x68] sm:$0xff]
      %v468 = vld [vmem:[%s400 + $0x70] sm:$0xff]
      %v469 = vld [vmem:[%s400 + $0x78] sm:$0xff]
      %v470 = vpack.c.bf16 %v455, %v454
      %v471 = vpack.c.bf16 %v457, %v456
      %v472 = vpack.c.bf16 %v459, %v458
      %v473 = vpack.c.bf16 %v461, %v460
      %v474 = vpack.c.bf16 %v463, %v462
      %v475 = vpack.c.bf16 %v465, %v464
      %v476 = vpack.c.bf16 %v467, %v466
      %v477 = vpack.c.bf16 %v469, %v468
      %v479 = vperm.slane %v453, 0
      %vm481 = vcmask 31744
      %v483 = vsel %vm481, %v470, 0
      %v486 = vsel %vm481, %v471, 0
      %v489 = vsel %vm481, %v472, 0
      %v492 = vsel %vm481, %v473, 0
      %v495 = vsel %vm481, %v474, 0
      %v498 = vsel %vm481, %v475, 0
      %v501 = vsel %vm481, %v476, 0
      %v504 = vsel %vm481, %v477, 0
      %vm506 = vcmask 1041408
      %v508 = vsel %vm506, %v452, 0
      %510 = vmatpush.bf16.msra.mxu0 0
      %511 = vmatpush.bf16.msra.mxu0 0
      %512 = vmatpush.bf16.msra.mxu0 0
      %513 = vmatpush.bf16.msra.mxu0 0
      %514 = vmatpush.bf16.msra.mxu0 0
      %515 = vmatpush.bf16.msra.mxu0 0
      %516 = vmatpush.bf16.msra.mxu0 0
      %517 = vmatpush.bf16.msra.mxu0 %v508
      %518 = vmatmul.bf16.gmra.mxu0 %v483
      %v519 = vpop.f32.mrf.mxu0
      %v520 = vadd.f32 %v479, %v519
      %v521 = vpop.f32.mrf.mxu0
      %v522 = vadd.f32 %v479, %v521
      %523 = vmatmul.bf16.gmra.mxu0 %v486
      %v524 = vpop.f32.mrf.mxu0
      %v525 = vadd.f32 %v479, %v524
      %v526 = vpop.f32.mrf.mxu0
      %v527 = vadd.f32 %v479, %v526
      %528 = vmatmul.bf16.gmra.mxu0 %v489
      %v529 = vpop.f32.mrf.mxu0
      %v530 = vadd.f32 %v479, %v529
      %v531 = vpop.f32.mrf.mxu0
      %v532 = vadd.f32 %v479, %v531
      %533 = vmatmul.bf16.gmra.mxu0 %v492
      %v534 = vpop.f32.mrf.mxu0
      %v535 = vadd.f32 %v479, %v534
      %v536 = vpop.f32.mrf.mxu0
      %v537 = vadd.f32 %v479, %v536
      %538 = vmatmul.bf16.gmra.mxu0 %v495
      %v539 = vpop.f32.mrf.mxu0
      %v540 = vadd.f32 %v479, %v539
      %v541 = vpop.f32.mrf.mxu0
      %v542 = vadd.f32 %v479, %v541
      %543 = vmatmul.bf16.gmra.mxu0 %v498
      %v544 = vpop.f32.mrf.mxu0
      %v545 = vadd.f32 %v479, %v544
      %v546 = vpop.f32.mrf.mxu0
      %v547 = vadd.f32 %v479, %v546
      %548 = vmatmul.bf16.gmra.mxu0 %v501
      %v549 = vpop.f32.mrf.mxu0
      %v550 = vadd.f32 %v479, %v549
      %v551 = vpop.f32.mrf.mxu0
      %v552 = vadd.f32 %v479, %v551
      %553 = vmatmul.bf16.gmra.mxu0 %v504
      %v554 = vpop.f32.mrf.mxu0
      %v555 = vadd.f32 %v479, %v554
      %v556 = vpop.f32.mrf.mxu0
      %v557 = vadd.f32 %v479, %v556
      %558 = vdwg.mxu0
      %v559 = vxor.u32 %v520, 2147483648
      %v560 = vxor.u32 %v522, 2147483648
      %v561 = vxor.u32 %v525, 2147483648
      %v562 = vxor.u32 %v527, 2147483648
      %v563 = vxor.u32 %v530, 2147483648
      %v564 = vxor.u32 %v532, 2147483648
      %v565 = vxor.u32 %v535, 2147483648
      %v566 = vxor.u32 %v537, 2147483648
      %v567 = vxor.u32 %v540, 2147483648
      %v568 = vxor.u32 %v542, 2147483648
      %v569 = vxor.u32 %v545, 2147483648
      %v570 = vxor.u32 %v547, 2147483648
      %v571 = vxor.u32 %v550, 2147483648
      %v572 = vxor.u32 %v552, 2147483648
      %v573 = vxor.u32 %v555, 2147483648
      %v574 = vxor.u32 %v557, 2147483648
      %v575 = vmul.f32 %v559, 1.442695
      %v576 = vpow.pop %v575
      %v577 = vmul.f32 %v560, 1.442695
      %v578 = vpow.pop %v577
      %v579 = vmul.f32 %v561, 1.442695
      %v580 = vpow.pop %v579
      %v581 = vmul.f32 %v562, 1.442695
      %v582 = vpow.pop %v581
      %v583 = vmul.f32 %v563, 1.442695
      %v584 = vpow.pop %v583
      %v585 = vmul.f32 %v564, 1.442695
      %v586 = vpow.pop %v585
      %v587 = vmul.f32 %v565, 1.442695
      %v588 = vpow.pop %v587
      %v589 = vmul.f32 %v566, 1.442695
      %v590 = vpow.pop %v589
      %v591 = vmul.f32 %v567, 1.442695
      %v592 = vpow.pop %v591
      %v593 = vmul.f32 %v568, 1.442695
      %v594 = vpow.pop %v593
      %v595 = vmul.f32 %v569, 1.442695
      %v596 = vpow.pop %v595
      %v597 = vmul.f32 %v570, 1.442695
      %v598 = vpow.pop %v597
      %v599 = vmul.f32 %v571, 1.442695
      %v600 = vpow.pop %v599
      %v601 = vmul.f32 %v572, 1.442695
      %v602 = vpow.pop %v601
      %v603 = vmul.f32 %v573, 1.442695
      %v604 = vpow.pop %v603
      %v605 = vmul.f32 %v574, 1.442695
      %v606 = vpow.pop %v605
      %v607 = vadd.f32 %v576, 1.0
      %v608 = vadd.f32 %v578, 1.0
      %v609 = vadd.f32 %v580, 1.0
      %v610 = vadd.f32 %v582, 1.0
      %v611 = vadd.f32 %v584, 1.0
      %v612 = vadd.f32 %v586, 1.0
      %v613 = vadd.f32 %v588, 1.0
      %v614 = vadd.f32 %v590, 1.0
      %v615 = vadd.f32 %v592, 1.0
      %v616 = vadd.f32 %v594, 1.0
      %v617 = vadd.f32 %v596, 1.0
      %v618 = vadd.f32 %v598, 1.0
      %v619 = vadd.f32 %v600, 1.0
      %v620 = vadd.f32 %v602, 1.0
      %v621 = vadd.f32 %v604, 1.0
      %v622 = vadd.f32 %v606, 1.0
      %v623 = vrcp.pop %v607
      %v624 = vmul.f32 %v607, %v623
      %v625 = vsub.f32 1.0, %v624
      %v626 = vmul.f32 %v623, %v625
      %v627 = vadd.f32 %v623, %v626
      %vm628 = vweird.f32 %v607
      %vm629 = vweird.f32 %v623
      %vm630 = vmor %vm628, %vm629
      %v631 = vsel %vm630, %v623, %v627
      %v632 = vand.u32 2147483647, %v607
      %vm633 = vcmp.eq.f32.partialorder %v632, 8.507059e+37
      %v634 = vand.u32 %v607, 2147483648
      %v635 = vor.u32 1.1754944e-38, %v634
      %v636 = vsel %vm633, %v635, %v631
      %v637 = vmul.f32 1.0, %v636
      %v638 = vrcp.pop %v608
      %v639 = vmul.f32 %v608, %v638
      %v640 = vsub.f32 1.0, %v639
      %v641 = vmul.f32 %v638, %v640
      %v642 = vadd.f32 %v638, %v641
      %vm643 = vweird.f32 %v608
      %vm644 = vweird.f32 %v638
      %vm645 = vmor %vm643, %vm644
      %v646 = vsel %vm645, %v638, %v642
      %v647 = vand.u32 2147483647, %v608
      %vm648 = vcmp.eq.f32.partialorder %v647, 8.507059e+37
      %v649 = vand.u32 %v608, 2147483648
      %v650 = vor.u32 1.1754944e-38, %v649
      %v651 = vsel %vm648, %v650, %v646
      %v652 = vmul.f32 1.0, %v651
      %v653 = vrcp.pop %v609
      %v654 = vmul.f32 %v609, %v653
      %v655 = vsub.f32 1.0, %v654
      %v656 = vmul.f32 %v653, %v655
      %v657 = vadd.f32 %v653, %v656
      %vm658 = vweird.f32 %v609
      %vm659 = vweird.f32 %v653
      %vm660 = vmor %vm658, %vm659
      %v661 = vsel %vm660, %v653, %v657
      %v662 = vand.u32 2147483647, %v609
      %vm663 = vcmp.eq.f32.partialorder %v662, 8.507059e+37
      %v664 = vand.u32 %v609, 2147483648
      %v665 = vor.u32 1.1754944e-38, %v664
      %v666 = vsel %vm663, %v665, %v661
      %v667 = vmul.f32 1.0, %v666
      %v668 = vrcp.pop %v610
      %v669 = vmul.f32 %v610, %v668
      %v670 = vsub.f32 1.0, %v669
      %v671 = vmul.f32 %v668, %v670
      %v672 = vadd.f32 %v668, %v671
      %vm673 = vweird.f32 %v610
      %vm674 = vweird.f32 %v668
      %vm675 = vmor %vm673, %vm674
      %v676 = vsel %vm675, %v668, %v672
      %v677 = vand.u32 2147483647, %v610
      %vm678 = vcmp.eq.f32.partialorder %v677, 8.507059e+37
      %v679 = vand.u32 %v610, 2147483648
      %v680 = vor.u32 1.1754944e-38, %v679
      %v681 = vsel %vm678, %v680, %v676
      %v682 = vmul.f32 1.0, %v681
      %v683 = vrcp.pop %v611
      %v684 = vmul.f32 %v611, %v683
      %v685 = vsub.f32 1.0, %v684
      %v686 = vmul.f32 %v683, %v685
      %v687 = vadd.f32 %v683, %v686
      %vm688 = vweird.f32 %v611
      %vm689 = vweird.f32 %v683
      %vm690 = vmor %vm688, %vm689
      %v691 = vsel %vm690, %v683, %v687
      %v692 = vand.u32 2147483647, %v611
      %vm693 = vcmp.eq.f32.partialorder %v692, 8.507059e+37
      %v694 = vand.u32 %v611, 2147483648
      %v695 = vor.u32 1.1754944e-38, %v694
      %v696 = vsel %vm693, %v695, %v691
      %v697 = vmul.f32 1.0, %v696
      %v698 = vrcp.pop %v612
      %v699 = vmul.f32 %v612, %v698
      %v700 = vsub.f32 1.0, %v699
      %v701 = vmul.f32 %v698, %v700
      %v702 = vadd.f32 %v698, %v701
      %vm703 = vweird.f32 %v612
      %vm704 = vweird.f32 %v698
      %vm705 = vmor %vm703, %vm704
      %v706 = vsel %vm705, %v698, %v702
      %v707 = vand.u32 2147483647, %v612
      %vm708 = vcmp.eq.f32.partialorder %v707, 8.507059e+37
      %v709 = vand.u32 %v612, 2147483648
      %v710 = vor.u32 1.1754944e-38, %v709
      %v711 = vsel %vm708, %v710, %v706
      %v712 = vmul.f32 1.0, %v711
      %v713 = vrcp.pop %v613
      %v714 = vmul.f32 %v613, %v713
      %v715 = vsub.f32 1.0, %v714
      %v716 = vmul.f32 %v713, %v715
      %v717 = vadd.f32 %v713, %v716
      %vm718 = vweird.f32 %v613
      %vm719 = vweird.f32 %v713
      %vm720 = vmor %vm718, %vm719
      %v721 = vsel %vm720, %v713, %v717
      %v722 = vand.u32 2147483647, %v613
      %vm723 = vcmp.eq.f32.partialorder %v722, 8.507059e+37
      %v724 = vand.u32 %v613, 2147483648
      %v725 = vor.u32 1.1754944e-38, %v724
      %v726 = vsel %vm723, %v725, %v721
      %v727 = vmul.f32 1.0, %v726
      %v728 = vrcp.pop %v614
      %v729 = vmul.f32 %v614, %v728
      %v730 = vsub.f32 1.0, %v729
      %v731 = vmul.f32 %v728, %v730
      %v732 = vadd.f32 %v728, %v731
      %vm733 = vweird.f32 %v614
      %vm734 = vweird.f32 %v728
      %vm735 = vmor %vm733, %vm734
      %v736 = vsel %vm735, %v728, %v732
      %v737 = vand.u32 2147483647, %v614
      %vm738 = vcmp.eq.f32.partialorder %v737, 8.507059e+37
      %v739 = vand.u32 %v614, 2147483648
      %v740 = vor.u32 1.1754944e-38, %v739
      %v741 = vsel %vm738, %v740, %v736
      %v742 = vmul.f32 1.0, %v741
      %v743 = vrcp.pop %v615
      %v744 = vmul.f32 %v615, %v743
      %v745 = vsub.f32 1.0, %v744
      %v746 = vmul.f32 %v743, %v745
      %v747 = vadd.f32 %v743, %v746
      %vm748 = vweird.f32 %v615
      %vm749 = vweird.f32 %v743
      %vm750 = vmor %vm748, %vm749
      %v751 = vsel %vm750, %v743, %v747
      %v752 = vand.u32 2147483647, %v615
      %vm753 = vcmp.eq.f32.partialorder %v752, 8.507059e+37
      %v754 = vand.u32 %v615, 2147483648
      %v755 = vor.u32 1.1754944e-38, %v754
      %v756 = vsel %vm753, %v755, %v751
      %v757 = vmul.f32 1.0, %v756
      %v758 = vrcp.pop %v616
      %v759 = vmul.f32 %v616, %v758
      %v760 = vsub.f32 1.0, %v759
      %v761 = vmul.f32 %v758, %v760
      %v762 = vadd.f32 %v758, %v761
      %vm763 = vweird.f32 %v616
      %vm764 = vweird.f32 %v758
      %vm765 = vmor %vm763, %vm764
      %v766 = vsel %vm765, %v758, %v762
      %v767 = vand.u32 2147483647, %v616
      %vm768 = vcmp.eq.f32.partialorder %v767, 8.507059e+37
      %v769 = vand.u32 %v616, 2147483648
      %v770 = vor.u32 1.1754944e-38, %v769
      %v771 = vsel %vm768, %v770, %v766
      %v772 = vmul.f32 1.0, %v771
      %v773 = vrcp.pop %v617
      %v774 = vmul.f32 %v617, %v773
      %v775 = vsub.f32 1.0, %v774
      %v776 = vmul.f32 %v773, %v775
      %v777 = vadd.f32 %v773, %v776
      %vm778 = vweird.f32 %v617
      %vm779 = vweird.f32 %v773
      %vm780 = vmor %vm778, %vm779
      %v781 = vsel %vm780, %v773, %v777
      %v782 = vand.u32 2147483647, %v617
      %vm783 = vcmp.eq.f32.partialorder %v782, 8.507059e+37
      %v784 = vand.u32 %v617, 2147483648
      %v785 = vor.u32 1.1754944e-38, %v784
      %v786 = vsel %vm783, %v785, %v781
      %v787 = vmul.f32 1.0, %v786
      %v788 = vrcp.pop %v618
      %v789 = vmul.f32 %v618, %v788
      %v790 = vsub.f32 1.0, %v789
      %v791 = vmul.f32 %v788, %v790
      %v792 = vadd.f32 %v788, %v791
      %vm793 = vweird.f32 %v618
      %vm794 = vweird.f32 %v788
      %vm795 = vmor %vm793, %vm794
      %v796 = vsel %vm795, %v788, %v792
      %v797 = vand.u32 2147483647, %v618
      %vm798 = vcmp.eq.f32.partialorder %v797, 8.507059e+37
      %v799 = vand.u32 %v618, 2147483648
      %v800 = vor.u32 1.1754944e-38, %v799
      %v801 = vsel %vm798, %v800, %v796
      %v802 = vmul.f32 1.0, %v801
      %v803 = vrcp.pop %v619
      %v804 = vmul.f32 %v619, %v803
      %v805 = vsub.f32 1.0, %v804
      %v806 = vmul.f32 %v803, %v805
      %v807 = vadd.f32 %v803, %v806
      %vm808 = vweird.f32 %v619
      %vm809 = vweird.f32 %v803
      %vm810 = vmor %vm808, %vm809
      %v811 = vsel %vm810, %v803, %v807
      %v812 = vand.u32 2147483647, %v619
      %vm813 = vcmp.eq.f32.partialorder %v812, 8.507059e+37
      %v814 = vand.u32 %v619, 2147483648
      %v815 = vor.u32 1.1754944e-38, %v814
      %v816 = vsel %vm813, %v815, %v811
      %v817 = vmul.f32 1.0, %v816
      %v818 = vrcp.pop %v620
      %v819 = vmul.f32 %v620, %v818
      %v820 = vsub.f32 1.0, %v819
      %v821 = vmul.f32 %v818, %v820
      %v822 = vadd.f32 %v818, %v821
      %vm823 = vweird.f32 %v620
      %vm824 = vweird.f32 %v818
      %vm825 = vmor %vm823, %vm824
      %v826 = vsel %vm825, %v818, %v822
      %v827 = vand.u32 2147483647, %v620
      %vm828 = vcmp.eq.f32.partialorder %v827, 8.507059e+37
      %v829 = vand.u32 %v620, 2147483648
      %v830 = vor.u32 1.1754944e-38, %v829
      %v831 = vsel %vm828, %v830, %v826
      %v832 = vmul.f32 1.0, %v831
      %v833 = vrcp.pop %v621
      %v834 = vmul.f32 %v621, %v833
      %v835 = vsub.f32 1.0, %v834
      %v836 = vmul.f32 %v833, %v835
      %v837 = vadd.f32 %v833, %v836
      %vm838 = vweird.f32 %v621
      %vm839 = vweird.f32 %v833
      %vm840 = vmor %vm838, %vm839
      %v841 = vsel %vm840, %v833, %v837
      %v842 = vand.u32 2147483647, %v621
      %vm843 = vcmp.eq.f32.partialorder %v842, 8.507059e+37
      %v844 = vand.u32 %v621, 2147483648
      %v845 = vor.u32 1.1754944e-38, %v844
      %v846 = vsel %vm843, %v845, %v841
      %v847 = vmul.f32 1.0, %v846
      %v848 = vrcp.pop %v622
      %v849 = vmul.f32 %v622, %v848
      %v850 = vsub.f32 1.0, %v849
      %v851 = vmul.f32 %v848, %v850
      %v852 = vadd.f32 %v848, %v851
      %vm853 = vweird.f32 %v622
      %vm854 = vweird.f32 %v848
      %vm855 = vmor %vm853, %vm854
      %v856 = vsel %vm855, %v848, %v852
      %v857 = vand.u32 2147483647, %v622
      %vm858 = vcmp.eq.f32.partialorder %v857, 8.507059e+37
      %v859 = vand.u32 %v622, 2147483648
      %v860 = vor.u32 1.1754944e-38, %v859
      %v861 = vsel %vm858, %v860, %v856
      %v862 = vmul.f32 1.0, %v861
      %v863 = vmul.f32 %v520, %v637
      %v864 = vmul.f32 %v522, %v652
      %v865 = vmul.f32 %v525, %v667
      %v866 = vmul.f32 %v527, %v682
      %v867 = vmul.f32 %v530, %v697
      %v868 = vmul.f32 %v532, %v712
      %v869 = vmul.f32 %v535, %v727
      %v870 = vmul.f32 %v537, %v742
      %v871 = vmul.f32 %v540, %v757
      %v872 = vmul.f32 %v542, %v772
      %v873 = vmul.f32 %v545, %v787
      %v874 = vmul.f32 %v547, %v802
      %v875 = vmul.f32 %v550, %v817
      %v876 = vmul.f32 %v552, %v832
      %v877 = vmul.f32 %v555, %v847
      %v878 = vmul.f32 %v557, %v862
      %v879 = vld [vmem:[%s414] sm:$0xff]
      %v880 = vld [vmem:[%s414 + $0x8] sm:$0xff]
      %v881 = vpack.c.bf16 %v880, %v879
      %v883 = vsel %vm481, %v881, 0
      %885 = vmatpush.bf16.msra.mxu0 0
      %886 = vmatpush.bf16.msra.mxu0 0
      %887 = vmatpush.bf16.msra.mxu0 0
      %888 = vmatpush.bf16.msra.mxu0 0
      %889 = vmatpush.bf16.msra.mxu0 0
      %890 = vmatpush.bf16.msra.mxu0 0
      %891 = vmatpush.bf16.msra.mxu0 0
      %892 = vmatpush.bf16.msra.mxu0 %v508
      %893 = vmatmul.bf16.gmra.mxu0 %v883
      %v894 = vpop.f32.mrf.mxu0
      %v895 = vadd.f32 %v479, %v894
      %v896 = vpop.f32.mrf.mxu0
      %v897 = vadd.f32 %v479, %v896
      %898 = vdwg.mxu0
      %v899 = vxor.u32 %v895, 2147483648
      %v900 = vxor.u32 %v897, 2147483648
      %v901 = vmul.f32 %v899, 1.442695
      %v902 = vpow.pop %v901
      %v903 = vmul.f32 %v900, 1.442695
      %v904 = vpow.pop %v903
      %v905 = vadd.f32 %v902, 1.0
      %v906 = vadd.f32 %v904, 1.0
      %v907 = vrcp.pop %v905
      %v908 = vmul.f32 %v905, %v907
      %v909 = vsub.f32 1.0, %v908
      %v910 = vmul.f32 %v907, %v909
      %v911 = vadd.f32 %v907, %v910
      %vm912 = vweird.f32 %v905
      %vm913 = vweird.f32 %v907
      %vm914 = vmor %vm912, %vm913
      %v915 = vsel %vm914, %v907, %v911
      %v916 = vand.u32 2147483647, %v905
      %vm917 = vcmp.eq.f32.partialorder %v916, 8.507059e+37
      %v918 = vand.u32 %v905, 2147483648
      %v919 = vor.u32 1.1754944e-38, %v918
      %v920 = vsel %vm917, %v919, %v915
      %v921 = vmul.f32 1.0, %v920
      %v922 = vrcp.pop %v906
      %v923 = vmul.f32 %v906, %v922
      %v924 = vsub.f32 1.0, %v923
      %v925 = vmul.f32 %v922, %v924
      %v926 = vadd.f32 %v922, %v925
      %vm927 = vweird.f32 %v906
      %vm928 = vweird.f32 %v922
      %vm929 = vmor %vm927, %vm928
      %v930 = vsel %vm929, %v922, %v926
      %v931 = vand.u32 2147483647, %v906
      %vm932 = vcmp.eq.f32.partialorder %v931, 8.507059e+37
      %v933 = vand.u32 %v906, 2147483648
      %v934 = vor.u32 1.1754944e-38, %v933
      %v935 = vsel %vm932, %v934, %v930
      %v936 = vmul.f32 1.0, %v935
      %v937 = vmul.f32 %v895, %v921
      %v938 = vmul.f32 %v897, %v936
      %s939 = scalar_select %p450, 1, 0
      %v940 = vstv %s939
      %vm941 = vcmp.eq.s32.totalorder %v940, 1
      %v942 = vsel %vm941, 0.0, %v937
      %v943 = vsel %vm941, 0.0, %v938
      %v944 = vld [vmem:[%s431] sm:$0xff]
      %v945 = vld [vmem:[%s431 + $0x8] sm:$0xff]
      %v946 = vpack.c.bf16 %v945, %v944
      %v948 = vsel %vm481, %v946, 0
      %950 = vmatpush.bf16.msra.mxu0 0
      %951 = vmatpush.bf16.msra.mxu0 0
      %952 = vmatpush.bf16.msra.mxu0 0
      %953 = vmatpush.bf16.msra.mxu0 0
      %954 = vmatpush.bf16.msra.mxu0 0
      %955 = vmatpush.bf16.msra.mxu0 0
      %956 = vmatpush.bf16.msra.mxu0 0
      %957 = vmatpush.bf16.msra.mxu0 %v508
      %958 = vmatmul.bf16.gmra.mxu0 %v948
      %v959 = vpop.f32.mrf.mxu0
      %v960 = vadd.f32 %v479, %v959
      %v961 = vpop.f32.mrf.mxu0
      %v962 = vadd.f32 %v479, %v961
      %963 = vdwg.mxu0
      %v964 = vxor.u32 %v960, 2147483648
      %v965 = vxor.u32 %v962, 2147483648
      %v966 = vmul.f32 %v964, 1.442695
      %v967 = vpow.pop %v966
      %v968 = vmul.f32 %v965, 1.442695
      %v969 = vpow.pop %v968
      %v970 = vadd.f32 %v967, 1.0
      %v971 = vadd.f32 %v969, 1.0
      %v972 = vrcp.pop %v970
      %v973 = vmul.f32 %v970, %v972
      %v974 = vsub.f32 1.0, %v973
      %v975 = vmul.f32 %v972, %v974
      %v976 = vadd.f32 %v972, %v975
      %vm977 = vweird.f32 %v970
      %vm978 = vweird.f32 %v972
      %vm979 = vmor %vm977, %vm978
      %v980 = vsel %vm979, %v972, %v976
      %v981 = vand.u32 2147483647, %v970
      %vm982 = vcmp.eq.f32.partialorder %v981, 8.507059e+37
      %v983 = vand.u32 %v970, 2147483648
      %v984 = vor.u32 1.1754944e-38, %v983
      %v985 = vsel %vm982, %v984, %v980
      %v986 = vmul.f32 1.0, %v985
      %v987 = vrcp.pop %v971
      %v988 = vmul.f32 %v971, %v987
      %v989 = vsub.f32 1.0, %v988
      %v990 = vmul.f32 %v987, %v989
      %v991 = vadd.f32 %v987, %v990
      %vm992 = vweird.f32 %v971
      %vm993 = vweird.f32 %v987
      %vm994 = vmor %vm992, %vm993
      %v995 = vsel %vm994, %v987, %v991
      %v996 = vand.u32 2147483647, %v971
      %vm997 = vcmp.eq.f32.partialorder %v996, 8.507059e+37
      %v998 = vand.u32 %v971, 2147483648
      %v999 = vor.u32 1.1754944e-38, %v998
      %v1000 = vsel %vm997, %v999, %v995
      %v1001 = vmul.f32 1.0, %v1000
      %v1002 = vmul.f32 %v960, %v986
      %v1003 = vmul.f32 %v962, %v1001
      %s1004 = scalar_select %p451, 1, 0
      %v1005 = vstv %s1004
      %vm1006 = vcmp.eq.s32.totalorder %v1005, 1
      %v1007 = vsel %vm1006, 0.0, %v1002
      %v1008 = vsel %vm1006, 0.0, %v1003
      %v1009 = vpack.c.bf16 %v942, %v942
      %v1010 = vpack.c.bf16 %v943, %v943
      %vm1011 = vcmask 11264
      %1012 = vst.msk [vmem:[#allocation2 + $0x4] sm:$0xf] %vm1011, %v1009
      %1013 = vst.msk [vmem:[#allocation2 + $0x8] sm:$0xf] %vm1011, %v1010
      %v1014 = vpack.c.bf16 %v863, %v863
      %v1015 = vpack.c.bf16 %v864, %v864
      %v1016 = vpack.c.bf16 %v865, %v865
      %v1017 = vpack.c.bf16 %v866, %v866
      %v1018 = vpack.c.bf16 %v867, %v867
      %v1019 = vpack.c.bf16 %v868, %v868
      %v1020 = vpack.c.bf16 %v869, %v869
      %v1021 = vpack.c.bf16 %v870, %v870
      %v1022 = vpack.c.bf16 %v871, %v871
      %v1023 = vpack.c.bf16 %v872, %v872
      %v1024 = vpack.c.bf16 %v873, %v873
      %v1025 = vpack.c.bf16 %v874, %v874
      %v1026 = vpack.c.bf16 %v875, %v875
      %v1027 = vpack.c.bf16 %v876, %v876
      %v1028 = vpack.c.bf16 %v877, %v877
      %v1029 = vpack.c.bf16 %v878, %v878
      %1030 = vst.msk [vmem:[#allocation2 + $0xc] sm:$0xf] %vm1011, %v1014
      %1031 = vst.msk [vmem:[#allocation2 + $0x10] sm:$0xf] %vm1011, %v1015
      %1032 = vst.msk [vmem:[#allocation2 + $0x14] sm:$0xf] %vm1011, %v1016
      %1033 = vst.msk [vmem:[#allocation2 + $0x18] sm:$0xf] %vm1011, %v1017
      %1034 = vst.msk [vmem:[#allocation2 + $0x1c] sm:$0xf] %vm1011, %v1018
      %1035 = vst.msk [vmem:[#allocation2 + $0x20] sm:$0xf] %vm1011, %v1019
      %1036 = vst.msk [vmem:[#allocation2 + $0x24] sm:$0xf] %vm1011, %v1020
      %1037 = vst.msk [vmem:[#allocation2 + $0x28] sm:$0xf] %vm1011, %v1021
      %1038 = vst.msk [vmem:[#allocation2 + $0x2c] sm:$0xf] %vm1011, %v1022
      %1039 = vst.msk [vmem:[#allocation2 + $0x30] sm:$0xf] %vm1011, %v1023
      %1040 = vst.msk [vmem:[#allocation2 + $0x34] sm:$0xf] %vm1011, %v1024
      %1041 = vst.msk [vmem:[#allocation2 + $0x38] sm:$0xf] %vm1011, %v1025
      %1042 = vst.msk [vmem:[#allocation2 + $0x3c] sm:$0xf] %vm1011, %v1026
      %1043 = vst.msk [vmem:[#allocation2 + $0x40] sm:$0xf] %vm1011, %v1027
      %1044 = vst.msk [vmem:[#allocation2 + $0x44] sm:$0xf] %vm1011, %v1028
      %1045 = vst.msk [vmem:[#allocation2 + $0x48] sm:$0xf] %vm1011, %v1029
      %v1046 = vpack.c.bf16 %v1007, %v1007
      %v1047 = vpack.c.bf16 %v1008, %v1008
      %1048 = vst.msk [vmem:[#allocation2 + $0x4c] sm:$0xf] %vm1011, %v1046
      %1049 = vst.msk [vmem:[#allocation2 + $0x50] sm:$0xf] %vm1011, %v1047
      %v1050 = vlaneseq
      %v1051 = vshrl.u32 %v1050, 7
      %v1052 = vadd.s32 %v1051, 8
      %v1053 = vadd.s32 %v1051, 16
      %v1054 = vadd.s32 %v1051, 24
      %v1055 = vadd.s32 %v1051, 32
      %v1056 = vadd.s32 %v1051, 40
      %v1057 = vadd.s32 %v1051, 48
      %v1058 = vadd.s32 %v1051, 56
      %v1059 = vadd.s32 %v1051, 64
      %v1060 = vadd.s32 %v1051, 72
      %v1061 = vadd.s32 %v1051, 80
      %v1062 = vadd.s32 %v1051, 88
      %v1063 = vadd.s32 %v1051, 96
      %v1064 = vadd.s32 %v1051, 104
      %v1065 = vadd.s32 %v1051, 112
      %v1066 = vadd.s32 %v1051, 120
      %vm1067 = vcmp.lt.s32.totalorder %v1051, 0
      %v1068 = vsub.s32 0, %v1051
      %v1069 = vsel %vm1067, %v1068, %v1051
      %v1070 = vshrl.u32 %v1069, 4
      %v1071 = vand.u32 %v1069, 15
      %v1072 = vsub.s32 0, %v1071
      %v1073 = vsel %vm1067, %v1072, %v1071
      %vm1074 = vcmp.lt.s32.totalorder %v1052, 0
      %v1075 = vsub.s32 0, %v1052
      %v1076 = vsel %vm1074, %v1075, %v1052
      %v1077 = vshrl.u32 %v1076, 4
      %v1078 = vand.u32 %v1076, 15
      %v1079 = vsub.s32 0, %v1078
      %v1080 = vsel %vm1074, %v1079, %v1078
      %vm1081 = vcmp.lt.s32.totalorder %v1053, 0
      %v1082 = vsub.s32 0, %v1053
      %v1083 = vsel %vm1081, %v1082, %v1053
      %v1084 = vshrl.u32 %v1083, 4
      %v1085 = vand.u32 %v1083, 15
      %v1086 = vsub.s32 0, %v1085
      %v1087 = vsel %vm1081, %v1086, %v1085
      %vm1088 = vcmp.lt.s32.totalorder %v1054, 0
      %v1089 = vsub.s32 0, %v1054
      %v1090 = vsel %vm1088, %v1089, %v1054
      %v1091 = vshrl.u32 %v1090, 4
      %v1092 = vand.u32 %v1090, 15
      %v1093 = vsub.s32 0, %v1092
      %v1094 = vsel %vm1088, %v1093, %v1092
      %vm1095 = vcmp.lt.s32.totalorder %v1055, 0
      %v1096 = vsub.s32 0, %v1055
      %v1097 = vsel %vm1095, %v1096, %v1055
      %v1098 = vshrl.u32 %v1097, 4
      %v1099 = vand.u32 %v1097, 15
      %v1100 = vsub.s32 0, %v1099
      %v1101 = vsel %vm1095, %v1100, %v1099
      %vm1102 = vcmp.lt.s32.totalorder %v1056, 0
      %v1103 = vsub.s32 0, %v1056
      %v1104 = vsel %vm1102, %v1103, %v1056
      %v1105 = vshrl.u32 %v1104, 4
      %v1106 = vand.u32 %v1104, 15
      %v1107 = vsub.s32 0, %v1106
      %v1108 = vsel %vm1102, %v1107, %v1106
      %vm1109 = vcmp.lt.s32.totalorder %v1057, 0
      %v1110 = vsub.s32 0, %v1057
      %v1111 = vsel %vm1109, %v1110, %v1057
      %v1112 = vshrl.u32 %v1111, 4
      %v1113 = vand.u32 %v1111, 15
      %v1114 = vsub.s32 0, %v1113
      %v1115 = vsel %vm1109, %v1114, %v1113
      %vm1116 = vcmp.lt.s32.totalorder %v1058, 0
      %v1117 = vsub.s32 0, %v1058
      %v1118 = vsel %vm1116, %v1117, %v1058
      %v1119 = vshrl.u32 %v1118, 4
      %v1120 = vand.u32 %v1118, 15
      %v1121 = vsub.s32 0, %v1120
      %v1122 = vsel %vm1116, %v1121, %v1120
      %vm1123 = vcmp.lt.s32.totalorder %v1059, 0
      %v1124 = vsub.s32 0, %v1059
      %v1125 = vsel %vm1123, %v1124, %v1059
      %v1126 = vshrl.u32 %v1125, 4
      %v1127 = vand.u32 %v1125, 15
      %v1128 = vsub.s32 0, %v1127
      %v1129 = vsel %vm1123, %v1128, %v1127
      %vm1130 = vcmp.lt.s32.totalorder %v1060, 0
      %v1131 = vsub.s32 0, %v1060
      %v1132 = vsel %vm1130, %v1131, %v1060
      %v1133 = vshrl.u32 %v1132, 4
      %v1134 = vand.u32 %v1132, 15
      %v1135 = vsub.s32 0, %v1134
      %v1136 = vsel %vm1130, %v1135, %v1134
      %vm1137 = vcmp.lt.s32.totalorder %v1061, 0
      %v1138 = vsub.s32 0, %v1061
      %v1139 = vsel %vm1137, %v1138, %v1061
      %v1140 = vshrl.u32 %v1139, 4
      %v1141 = vand.u32 %v1139, 15
      %v1142 = vsub.s32 0, %v1141
      %v1143 = vsel %vm1137, %v1142, %v1141
      %vm1144 = vcmp.lt.s32.totalorder %v1062, 0
      %v1145 = vsub.s32 0, %v1062
      %v1146 = vsel %vm1144, %v1145, %v1062
      %v1147 = vshrl.u32 %v1146, 4
      %v1148 = vand.u32 %v1146, 15
      %v1149 = vsub.s32 0, %v1148
      %v1150 = vsel %vm1144, %v1149, %v1148
      %vm1151 = vcmp.lt.s32.totalorder %v1063, 0
      %v1152 = vsub.s32 0, %v1063
      %v1153 = vsel %vm1151, %v1152, %v1063
      %v1154 = vshrl.u32 %v1153, 4
      %v1155 = vand.u32 %v1153, 15
      %v1156 = vsub.s32 0, %v1155
      %v1157 = vsel %vm1151, %v1156, %v1155
      %vm1158 = vcmp.lt.s32.totalorder %v1064, 0
      %v1159 = vsub.s32 0, %v1064
      %v1160 = vsel %vm1158, %v1159, %v1064
      %v1161 = vshrl.u32 %v1160, 4
      %v1162 = vand.u32 %v1160, 15
      %v1163 = vsub.s32 0, %v1162
      %v1164 = vsel %vm1158, %v1163, %v1162
      %vm1165 = vcmp.lt.s32.totalorder %v1065, 0
      %v1166 = vsub.s32 0, %v1065
      %v1167 = vsel %vm1165, %v1166, %v1065
      %v1168 = vshrl.u32 %v1167, 4
      %v1169 = vand.u32 %v1167, 15
      %v1170 = vsub.s32 0, %v1169
      %v1171 = vsel %vm1165, %v1170, %v1169
      %vm1172 = vcmp.lt.s32.totalorder %v1066, 0
      %v1173 = vsub.s32 0, %v1066
      %v1174 = vsel %vm1172, %v1173, %v1066
      %v1175 = vshrl.u32 %v1174, 4
      %v1176 = vand.u32 %v1174, 15
      %v1177 = vsub.s32 0, %v1176
      %v1178 = vsel %vm1172, %v1177, %v1176
      %vm1179 = vcmp.ne.s32.totalorder %v1073, 0
      %vm1180 = vcmp.ne.s32.totalorder %v1080, 0
      %vm1181 = vcmp.ne.s32.totalorder %v1087, 0
      %vm1182 = vcmp.ne.s32.totalorder %v1094, 0
      %vm1183 = vcmp.ne.s32.totalorder %v1101, 0
      %vm1184 = vcmp.ne.s32.totalorder %v1108, 0
      %vm1185 = vcmp.ne.s32.totalorder %v1115, 0
      %vm1186 = vcmp.ne.s32.totalorder %v1122, 0
      %vm1187 = vcmp.ne.s32.totalorder %v1129, 0
      %vm1188 = vcmp.ne.s32.totalorder %v1136, 0
      %vm1189 = vcmp.ne.s32.totalorder %v1143, 0
      %vm1190 = vcmp.ne.s32.totalorder %v1150, 0
      %vm1191 = vcmp.ne.s32.totalorder %v1157, 0
      %vm1192 = vcmp.ne.s32.totalorder %v1164, 0
      %vm1193 = vcmp.ne.s32.totalorder %v1171, 0
      %vm1194 = vcmp.ne.s32.totalorder %v1178, 0
      %vm1195 = vcmp.lt.s32.totalorder %v1073, 0
      %vm1196 = vcmp.lt.s32.totalorder %v1080, 0
      %vm1197 = vcmp.lt.s32.totalorder %v1087, 0
      %vm1198 = vcmp.lt.s32.totalorder %v1094, 0
      %vm1199 = vcmp.lt.s32.totalorder %v1101, 0
      %vm1200 = vcmp.lt.s32.totalorder %v1108, 0
      %vm1201 = vcmp.lt.s32.totalorder %v1115, 0
      %vm1202 = vcmp.lt.s32.totalorder %v1122, 0
      %vm1203 = vcmp.lt.s32.totalorder %v1129, 0
      %vm1204 = vcmp.lt.s32.totalorder %v1136, 0
      %vm1205 = vcmp.lt.s32.totalorder %v1143, 0
      %vm1206 = vcmp.lt.s32.totalorder %v1150, 0
      %vm1207 = vcmp.lt.s32.totalorder %v1157, 0
      %vm1208 = vcmp.lt.s32.totalorder %v1164, 0
      %vm1209 = vcmp.lt.s32.totalorder %v1171, 0
      %vm1210 = vcmp.lt.s32.totalorder %v1178, 0
      %vm1211 = vmand %vm1195, %vm1179
      %vm1212 = vmand %vm1196, %vm1180
      %vm1213 = vmand %vm1197, %vm1181
      %vm1214 = vmand %vm1198, %vm1182
      %vm1215 = vmand %vm1199, %vm1183
      %vm1216 = vmand %vm1200, %vm1184
      %vm1217 = vmand %vm1201, %vm1185
      %vm1218 = vmand %vm1202, %vm1186
      %vm1219 = vmand %vm1203, %vm1187
      %vm1220 = vmand %vm1204, %vm1188
      %vm1221 = vmand %vm1205, %vm1189
      %vm1222 = vmand %vm1206, %vm1190
      %vm1223 = vmand %vm1207, %vm1191
      %vm1224 = vmand %vm1208, %vm1192
      %vm1225 = vmand %vm1209, %vm1193
      %vm1226 = vmand %vm1210, %vm1194
      %v1227 = vadd.s32 %v1073, 16
      %v1228 = vadd.s32 %v1080, 16
      %v1229 = vadd.s32 %v1087, 16
      %v1230 = vadd.s32 %v1094, 16
      %v1231 = vadd.s32 %v1101, 16
      %v1232 = vadd.s32 %v1108, 16
      %v1233 = vadd.s32 %v1115, 16
      %v1234 = vadd.s32 %v1122, 16
      %v1235 = vadd.s32 %v1129, 16
      %v1236 = vadd.s32 %v1136, 16
      %v1237 = vadd.s32 %v1143, 16
      %v1238 = vadd.s32 %v1150, 16
      %v1239 = vadd.s32 %v1157, 16
      %v1240 = vadd.s32 %v1164, 16
      %v1241 = vadd.s32 %v1171, 16
      %v1242 = vadd.s32 %v1178, 16
      %v1243 = vsel %vm1211, %v1227, %v1073
      %v1244 = vsel %vm1212, %v1228, %v1080
      %v1245 = vsel %vm1213, %v1229, %v1087
      %v1246 = vsel %vm1214, %v1230, %v1094
      %v1247 = vsel %vm1215, %v1231, %v1101
      %v1248 = vsel %vm1216, %v1232, %v1108
      %v1249 = vsel %vm1217, %v1233, %v1115
      %v1250 = vsel %vm1218, %v1234, %v1122
      %v1251 = vsel %vm1219, %v1235, %v1129
      %v1252 = vsel %vm1220, %v1236, %v1136
      %v1253 = vsel %vm1221, %v1237, %v1143
      %v1254 = vsel %vm1222, %v1238, %v1150
      %v1255 = vsel %vm1223, %v1239, %v1157
      %v1256 = vsel %vm1224, %v1240, %v1164
      %v1257 = vsel %vm1225, %v1241, %v1171
      %v1258 = vsel %vm1226, %v1242, %v1178
      %vm1259 = vcmp.ne.s32.totalorder %v1243, 0
      %vm1260 = vcmp.ne.s32.totalorder %v1244, 0
      %vm1261 = vcmp.ne.s32.totalorder %v1245, 0
      %vm1262 = vcmp.ne.s32.totalorder %v1246, 0
      %vm1263 = vcmp.ne.s32.totalorder %v1247, 0
      %vm1264 = vcmp.ne.s32.totalorder %v1248, 0
      %vm1265 = vcmp.ne.s32.totalorder %v1249, 0
      %vm1266 = vcmp.ne.s32.totalorder %v1250, 0
      %vm1267 = vcmp.ne.s32.totalorder %v1251, 0
      %vm1268 = vcmp.ne.s32.totalorder %v1252, 0
      %vm1269 = vcmp.ne.s32.totalorder %v1253, 0
      %vm1270 = vcmp.ne.s32.totalorder %v1254, 0
      %vm1271 = vcmp.ne.s32.totalorder %v1255, 0
      %vm1272 = vcmp.ne.s32.totalorder %v1256, 0
      %vm1273 = vcmp.ne.s32.totalorder %v1257, 0
      %vm1274 = vcmp.ne.s32.totalorder %v1258, 0
      %vm1275 = vcmp.ne.s32.totalorder %v1243, 15
      %vm1276 = vcmp.ne.s32.totalorder %v1244, 15
      %vm1277 = vcmp.ne.s32.totalorder %v1245, 15
      %vm1278 = vcmp.ne.s32.totalorder %v1246, 15
      %vm1279 = vcmp.ne.s32.totalorder %v1247, 15
      %vm1280 = vcmp.ne.s32.totalorder %v1248, 15
      %vm1281 = vcmp.ne.s32.totalorder %v1249, 15
      %vm1282 = vcmp.ne.s32.totalorder %v1250, 15
      %vm1283 = vcmp.ne.s32.totalorder %v1251, 15
      %vm1284 = vcmp.ne.s32.totalorder %v1252, 15
      %vm1285 = vcmp.ne.s32.totalorder %v1253, 15
      %vm1286 = vcmp.ne.s32.totalorder %v1254, 15
      %vm1287 = vcmp.ne.s32.totalorder %v1255, 15
      %vm1288 = vcmp.ne.s32.totalorder %v1256, 15
      %vm1289 = vcmp.ne.s32.totalorder %v1257, 15
      %vm1290 = vcmp.ne.s32.totalorder %v1258, 15
      %v1291 = vld [vmem:[#allocation2] sm:$0x8]
      %v1292 = vld [vmem:[#allocation2 + $0x4] sm:$0xf]
      %v1293 = vld [vmem:[#allocation2 + $0x8] sm:$0xf]
      %v1294 = vld [vmem:[#allocation2 + $0xc] sm:$0xf]
      %v1295 = vld [vmem:[#allocation2 + $0x10] sm:$0xf]
      %v1296 = vld [vmem:[#allocation2 + $0x14] sm:$0xf]
      %v1297 = vld [vmem:[#allocation2 + $0x18] sm:$0xf]
      %v1298 = vld [vmem:[#allocation2 + $0x1c] sm:$0xf]
      %v1299 = vld [vmem:[#allocation2 + $0x20] sm:$0xf]
      %v1300 = vld [vmem:[#allocation2 + $0x24] sm:$0xf]
      %v1301 = vld [vmem:[#allocation2 + $0x28] sm:$0xf]
      %v1302 = vld [vmem:[#allocation2 + $0x2c] sm:$0xf]
      %v1303 = vld [vmem:[#allocation2 + $0x30] sm:$0xf]
      %v1304 = vld [vmem:[#allocation2 + $0x34] sm:$0xf]
      %v1305 = vld [vmem:[#allocation2 + $0x38] sm:$0xf]
      %v1306 = vld [vmem:[#allocation2 + $0x3c] sm:$0xf]
      %v1307 = vld [vmem:[#allocation2 + $0x40] sm:$0xf]
      %v1308 = vsel %vm1259, 1, 0
      %v1309 = vsel %vm1260, 1, 0
      %v1310 = vsel %vm1261, 1, 0
      %v1311 = vsel %vm1262, 1, 0
      %v1312 = vsel %vm1263, 1, 0
      %v1313 = vsel %vm1264, 1, 0
      %v1314 = vsel %vm1265, 1, 0
      %v1315 = vsel %vm1266, 1, 0
      %v1316 = vsel %vm1267, 1, 0
      %v1317 = vsel %vm1268, 1, 0
      %v1318 = vsel %vm1269, 1, 0
      %v1319 = vsel %vm1270, 1, 0
      %v1320 = vsel %vm1271, 1, 0
      %v1321 = vsel %vm1272, 1, 0
      %v1322 = vsel %vm1273, 1, 0
      %v1323 = vsel %vm1274, 1, 0
      %vm1324 = vcmp.eq.s32.totalorder %v1308, 1
      %vm1325 = vcmp.eq.s32.totalorder %v1309, 1
      %vm1326 = vcmp.eq.s32.totalorder %v1310, 1
      %vm1327 = vcmp.eq.s32.totalorder %v1311, 1
      %vm1328 = vcmp.eq.s32.totalorder %v1312, 1
      %vm1329 = vcmp.eq.s32.totalorder %v1313, 1
      %vm1330 = vcmp.eq.s32.totalorder %v1314, 1
      %vm1331 = vcmp.eq.s32.totalorder %v1315, 1
      %vm1332 = vcmp.eq.s32.totalorder %v1316, 1
      %vm1333 = vcmp.eq.s32.totalorder %v1317, 1
      %vm1334 = vcmp.eq.s32.totalorder %v1318, 1
      %vm1335 = vcmp.eq.s32.totalorder %v1319, 1
      %vm1336 = vcmp.eq.s32.totalorder %v1320, 1
      %vm1337 = vcmp.eq.s32.totalorder %v1321, 1
      %vm1338 = vcmp.eq.s32.totalorder %v1322, 1
      %vm1339 = vcmp.eq.s32.totalorder %v1323, 1
      %vm1340 = vmpackc.low %vm1324, %vm1324
      %vm1341 = vmpackc.low %vm1325, %vm1325
      %vm1342 = vmpackc.low %vm1326, %vm1326
      %vm1343 = vmpackc.low %vm1327, %vm1327
      %vm1344 = vmpackc.low %vm1328, %vm1328
      %vm1345 = vmpackc.low %vm1329, %vm1329
      %vm1346 = vmpackc.low %vm1330, %vm1330
      %vm1347 = vmpackc.low %vm1331, %vm1331
      %vm1348 = vmpackc.low %vm1332, %vm1332
      %vm1349 = vmpackc.low %vm1333, %vm1333
      %vm1350 = vmpackc.low %vm1334, %vm1334
      %vm1351 = vmpackc.low %vm1335, %vm1335
      %vm1352 = vmpackc.low %vm1336, %vm1336
      %vm1353 = vmpackc.low %vm1337, %vm1337
      %vm1354 = vmpackc.low %vm1338, %vm1338
      %vm1355 = vmpackc.low %vm1339, %vm1339
      %v1356 = vsel %vm1340, 65537, 0
      %v1357 = vsel %vm1341, 65537, 0
      %v1358 = vsel %vm1342, 65537, 0
      %v1359 = vsel %vm1343, 65537, 0
      %v1360 = vsel %vm1344, 65537, 0
      %v1361 = vsel %vm1345, 65537, 0
      %v1362 = vsel %vm1346, 65537, 0
      %v1363 = vsel %vm1347, 65537, 0
      %v1364 = vsel %vm1348, 65537, 0
      %v1365 = vsel %vm1349, 65537, 0
      %v1366 = vsel %vm1350, 65537, 0
      %v1367 = vsel %vm1351, 65537, 0
      %v1368 = vsel %vm1352, 65537, 0
      %v1369 = vsel %vm1353, 65537, 0
      %v1370 = vsel %vm1354, 65537, 0
      %v1371 = vsel %vm1355, 65537, 0
      %vm1372 = vsmask.f32 3328
      %vm1373 = vsmask.f32 7440
      %vm1374 = vmor %vm1372, %vm1373
      %v1376 = vshll.u32 %v1356, 16
      %v1378 = vrot.slane %v1376, 5
      %v1379 = vshrl.u32 %v1356, 16
      %v1381 = vrot.slane %v1379, 4
      %v1382 = vor.u32 %v1381, %v1378
      %v1383 = vrot.slane %v1382, 4
      %v1385 = vshll.u32 %v1357, 16
      %v1387 = vrot.slane %v1385, 5
      %v1388 = vsel %vm1374, %v1383, %v1387
      %v1389 = vshrl.u32 %v1357, 16
      %v1391 = vrot.slane %v1389, 4
      %v1392 = vor.u32 %v1391, %v1387
      %v1393 = vrot.slane %v1392, 4
      %v1395 = vshll.u32 %v1358, 16
      %v1397 = vrot.slane %v1395, 5
      %v1398 = vsel %vm1374, %v1393, %v1397
      %v1399 = vshrl.u32 %v1358, 16
      %v1401 = vrot.slane %v1399, 4
      %v1402 = vor.u32 %v1401, %v1397
      %v1403 = vrot.slane %v1402, 4
      %v1405 = vshll.u32 %v1359, 16
      %v1407 = vrot.slane %v1405, 5
      %v1408 = vsel %vm1374, %v1403, %v1407
      %v1409 = vshrl.u32 %v1359, 16
      %v1411 = vrot.slane %v1409, 4
      %v1412 = vor.u32 %v1411, %v1407
      %v1413 = vrot.slane %v1412, 4
      %v1415 = vshll.u32 %v1360, 16
      %v1417 = vrot.slane %v1415, 5
      %v1418 = vsel %vm1374, %v1413, %v1417
      %v1419 = vshrl.u32 %v1360, 16
      %v1421 = vrot.slane %v1419, 4
      %v1422 = vor.u32 %v1421, %v1417
      %v1423 = vrot.slane %v1422, 4
      %v1425 = vshll.u32 %v1361, 16
      %v1427 = vrot.slane %v1425, 5
      %v1428 = vsel %vm1374, %v1423, %v1427
      %v1429 = vshrl.u32 %v1361, 16
      %v1431 = vrot.slane %v1429, 4
      %v1432 = vor.u32 %v1431, %v1427
      %v1433 = vrot.slane %v1432, 4
      %v1435 = vshll.u32 %v1362, 16
      %v1437 = vrot.slane %v1435, 5
      %v1438 = vsel %vm1374, %v1433, %v1437
      %v1439 = vshrl.u32 %v1362, 16
      %v1441 = vrot.slane %v1439, 4
      %v1442 = vor.u32 %v1441, %v1437
      %v1443 = vrot.slane %v1442, 4
      %v1445 = vshll.u32 %v1363, 16
      %v1447 = vrot.slane %v1445, 5
      %v1448 = vsel %vm1374, %v1443, %v1447
      %v1449 = vshrl.u32 %v1363, 16
      %v1451 = vrot.slane %v1449, 4
      %v1452 = vor.u32 %v1451, %v1447
      %v1453 = vrot.slane %v1452, 4
      %v1455 = vshll.u32 %v1364, 16
      %v1457 = vrot.slane %v1455, 5
      %v1458 = vsel %vm1374, %v1453, %v1457
      %v1459 = vshrl.u32 %v1364, 16
      %v1461 = vrot.slane %v1459, 4
      %v1462 = vor.u32 %v1461, %v1457
      %v1463 = vrot.slane %v1462, 4
      %v1465 = vshll.u32 %v1365, 16
      %v1467 = vrot.slane %v1465, 5
      %v1468 = vsel %vm1374, %v1463, %v1467
      %v1469 = vshrl.u32 %v1365, 16
      %v1471 = vrot.slane %v1469, 4
      %v1472 = vor.u32 %v1471, %v1467
      %v1473 = vrot.slane %v1472, 4
      %v1475 = vshll.u32 %v1366, 16
      %v1477 = vrot.slane %v1475, 5
      %v1478 = vsel %vm1374, %v1473, %v1477
      %v1479 = vshrl.u32 %v1366, 16
      %v1481 = vrot.slane %v1479, 4
      %v1482 = vor.u32 %v1481, %v1477
      %v1483 = vrot.slane %v1482, 4
      %v1485 = vshll.u32 %v1367, 16
      %v1487 = vrot.slane %v1485, 5
      %v1488 = vsel %vm1374, %v1483, %v1487
      %v1489 = vshrl.u32 %v1367, 16
      %v1491 = vrot.slane %v1489, 4
      %v1492 = vor.u32 %v1491, %v1487
      %v1493 = vrot.slane %v1492, 4
      %v1495 = vshll.u32 %v1368, 16
      %v1497 = vrot.slane %v1495, 5
      %v1498 = vsel %vm1374, %v1493, %v1497
      %v1499 = vshrl.u32 %v1368, 16
      %v1501 = vrot.slane %v1499, 4
      %v1502 = vor.u32 %v1501, %v1497
      %v1503 = vrot.slane %v1502, 4
      %v1505 = vshll.u32 %v1369, 16
      %v1507 = vrot.slane %v1505, 5
      %v1508 = vsel %vm1374, %v1503, %v1507
      %v1509 = vshrl.u32 %v1369, 16
      %v1511 = vrot.slane %v1509, 4
      %v1512 = vor.u32 %v1511, %v1507
      %v1513 = vrot.slane %v1512, 4
      %v1515 = vshll.u32 %v1370, 16
      %v1517 = vrot.slane %v1515, 5
      %v1518 = vsel %vm1374, %v1513, %v1517
      %v1519 = vshrl.u32 %v1370, 16
      %v1521 = vrot.slane %v1519, 4
      %v1522 = vor.u32 %v1521, %v1517
      %v1523 = vrot.slane %v1522, 4
      %v1525 = vshll.u32 %v1371, 16
      %v1527 = vrot.slane %v1525, 5
      %v1528 = vsel %vm1374, %v1523, %v1527
      %v1529 = vshrl.u32 %v1371, 16
      %v1531 = vrot.slane %v1529, 4
      %v1532 = vor.u32 %v1531, %v1527
      %v1533 = vrot.slane %v1532, 4
      %v1534 = vunpack.c.l.b16 %v1378
      %v1535 = vunpack.c.h.b16 %v1378
      %v1536 = vunpack.c.l.b16 0
      %v1537 = vunpack.c.h.b16 0
      %vm1538 = vcmp.ne.s32.totalorder %v1534, %v1536
      %vm1539 = vcmp.ne.s32.totalorder %v1535, %v1537
      %vm1540 = vmpackc.low %vm1539, %vm1538
      %v1541 = vunpack.c.l.b16 %v1388
      %v1542 = vunpack.c.h.b16 %v1388
      %v1543 = vunpack.c.l.b16 0
      %v1544 = vunpack.c.h.b16 0
      %vm1545 = vcmp.ne.s32.totalorder %v1541, %v1543
      %vm1546 = vcmp.ne.s32.totalorder %v1542, %v1544
      %vm1547 = vmpackc.low %vm1546, %vm1545
      %v1548 = vunpack.c.l.b16 %v1398
      %v1549 = vunpack.c.h.b16 %v1398
      %v1550 = vunpack.c.l.b16 0
      %v1551 = vunpack.c.h.b16 0
      %vm1552 = vcmp.ne.s32.totalorder %v1548, %v1550
      %vm1553 = vcmp.ne.s32.totalorder %v1549, %v1551
      %vm1554 = vmpackc.low %vm1553, %vm1552
      %v1555 = vunpack.c.l.b16 %v1408
      %v1556 = vunpack.c.h.b16 %v1408
      %v1557 = vunpack.c.l.b16 0
      %v1558 = vunpack.c.h.b16 0
      %vm1559 = vcmp.ne.s32.totalorder %v1555, %v1557
      %vm1560 = vcmp.ne.s32.totalorder %v1556, %v1558
      %vm1561 = vmpackc.low %vm1560, %vm1559
      %v1562 = vunpack.c.l.b16 %v1418
      %v1563 = vunpack.c.h.b16 %v1418
      %v1564 = vunpack.c.l.b16 0
      %v1565 = vunpack.c.h.b16 0
      %vm1566 = vcmp.ne.s32.totalorder %v1562, %v1564
      %vm1567 = vcmp.ne.s32.totalorder %v1563, %v1565
      %vm1568 = vmpackc.low %vm1567, %vm1566
      %v1569 = vunpack.c.l.b16 %v1428
      %v1570 = vunpack.c.h.b16 %v1428
      %v1571 = vunpack.c.l.b16 0
      %v1572 = vunpack.c.h.b16 0
      %vm1573 = vcmp.ne.s32.totalorder %v1569, %v1571
      %vm1574 = vcmp.ne.s32.totalorder %v1570, %v1572
      %vm1575 = vmpackc.low %vm1574, %vm1573
      %v1576 = vunpack.c.l.b16 %v1438
      %v1577 = vunpack.c.h.b16 %v1438
      %v1578 = vunpack.c.l.b16 0
      %v1579 = vunpack.c.h.b16 0
      %vm1580 = vcmp.ne.s32.totalorder %v1576, %v1578
      %vm1581 = vcmp.ne.s32.totalorder %v1577, %v1579
      %vm1582 = vmpackc.low %vm1581, %vm1580
      %v1583 = vunpack.c.l.b16 %v1448
      %v1584 = vunpack.c.h.b16 %v1448
      %v1585 = vunpack.c.l.b16 0
      %v1586 = vunpack.c.h.b16 0
      %vm1587 = vcmp.ne.s32.totalorder %v1583, %v1585
      %vm1588 = vcmp.ne.s32.totalorder %v1584, %v1586
      %vm1589 = vmpackc.low %vm1588, %vm1587
      %v1590 = vunpack.c.l.b16 %v1458
      %v1591 = vunpack.c.h.b16 %v1458
      %v1592 = vunpack.c.l.b16 0
      %v1593 = vunpack.c.h.b16 0
      %vm1594 = vcmp.ne.s32.totalorder %v1590, %v1592
      %vm1595 = vcmp.ne.s32.totalorder %v1591, %v1593
      %vm1596 = vmpackc.low %vm1595, %vm1594
      %v1597 = vunpack.c.l.b16 %v1468
      %v1598 = vunpack.c.h.b16 %v1468
      %v1599 = vunpack.c.l.b16 0
      %v1600 = vunpack.c.h.b16 0
      %vm1601 = vcmp.ne.s32.totalorder %v1597, %v1599
      %vm1602 = vcmp.ne.s32.totalorder %v1598, %v1600
      %vm1603 = vmpackc.low %vm1602, %vm1601
      %v1604 = vunpack.c.l.b16 %v1478
      %v1605 = vunpack.c.h.b16 %v1478
      %v1606 = vunpack.c.l.b16 0
      %v1607 = vunpack.c.h.b16 0
      %vm1608 = vcmp.ne.s32.totalorder %v1604, %v1606
      %vm1609 = vcmp.ne.s32.totalorder %v1605, %v1607
      %vm1610 = vmpackc.low %vm1609, %vm1608
      %v1611 = vunpack.c.l.b16 %v1488
      %v1612 = vunpack.c.h.b16 %v1488
      %v1613 = vunpack.c.l.b16 0
      %v1614 = vunpack.c.h.b16 0
      %vm1615 = vcmp.ne.s32.totalorder %v1611, %v1613
      %vm1616 = vcmp.ne.s32.totalorder %v1612, %v1614
      %vm1617 = vmpackc.low %vm1616, %vm1615
      %v1618 = vunpack.c.l.b16 %v1498
      %v1619 = vunpack.c.h.b16 %v1498
      %v1620 = vunpack.c.l.b16 0
      %v1621 = vunpack.c.h.b16 0
      %vm1622 = vcmp.ne.s32.totalorder %v1618, %v1620
      %vm1623 = vcmp.ne.s32.totalorder %v1619, %v1621
      %vm1624 = vmpackc.low %vm1623, %vm1622
      %v1625 = vunpack.c.l.b16 %v1508
      %v1626 = vunpack.c.h.b16 %v1508
      %v1627 = vunpack.c.l.b16 0
      %v1628 = vunpack.c.h.b16 0
      %vm1629 = vcmp.ne.s32.totalorder %v1625, %v1627
      %vm1630 = vcmp.ne.s32.totalorder %v1626, %v1628
      %vm1631 = vmpackc.low %vm1630, %vm1629
      %v1632 = vunpack.c.l.b16 %v1518
      %v1633 = vunpack.c.h.b16 %v1518
      %v1634 = vunpack.c.l.b16 0
      %v1635 = vunpack.c.h.b16 0
      %vm1636 = vcmp.ne.s32.totalorder %v1632, %v1634
      %vm1637 = vcmp.ne.s32.totalorder %v1633, %v1635
      %vm1638 = vmpackc.low %vm1637, %vm1636
      %v1639 = vunpack.c.l.b16 %v1528
      %v1640 = vunpack.c.h.b16 %v1528
      %v1641 = vunpack.c.l.b16 0
      %v1642 = vunpack.c.h.b16 0
      %vm1643 = vcmp.ne.s32.totalorder %v1639, %v1641
      %vm1644 = vcmp.ne.s32.totalorder %v1640, %v1642
      %vm1645 = vmpackc.low %vm1644, %vm1643
      %v1646 = vunpack.c.l.b16 %v1533
      %v1647 = vunpack.c.h.b16 %v1533
      %v1648 = vunpack.c.l.b16 0
      %v1649 = vunpack.c.h.b16 0
      %vm1650 = vcmp.ne.s32.totalorder %v1646, %v1648
      %vm1651 = vcmp.ne.s32.totalorder %v1647, %v1649
      %vm1652 = vmpackc.low %vm1651, %vm1650
      %v1653 = vsel %vm1540, %v1291, 0
      %v1654 = vsel %vm1547, %v1292, 0
      %v1655 = vsel %vm1554, %v1293, 0
      %v1656 = vsel %vm1561, %v1294, 0
      %v1657 = vsel %vm1568, %v1295, 0
      %v1658 = vsel %vm1575, %v1296, 0
      %v1659 = vsel %vm1582, %v1297, 0
      %v1660 = vsel %vm1589, %v1298, 0
      %v1661 = vsel %vm1596, %v1299, 0
      %v1662 = vsel %vm1603, %v1300, 0
      %v1663 = vsel %vm1610, %v1301, 0
      %v1664 = vsel %vm1617, %v1302, 0
      %v1665 = vsel %vm1624, %v1303, 0
      %v1666 = vsel %vm1631, %v1304, 0
      %v1667 = vsel %vm1638, %v1305, 0
      %v1668 = vsel %vm1645, %v1306, 0
      %v1669 = vsel %vm1652, %v1307, 0
      %v1670 = vld [vmem:[%s5] sm:$0x1]
      %v1688 = vunpack.c.l.b16 %v1653
      %v1689 = vunpack.c.l.b16 %v1654
      %v1690 = vunpack.c.l.b16 %v1655
      %v1691 = vunpack.c.l.b16 %v1656
      %v1692 = vunpack.c.l.b16 %v1657
      %v1693 = vunpack.c.l.b16 %v1658
      %v1694 = vunpack.c.l.b16 %v1659
      %v1695 = vunpack.c.l.b16 %v1660
      %v1696 = vunpack.c.l.b16 %v1661
      %v1697 = vunpack.c.l.b16 %v1662
      %v1698 = vunpack.c.l.b16 %v1663
      %v1699 = vunpack.c.l.b16 %v1664
      %v1700 = vunpack.c.l.b16 %v1665
      %v1701 = vunpack.c.l.b16 %v1666
      %v1702 = vunpack.c.l.b16 %v1667
      %v1703 = vunpack.c.l.b16 %v1668
      %v1704 = vunpack.c.l.b16 %v1669
      %v1705 = vpack.c.b16 %v1689, %v1688
      %v1706 = vpack.c.b16 %v1691, %v1690
      %v1707 = vpack.c.b16 %v1693, %v1692
      %v1708 = vpack.c.b16 %v1695, %v1694
      %v1709 = vpack.c.b16 %v1697, %v1696
      %v1710 = vpack.c.b16 %v1699, %v1698
      %v1711 = vpack.c.b16 %v1701, %v1700
      %v1712 = vpack.c.b16 %v1703, %v1702
      %v1713 = vpack.c.b16 %v1704, %v1704
      %vm1714 = vsmask.f32 4352
      %v1716 = vshrl.u32 %v1705, 16
      %v1718 = vrot.slane %v1716, 3
      %v1719 = vshll.u32 %v1705, 16
      %v1721 = vrot.slane %v1719, 4
      %v1722 = vor.u32 %v1718, %v1721
      %v1724 = vshrl.u32 %v1706, 16
      %v1726 = vrot.slane %v1724, 3
      %v1727 = vshll.u32 %v1706, 16
      %v1729 = vrot.slane %v1727, 4
      %v1730 = vor.u32 %v1726, %v1729
      %v1731 = vsel %vm1714, %v1722, %v1730
      %v1733 = vshrl.u32 %v1707, 16
      %v1735 = vrot.slane %v1733, 3
      %v1736 = vshll.u32 %v1707, 16
      %v1738 = vrot.slane %v1736, 4
      %v1739 = vor.u32 %v1735, %v1738
      %v1740 = vsel %vm1714, %v1730, %v1739
      %v1742 = vshrl.u32 %v1708, 16
      %v1744 = vrot.slane %v1742, 3
      %v1745 = vshll.u32 %v1708, 16
      %v1747 = vrot.slane %v1745, 4
      %v1748 = vor.u32 %v1744, %v1747
      %v1749 = vsel %vm1714, %v1739, %v1748
      %v1751 = vshrl.u32 %v1709, 16
      %v1753 = vrot.slane %v1751, 3
      %v1754 = vshll.u32 %v1709, 16
      %v1756 = vrot.slane %v1754, 4
      %v1757 = vor.u32 %v1753, %v1756
      %v1758 = vsel %vm1714, %v1748, %v1757
      %v1760 = vshrl.u32 %v1710, 16
      %v1762 = vrot.slane %v1760, 3
      %v1763 = vshll.u32 %v1710, 16
      %v1765 = vrot.slane %v1763, 4
      %v1766 = vor.u32 %v1762, %v1765
      %v1767 = vsel %vm1714, %v1757, %v1766
      %v1769 = vshrl.u32 %v1711, 16
      %v1771 = vrot.slane %v1769, 3
      %v1772 = vshll.u32 %v1711, 16
      %v1774 = vrot.slane %v1772, 4
      %v1775 = vor.u32 %v1771, %v1774
      %v1776 = vsel %vm1714, %v1766, %v1775
      %v1778 = vshrl.u32 %v1712, 16
      %v1780 = vrot.slane %v1778, 3
      %v1781 = vshll.u32 %v1712, 16
      %v1783 = vrot.slane %v1781, 4
      %v1784 = vor.u32 %v1780, %v1783
      %v1785 = vsel %vm1714, %v1775, %v1784
      %v1787 = vshrl.u32 %v1713, 16
      %v1789 = vrot.slane %v1787, 3
      %v1790 = vshll.u32 %v1713, 16
      %v1792 = vrot.slane %v1790, 4
      %v1793 = vor.u32 %v1789, %v1792
      %v1794 = vsel %vm1714, %v1784, %v1793
      %vm1795 = vcmask 15360
      %v1797 = vsel %vm1795, %v1731, 0
      %v1800 = vsel %vm1795, %v1740, 0
      %v1803 = vsel %vm1795, %v1749, 0
      %v1806 = vsel %vm1795, %v1758, 0
      %v1809 = vsel %vm1795, %v1767, 0
      %v1812 = vsel %vm1795, %v1776, 0
      %v1815 = vsel %vm1795, %v1785, 0
      %v1818 = vsel %vm1795, %v1794, 0
      %vm1820 = vcmask 1040384
      %v1822 = vsel %vm1820, %v1670, 0
      %1824 = vmatpush.bf16.msra.mxu0 0
      %1825 = vmatpush.bf16.msra.mxu0 0
      %1826 = vmatpush.bf16.msra.mxu0 0
      %1827 = vmatpush.bf16.msra.mxu0 0
      %1828 = vmatpush.bf16.msra.mxu0 0
      %1829 = vmatpush.bf16.msra.mxu0 0
      %1830 = vmatpush.bf16.msra.mxu0 0
      %1831 = vmatpush.bf16.msra.mxu0 %v1822
      %1832 = vmatmul.bf16.gmra.mxu0 %v1797
      %v1833 = vpop.f32.mrf.mxu0
      %v1834 = vadd.f32 0.0, %v1833
      %v1835 = vpop.f32.mrf.mxu0
      %v1836 = vadd.f32 0.0, %v1835
      %1837 = vmatmul.bf16.gmra.mxu0 %v1800
      %v1838 = vpop.f32.mrf.mxu0
      %v1839 = vadd.f32 0.0, %v1838
      %v1840 = vpop.f32.mrf.mxu0
      %v1841 = vadd.f32 0.0, %v1840
      %1842 = vmatmul.bf16.gmra.mxu0 %v1803
      %v1843 = vpop.f32.mrf.mxu0
      %v1844 = vadd.f32 0.0, %v1843
      %v1845 = vpop.f32.mrf.mxu0
      %v1846 = vadd.f32 0.0, %v1845
      %1847 = vmatmul.bf16.gmra.mxu0 %v1806
      %v1848 = vpop.f32.mrf.mxu0
      %v1849 = vadd.f32 0.0, %v1848
      %v1850 = vpop.f32.mrf.mxu0
      %v1851 = vadd.f32 0.0, %v1850
      %1852 = vmatmul.bf16.gmra.mxu0 %v1809
      %v1853 = vpop.f32.mrf.mxu0
      %v1854 = vadd.f32 0.0, %v1853
      %v1855 = vpop.f32.mrf.mxu0
      %v1856 = vadd.f32 0.0, %v1855
      %1857 = vmatmul.bf16.gmra.mxu0 %v1812
      %v1858 = vpop.f32.mrf.mxu0
      %v1859 = vadd.f32 0.0, %v1858
      %v1860 = vpop.f32.mrf.mxu0
      %v1861 = vadd.f32 0.0, %v1860
      %1862 = vmatmul.bf16.gmra.mxu0 %v1815
      %v1863 = vpop.f32.mrf.mxu0
      %v1864 = vadd.f32 0.0, %v1863
      %v1865 = vpop.f32.mrf.mxu0
      %v1866 = vadd.f32 0.0, %v1865
      %1867 = vmatmul.bf16.gmra.mxu0 %v1818
      %v1868 = vpop.f32.mrf.mxu0
      %v1869 = vadd.f32 0.0, %v1868
      %v1870 = vpop.f32.mrf.mxu0
      %v1871 = vadd.f32 0.0, %v1870
      %1872 = vdwg.mxu0
      %1873 = vst.msk [vmem:[#allocation3] sm:$0xff] %vm481, %v1834
      %1874 = vst.msk [vmem:[#allocation3 + $0x8] sm:$0xff] %vm481, %v1836
      %1875 = vst.msk [vmem:[#allocation3 + $0x10] sm:$0xff] %vm481, %v1839
      %1876 = vst.msk [vmem:[#allocation3 + $0x18] sm:$0xff] %vm481, %v1841
      %1877 = vst.msk [vmem:[#allocation3 + $0x20] sm:$0xff] %vm481, %v1844
      %1878 = vst.msk [vmem:[#allocation3 + $0x28] sm:$0xff] %vm481, %v1846
      %1879 = vst.msk [vmem:[#allocation3 + $0x30] sm:$0xff] %vm481, %v1849
      %1880 = vst.msk [vmem:[#allocation3 + $0x38] sm:$0xff] %vm481, %v1851
      %1881 = vst.msk [vmem:[#allocation3 + $0x40] sm:$0xff] %vm481, %v1854
      %1882 = vst.msk [vmem:[#allocation3 + $0x48] sm:$0xff] %vm481, %v1856
      %1883 = vst.msk [vmem:[#allocation3 + $0x50] sm:$0xff] %vm481, %v1859
      %1884 = vst.msk [vmem:[#allocation3 + $0x58] sm:$0xff] %vm481, %v1861
      %1885 = vst.msk [vmem:[#allocation3 + $0x60] sm:$0xff] %vm481, %v1864
      %1886 = vst.msk [vmem:[#allocation3 + $0x68] sm:$0xff] %vm481, %v1866
      %1887 = vst.msk [vmem:[#allocation3 + $0x70] sm:$0xff] %vm481, %v1869
      %1888 = vst.msk [vmem:[#allocation3 + $0x78] sm:$0xff] %vm481, %v1871
      %v1889 = vld [vmem:[#allocation2 + $0x4] sm:$0xf]
      %v1890 = vld [vmem:[#allocation2 + $0x8] sm:$0xf]
      %v1891 = vld [vmem:[#allocation2 + $0xc] sm:$0xf]
      %v1892 = vld [vmem:[#allocation2 + $0x10] sm:$0xf]
      %v1893 = vld [vmem:[#allocation2 + $0x14] sm:$0xf]
      %v1894 = vld [vmem:[#allocation2 + $0x18] sm:$0xf]
      %v1895 = vld [vmem:[#allocation2 + $0x1c] sm:$0xf]
      %v1896 = vld [vmem:[#allocation2 + $0x20] sm:$0xf]
      %v1897 = vld [vmem:[#allocation2 + $0x24] sm:$0xf]
      %v1898 = vld [vmem:[#allocation2 + $0x28] sm:$0xf]
      %v1899 = vld [vmem:[#allocation2 + $0x2c] sm:$0xf]
      %v1900 = vld [vmem:[#allocation2 + $0x30] sm:$0xf]
      %v1901 = vld [vmem:[#allocation2 + $0x34] sm:$0xf]
      %v1902 = vld [vmem:[#allocation2 + $0x38] sm:$0xf]
      %v1903 = vld [vmem:[#allocation2 + $0x3c] sm:$0xf]
      %v1904 = vld [vmem:[#allocation2 + $0x40] sm:$0xf]
      %s1905 = scalar_lea.vmem %s5, 1
      %v1906 = vld [vmem:[%s1905] sm:$0x1]
      %v1923 = vunpack.c.l.b16 %v1889
      %v1924 = vunpack.c.l.b16 %v1890
      %v1925 = vunpack.c.l.b16 %v1891
      %v1926 = vunpack.c.l.b16 %v1892
      %v1927 = vunpack.c.l.b16 %v1893
      %v1928 = vunpack.c.l.b16 %v1894
      %v1929 = vunpack.c.l.b16 %v1895
      %v1930 = vunpack.c.l.b16 %v1896
      %v1931 = vunpack.c.l.b16 %v1897
      %v1932 = vunpack.c.l.b16 %v1898
      %v1933 = vunpack.c.l.b16 %v1899
      %v1934 = vunpack.c.l.b16 %v1900
      %v1935 = vunpack.c.l.b16 %v1901
      %v1936 = vunpack.c.l.b16 %v1902
      %v1937 = vunpack.c.l.b16 %v1903
      %v1938 = vunpack.c.l.b16 %v1904
      %v1939 = vpack.c.b16 %v1924, %v1923
      %v1940 = vpack.c.b16 %v1926, %v1925
      %v1941 = vpack.c.b16 %v1928, %v1927
      %v1942 = vpack.c.b16 %v1930, %v1929
      %v1943 = vpack.c.b16 %v1932, %v1931
      %v1944 = vpack.c.b16 %v1934, %v1933
      %v1945 = vpack.c.b16 %v1936, %v1935
      %v1946 = vpack.c.b16 %v1938, %v1937
      %v1948 = vsel %vm1795, %v1939, 0
      %v1951 = vsel %vm1795, %v1940, 0
      %v1954 = vsel %vm1795, %v1941, 0
      %v1957 = vsel %vm1795, %v1942, 0
      %v1960 = vsel %vm1795, %v1943, 0
      %v1963 = vsel %vm1795, %v1944, 0
      %v1966 = vsel %vm1795, %v1945, 0
      %v1969 = vsel %vm1795, %v1946, 0
      %v1972 = vsel %vm1820, %v1906, 0
      %1974 = vmatpush.bf16.msra.mxu0 0
      %1975 = vmatpush.bf16.msra.mxu0 0
      %1976 = vmatpush.bf16.msra.mxu0 0
      %1977 = vmatpush.bf16.msra.mxu0 0
      %1978 = vmatpush.bf16.msra.mxu0 0
      %1979 = vmatpush.bf16.msra.mxu0 0
      %1980 = vmatpush.bf16.msra.mxu0 0
      %1981 = vmatpush.bf16.msra.mxu0 %v1972
      %1982 = vmatmul.bf16.gmra.mxu0 %v1948
      %v1983 = vpop.f32.mrf.mxu0
      %v1984 = vadd.f32 0.0, %v1983
      %v1985 = vpop.f32.mrf.mxu0
      %v1986 = vadd.f32 0.0, %v1985
      %1987 = vmatmul.bf16.gmra.mxu0 %v1951
      %v1988 = vpop.f32.mrf.mxu0
      %v1989 = vadd.f32 0.0, %v1988
      %v1990 = vpop.f32.mrf.mxu0
      %v1991 = vadd.f32 0.0, %v1990
      %1992 = vmatmul.bf16.gmra.mxu0 %v1954
      %v1993 = vpop.f32.mrf.mxu0
      %v1994 = vadd.f32 0.0, %v1993
      %v1995 = vpop.f32.mrf.mxu0
      %v1996 = vadd.f32 0.0, %v1995
      %1997 = vmatmul.bf16.gmra.mxu0 %v1957
      %v1998 = vpop.f32.mrf.mxu0
      %v1999 = vadd.f32 0.0, %v1998
      %v2000 = vpop.f32.mrf.mxu0
      %v2001 = vadd.f32 0.0, %v2000
      %2002 = vmatmul.bf16.gmra.mxu0 %v1960
      %v2003 = vpop.f32.mrf.mxu0
      %v2004 = vadd.f32 0.0, %v2003
      %v2005 = vpop.f32.mrf.mxu0
      %v2006 = vadd.f32 0.0, %v2005
      %2007 = vmatmul.bf16.gmra.mxu0 %v1963
      %v2008 = vpop.f32.mrf.mxu0
      %v2009 = vadd.f32 0.0, %v2008
      %v2010 = vpop.f32.mrf.mxu0
      %v2011 = vadd.f32 0.0, %v2010
      %2012 = vmatmul.bf16.gmra.mxu0 %v1966
      %v2013 = vpop.f32.mrf.mxu0
      %v2014 = vadd.f32 0.0, %v2013
      %v2015 = vpop.f32.mrf.mxu0
      %v2016 = vadd.f32 0.0, %v2015
      %2017 = vmatmul.bf16.gmra.mxu0 %v1969
      %v2018 = vpop.f32.mrf.mxu0
      %v2019 = vadd.f32 0.0, %v2018
      %v2020 = vpop.f32.mrf.mxu0
      %v2021 = vadd.f32 0.0, %v2020
      %2022 = vdwg.mxu0
      %v2023 = vld [vmem:[#allocation3] sm:$0xff]
      %v2024 = vld [vmem:[#allocation3 + $0x8] sm:$0xff]
      %v2025 = vld [vmem:[#allocation3 + $0x10] sm:$0xff]
      %v2026 = vld [vmem:[#allocation3 + $0x18] sm:$0xff]
      %v2027 = vld [vmem:[#allocation3 + $0x20] sm:$0xff]
      %v2028 = vld [vmem:[#allocation3 + $0x28] sm:$0xff]
      %v2029 = vld [vmem:[#allocation3 + $0x30] sm:$0xff]
      %v2030 = vld [vmem:[#allocation3 + $0x38] sm:$0xff]
      %v2031 = vld [vmem:[#allocation3 + $0x40] sm:$0xff]
      %v2032 = vld [vmem:[#allocation3 + $0x48] sm:$0xff]
      %v2033 = vld [vmem:[#allocation3 + $0x50] sm:$0xff]
      %v2034 = vld [vmem:[#allocation3 + $0x58] sm:$0xff]
      %v2035 = vld [vmem:[#allocation3 + $0x60] sm:$0xff]
      %v2036 = vld [vmem:[#allocation3 + $0x68] sm:$0xff]
      %v2037 = vld [vmem:[#allocation3 + $0x70] sm:$0xff]
      %v2038 = vld [vmem:[#allocation3 + $0x78] sm:$0xff]
      %v2039 = vadd.f32 %v2023, %v1984
      %v2040 = vadd.f32 %v2024, %v1986
      %v2041 = vadd.f32 %v2025, %v1989
      %v2042 = vadd.f32 %v2026, %v1991
      %v2043 = vadd.f32 %v2027, %v1994
      %v2044 = vadd.f32 %v2028, %v1996
      %v2045 = vadd.f32 %v2029, %v1999
      %v2046 = vadd.f32 %v2030, %v2001
      %v2047 = vadd.f32 %v2031, %v2004
      %v2048 = vadd.f32 %v2032, %v2006
      %v2049 = vadd.f32 %v2033, %v2009
      %v2050 = vadd.f32 %v2034, %v2011
      %v2051 = vadd.f32 %v2035, %v2014
      %v2052 = vadd.f32 %v2036, %v2016
      %v2053 = vadd.f32 %v2037, %v2019
      %v2054 = vadd.f32 %v2038, %v2021
      %2055 = vst.msk [vmem:[#allocation3] sm:$0xff] %vm481, %v2039
      %2056 = vst.msk [vmem:[#allocation3 + $0x8] sm:$0xff] %vm481, %v2040
      %2057 = vst.msk [vmem:[#allocation3 + $0x10] sm:$0xff] %vm481, %v2041
      %2058 = vst.msk [vmem:[#allocation3 + $0x18] sm:$0xff] %vm481, %v2042
      %2059 = vst.msk [vmem:[#allocation3 + $0x20] sm:$0xff] %vm481, %v2043
      %2060 = vst.msk [vmem:[#allocation3 + $0x28] sm:$0xff] %vm481, %v2044
      %2061 = vst.msk [vmem:[#allocation3 + $0x30] sm:$0xff] %vm481, %v2045
      %2062 = vst.msk [vmem:[#allocation3 + $0x38] sm:$0xff] %vm481, %v2046
      %2063 = vst.msk [vmem:[#allocation3 + $0x40] sm:$0xff] %vm481, %v2047
      %2064 = vst.msk [vmem:[#allocation3 + $0x48] sm:$0xff] %vm481, %v2048
      %2065 = vst.msk [vmem:[#allocation3 + $0x50] sm:$0xff] %vm481, %v2049
      %2066 = vst.msk [vmem:[#allocation3 + $0x58] sm:$0xff] %vm481, %v2050
      %2067 = vst.msk [vmem:[#allocation3 + $0x60] sm:$0xff] %vm481, %v2051
      %2068 = vst.msk [vmem:[#allocation3 + $0x68] sm:$0xff] %vm481, %v2052
      %2069 = vst.msk [vmem:[#allocation3 + $0x70] sm:$0xff] %vm481, %v2053
      %2070 = vst.msk [vmem:[#allocation3 + $0x78] sm:$0xff] %vm481, %v2054
      %v2071 = vld [vmem:[#allocation2 + $0x4] sm:$0xf]
      %v2072 = vld [vmem:[#allocation2 + $0x8] sm:$0xf]
      %v2073 = vld [vmem:[#allocation2 + $0xc] sm:$0xf]
      %v2074 = vld [vmem:[#allocation2 + $0x10] sm:$0xf]
      %v2075 = vld [vmem:[#allocation2 + $0x14] sm:$0xf]
      %v2076 = vld [vmem:[#allocation2 + $0x18] sm:$0xf]
      %v2077 = vld [vmem:[#allocation2 + $0x1c] sm:$0xf]
      %v2078 = vld [vmem:[#allocation2 + $0x20] sm:$0xf]
      %v2079 = vld [vmem:[#allocation2 + $0x24] sm:$0xf]
      %v2080 = vld [vmem:[#allocation2 + $0x28] sm:$0xf]
      %v2081 = vld [vmem:[#allocation2 + $0x2c] sm:$0xf]
      %v2082 = vld [vmem:[#allocation2 + $0x30] sm:$0xf]
      %v2083 = vld [vmem:[#allocation2 + $0x34] sm:$0xf]
      %v2084 = vld [vmem:[#allocation2 + $0x38] sm:$0xf]
      %v2085 = vld [vmem:[#allocation2 + $0x3c] sm:$0xf]
      %v2086 = vld [vmem:[#allocation2 + $0x40] sm:$0xf]
      %v2087 = vld [vmem:[#allocation2 + $0x44] sm:$0x1]
      %v2088 = vsel %vm1275, 1, 0
      %v2089 = vsel %vm1276, 1, 0
      %v2090 = vsel %vm1277, 1, 0
      %v2091 = vsel %vm1278, 1, 0
      %v2092 = vsel %vm1279, 1, 0
      %v2093 = vsel %vm1280, 1, 0
      %v2094 = vsel %vm1281, 1, 0
      %v2095 = vsel %vm1282, 1, 0
      %v2096 = vsel %vm1283, 1, 0
      %v2097 = vsel %vm1284, 1, 0
      %v2098 = vsel %vm1285, 1, 0
      %v2099 = vsel %vm1286, 1, 0
      %v2100 = vsel %vm1287, 1, 0
      %v2101 = vsel %vm1288, 1, 0
      %v2102 = vsel %vm1289, 1, 0
      %v2103 = vsel %vm1290, 1, 0
      %vm2104 = vcmp.eq.s32.totalorder %v2088, 1
      %vm2105 = vcmp.eq.s32.totalorder %v2089, 1
      %vm2106 = vcmp.eq.s32.totalorder %v2090, 1
      %vm2107 = vcmp.eq.s32.totalorder %v2091, 1
      %vm2108 = vcmp.eq.s32.totalorder %v2092, 1
      %vm2109 = vcmp.eq.s32.totalorder %v2093, 1
      %vm2110 = vcmp.eq.s32.totalorder %v2094, 1
      %vm2111 = vcmp.eq.s32.totalorder %v2095, 1
      %vm2112 = vcmp.eq.s32.totalorder %v2096, 1
      %vm2113 = vcmp.eq.s32.totalorder %v2097, 1
      %vm2114 = vcmp.eq.s32.totalorder %v2098, 1
      %vm2115 = vcmp.eq.s32.totalorder %v2099, 1
      %vm2116 = vcmp.eq.s32.totalorder %v2100, 1
      %vm2117 = vcmp.eq.s32.totalorder %v2101, 1
      %vm2118 = vcmp.eq.s32.totalorder %v2102, 1
      %vm2119 = vcmp.eq.s32.totalorder %v2103, 1
      %vm2120 = vmpackc.low %vm2104, %vm2104
      %vm2121 = vmpackc.low %vm2105, %vm2105
      %vm2122 = vmpackc.low %vm2106, %vm2106
      %vm2123 = vmpackc.low %vm2107, %vm2107
      %vm2124 = vmpackc.low %vm2108, %vm2108
      %vm2125 = vmpackc.low %vm2109, %vm2109
      %vm2126 = vmpackc.low %vm2110, %vm2110
      %vm2127 = vmpackc.low %vm2111, %vm2111
      %vm2128 = vmpackc.low %vm2112, %vm2112
      %vm2129 = vmpackc.low %vm2113, %vm2113
      %vm2130 = vmpackc.low %vm2114, %vm2114
      %vm2131 = vmpackc.low %vm2115, %vm2115
      %vm2132 = vmpackc.low %vm2116, %vm2116
      %vm2133 = vmpackc.low %vm2117, %vm2117
      %vm2134 = vmpackc.low %vm2118, %vm2118
      %vm2135 = vmpackc.low %vm2119, %vm2119
      %v2136 = vsel %vm2120, 65537, 0
      %v2137 = vsel %vm2121, 65537, 0
      %v2138 = vsel %vm2122, 65537, 0
      %v2139 = vsel %vm2123, 65537, 0
      %v2140 = vsel %vm2124, 65537, 0
      %v2141 = vsel %vm2125, 65537, 0
      %v2142 = vsel %vm2126, 65537, 0
      %v2143 = vsel %vm2127, 65537, 0
      %v2144 = vsel %vm2128, 65537, 0
      %v2145 = vsel %vm2129, 65537, 0
      %v2146 = vsel %vm2130, 65537, 0
      %v2147 = vsel %vm2131, 65537, 0
      %v2148 = vsel %vm2132, 65537, 0
      %v2149 = vsel %vm2133, 65537, 0
      %v2150 = vsel %vm2134, 65537, 0
      %v2151 = vsel %vm2135, 65537, 0
      %vm2152 = vsmask.f32 256
      %vm2153 = vsmask.f32 4368
      %vm2154 = vmor %vm2152, %vm2153
      %v2156 = vshrl.u32 %v2136, 16
      %v2158 = vrot.slane %v2156, 7
      %v2159 = vshll.u32 %v2136, 16
      %v2161 = vor.u32 %v2158, %v2159
      %v2162 = vrot.slane %v2158, 4
      %v2164 = vshrl.u32 %v2137, 16
      %v2166 = vrot.slane %v2164, 7
      %v2167 = vshll.u32 %v2137, 16
      %v2169 = vor.u32 %v2166, %v2167
      %v2170 = vsel %vm2154, %v2162, %v2169
      %v2171 = vrot.slane %v2166, 4
      %v2173 = vshrl.u32 %v2138, 16
      %v2175 = vrot.slane %v2173, 7
      %v2176 = vshll.u32 %v2138, 16
      %v2178 = vor.u32 %v2175, %v2176
      %v2179 = vsel %vm2154, %v2171, %v2178
      %v2180 = vrot.slane %v2175, 4
      %v2182 = vshrl.u32 %v2139, 16
      %v2184 = vrot.slane %v2182, 7
      %v2185 = vshll.u32 %v2139, 16
      %v2187 = vor.u32 %v2184, %v2185
      %v2188 = vsel %vm2154, %v2180, %v2187
      %v2189 = vrot.slane %v2184, 4
      %v2191 = vshrl.u32 %v2140, 16
      %v2193 = vrot.slane %v2191, 7
      %v2194 = vshll.u32 %v2140, 16
      %v2196 = vor.u32 %v2193, %v2194
      %v2197 = vsel %vm2154, %v2189, %v2196
      %v2198 = vrot.slane %v2193, 4
      %v2200 = vshrl.u32 %v2141, 16
      %v2202 = vrot.slane %v2200, 7
      %v2203 = vshll.u32 %v2141, 16
      %v2205 = vor.u32 %v2202, %v2203
      %v2206 = vsel %vm2154, %v2198, %v2205
      %v2207 = vrot.slane %v2202, 4
      %v2209 = vshrl.u32 %v2142, 16
      %v2211 = vrot.slane %v2209, 7
      %v2212 = vshll.u32 %v2142, 16
      %v2214 = vor.u32 %v2211, %v2212
      %v2215 = vsel %vm2154, %v2207, %v2214
      %v2216 = vrot.slane %v2211, 4
      %v2218 = vshrl.u32 %v2143, 16
      %v2220 = vrot.slane %v2218, 7
      %v2221 = vshll.u32 %v2143, 16
      %v2223 = vor.u32 %v2220, %v2221
      %v2224 = vsel %vm2154, %v2216, %v2223
      %v2225 = vrot.slane %v2220, 4
      %v2227 = vshrl.u32 %v2144, 16
      %v2229 = vrot.slane %v2227, 7
      %v2230 = vshll.u32 %v2144, 16
      %v2232 = vor.u32 %v2229, %v2230
      %v2233 = vsel %vm2154, %v2225, %v2232
      %v2234 = vrot.slane %v2229, 4
      %v2236 = vshrl.u32 %v2145, 16
      %v2238 = vrot.slane %v2236, 7
      %v2239 = vshll.u32 %v2145, 16
      %v2241 = vor.u32 %v2238, %v2239
      %v2242 = vsel %vm2154, %v2234, %v2241
      %v2243 = vrot.slane %v2238, 4
      %v2245 = vshrl.u32 %v2146, 16
      %v2247 = vrot.slane %v2245, 7
      %v2248 = vshll.u32 %v2146, 16
      %v2250 = vor.u32 %v2247, %v2248
      %v2251 = vsel %vm2154, %v2243, %v2250
      %v2252 = vrot.slane %v2247, 4
      %v2254 = vshrl.u32 %v2147, 16
      %v2256 = vrot.slane %v2254, 7
      %v2257 = vshll.u32 %v2147, 16
      %v2259 = vor.u32 %v2256, %v2257
      %v2260 = vsel %vm2154, %v2252, %v2259
      %v2261 = vrot.slane %v2256, 4
      %v2263 = vshrl.u32 %v2148, 16
      %v2265 = vrot.slane %v2263, 7
      %v2266 = vshll.u32 %v2148, 16
      %v2268 = vor.u32 %v2265, %v2266
      %v2269 = vsel %vm2154, %v2261, %v2268
      %v2270 = vrot.slane %v2265, 4
      %v2272 = vshrl.u32 %v2149, 16
      %v2274 = vrot.slane %v2272, 7
      %v2275 = vshll.u32 %v2149, 16
      %v2277 = vor.u32 %v2274, %v2275
      %v2278 = vsel %vm2154, %v2270, %v2277
      %v2279 = vrot.slane %v2274, 4
      %v2281 = vshrl.u32 %v2150, 16
      %v2283 = vrot.slane %v2281, 7
      %v2284 = vshll.u32 %v2150, 16
      %v2286 = vor.u32 %v2283, %v2284
      %v2287 = vsel %vm2154, %v2279, %v2286
      %v2288 = vrot.slane %v2283, 4
      %v2290 = vshrl.u32 %v2151, 16
      %v2292 = vrot.slane %v2290, 7
      %v2293 = vshll.u32 %v2151, 16
      %v2295 = vor.u32 %v2292, %v2293
      %v2296 = vsel %vm2154, %v2288, %v2295
      %v2297 = vrot.slane %v2292, 4
      %v2298 = vunpack.c.l.b16 %v2161
      %v2299 = vunpack.c.h.b16 %v2161
      %v2300 = vunpack.c.l.b16 0
      %v2301 = vunpack.c.h.b16 0
      %vm2302 = vcmp.ne.s32.totalorder %v2298, %v2300
      %vm2303 = vcmp.ne.s32.totalorder %v2299, %v2301
      %vm2304 = vmpackc.low %vm2303, %vm2302
      %v2305 = vunpack.c.l.b16 %v2170
      %v2306 = vunpack.c.h.b16 %v2170
      %v2307 = vunpack.c.l.b16 0
      %v2308 = vunpack.c.h.b16 0
      %vm2309 = vcmp.ne.s32.totalorder %v2305, %v2307
      %vm2310 = vcmp.ne.s32.totalorder %v2306, %v2308
      %vm2311 = vmpackc.low %vm2310, %vm2309
      %v2312 = vunpack.c.l.b16 %v2179
      %v2313 = vunpack.c.h.b16 %v2179
      %v2314 = vunpack.c.l.b16 0
      %v2315 = vunpack.c.h.b16 0
      %vm2316 = vcmp.ne.s32.totalorder %v2312, %v2314
      %vm2317 = vcmp.ne.s32.totalorder %v2313, %v2315
      %vm2318 = vmpackc.low %vm2317, %vm2316
      %v2319 = vunpack.c.l.b16 %v2188
      %v2320 = vunpack.c.h.b16 %v2188
      %v2321 = vunpack.c.l.b16 0
      %v2322 = vunpack.c.h.b16 0
      %vm2323 = vcmp.ne.s32.totalorder %v2319, %v2321
      %vm2324 = vcmp.ne.s32.totalorder %v2320, %v2322
      %vm2325 = vmpackc.low %vm2324, %vm2323
      %v2326 = vunpack.c.l.b16 %v2197
      %v2327 = vunpack.c.h.b16 %v2197
      %v2328 = vunpack.c.l.b16 0
      %v2329 = vunpack.c.h.b16 0
      %vm2330 = vcmp.ne.s32.totalorder %v2326, %v2328
      %vm2331 = vcmp.ne.s32.totalorder %v2327, %v2329
      %vm2332 = vmpackc.low %vm2331, %vm2330
      %v2333 = vunpack.c.l.b16 %v2206
      %v2334 = vunpack.c.h.b16 %v2206
      %v2335 = vunpack.c.l.b16 0
      %v2336 = vunpack.c.h.b16 0
      %vm2337 = vcmp.ne.s32.totalorder %v2333, %v2335
      %vm2338 = vcmp.ne.s32.totalorder %v2334, %v2336
      %vm2339 = vmpackc.low %vm2338, %vm2337
      %v2340 = vunpack.c.l.b16 %v2215
      %v2341 = vunpack.c.h.b16 %v2215
      %v2342 = vunpack.c.l.b16 0
      %v2343 = vunpack.c.h.b16 0
      %vm2344 = vcmp.ne.s32.totalorder %v2340, %v2342
      %vm2345 = vcmp.ne.s32.totalorder %v2341, %v2343
      %vm2346 = vmpackc.low %vm2345, %vm2344
      %v2347 = vunpack.c.l.b16 %v2224
      %v2348 = vunpack.c.h.b16 %v2224
      %v2349 = vunpack.c.l.b16 0
      %v2350 = vunpack.c.h.b16 0
      %vm2351 = vcmp.ne.s32.totalorder %v2347, %v2349
      %vm2352 = vcmp.ne.s32.totalorder %v2348, %v2350
      %vm2353 = vmpackc.low %vm2352, %vm2351
      %v2354 = vunpack.c.l.b16 %v2233
      %v2355 = vunpack.c.h.b16 %v2233
      %v2356 = vunpack.c.l.b16 0
      %v2357 = vunpack.c.h.b16 0
      %vm2358 = vcmp.ne.s32.totalorder %v2354, %v2356
      %vm2359 = vcmp.ne.s32.totalorder %v2355, %v2357
      %vm2360 = vmpackc.low %vm2359, %vm2358
      %v2361 = vunpack.c.l.b16 %v2242
      %v2362 = vunpack.c.h.b16 %v2242
      %v2363 = vunpack.c.l.b16 0
      %v2364 = vunpack.c.h.b16 0
      %vm2365 = vcmp.ne.s32.totalorder %v2361, %v2363
      %vm2366 = vcmp.ne.s32.totalorder %v2362, %v2364
      %vm2367 = vmpackc.low %vm2366, %vm2365
      %v2368 = vunpack.c.l.b16 %v2251
      %v2369 = vunpack.c.h.b16 %v2251
      %v2370 = vunpack.c.l.b16 0
      %v2371 = vunpack.c.h.b16 0
      %vm2372 = vcmp.ne.s32.totalorder %v2368, %v2370
      %vm2373 = vcmp.ne.s32.totalorder %v2369, %v2371
      %vm2374 = vmpackc.low %vm2373, %vm2372
      %v2375 = vunpack.c.l.b16 %v2260
      %v2376 = vunpack.c.h.b16 %v2260
      %v2377 = vunpack.c.l.b16 0
      %v2378 = vunpack.c.h.b16 0
      %vm2379 = vcmp.ne.s32.totalorder %v2375, %v2377
      %vm2380 = vcmp.ne.s32.totalorder %v2376, %v2378
      %vm2381 = vmpackc.low %vm2380, %vm2379
      %v2382 = vunpack.c.l.b16 %v2269
      %v2383 = vunpack.c.h.b16 %v2269
      %v2384 = vunpack.c.l.b16 0
      %v2385 = vunpack.c.h.b16 0
      %vm2386 = vcmp.ne.s32.totalorder %v2382, %v2384
      %vm2387 = vcmp.ne.s32.totalorder %v2383, %v2385
      %vm2388 = vmpackc.low %vm2387, %vm2386
      %v2389 = vunpack.c.l.b16 %v2278
      %v2390 = vunpack.c.h.b16 %v2278
      %v2391 = vunpack.c.l.b16 0
      %v2392 = vunpack.c.h.b16 0
      %vm2393 = vcmp.ne.s32.totalorder %v2389, %v2391
      %vm2394 = vcmp.ne.s32.totalorder %v2390, %v2392
      %vm2395 = vmpackc.low %vm2394, %vm2393
      %v2396 = vunpack.c.l.b16 %v2287
      %v2397 = vunpack.c.h.b16 %v2287
      %v2398 = vunpack.c.l.b16 0
      %v2399 = vunpack.c.h.b16 0
      %vm2400 = vcmp.ne.s32.totalorder %v2396, %v2398
      %vm2401 = vcmp.ne.s32.totalorder %v2397, %v2399
      %vm2402 = vmpackc.low %vm2401, %vm2400
      %v2403 = vunpack.c.l.b16 %v2296
      %v2404 = vunpack.c.h.b16 %v2296
      %v2405 = vunpack.c.l.b16 0
      %v2406 = vunpack.c.h.b16 0
      %vm2407 = vcmp.ne.s32.totalorder %v2403, %v2405
      %vm2408 = vcmp.ne.s32.totalorder %v2404, %v2406
      %vm2409 = vmpackc.low %vm2408, %vm2407
      %v2410 = vunpack.c.l.b16 %v2297
      %v2411 = vunpack.c.h.b16 %v2297
      %v2412 = vunpack.c.l.b16 0
      %v2413 = vunpack.c.h.b16 0
      %vm2414 = vcmp.ne.s32.totalorder %v2410, %v2412
      %vm2415 = vcmp.ne.s32.totalorder %v2411, %v2413
      %vm2416 = vmpackc.low %vm2415, %vm2414
      %v2417 = vsel %vm2304, %v2071, 0
      %v2418 = vsel %vm2311, %v2072, 0
      %v2419 = vsel %vm2318, %v2073, 0
      %v2420 = vsel %vm2325, %v2074, 0
      %v2421 = vsel %vm2332, %v2075, 0
      %v2422 = vsel %vm2339, %v2076, 0
      %v2423 = vsel %vm2346, %v2077, 0
      %v2424 = vsel %vm2353, %v2078, 0
      %v2425 = vsel %vm2360, %v2079, 0
      %v2426 = vsel %vm2367, %v2080, 0
      %v2427 = vsel %vm2374, %v2081, 0
      %v2428 = vsel %vm2381, %v2082, 0
      %v2429 = vsel %vm2388, %v2083, 0
      %v2430 = vsel %vm2395, %v2084, 0
      %v2431 = vsel %vm2402, %v2085, 0
      %v2432 = vsel %vm2409, %v2086, 0
      %v2433 = vsel %vm2416, %v2087, 0
      %s2434 = scalar_lea.vmem %s5, 2
      %v2435 = vld [vmem:[%s2434] sm:$0x1]
      %v2453 = vunpack.c.l.b16 %v2417
      %v2454 = vunpack.c.l.b16 %v2418
      %v2455 = vunpack.c.l.b16 %v2419
      %v2456 = vunpack.c.l.b16 %v2420
      %v2457 = vunpack.c.l.b16 %v2421
      %v2458 = vunpack.c.l.b16 %v2422
      %v2459 = vunpack.c.l.b16 %v2423
      %v2460 = vunpack.c.l.b16 %v2424
      %v2461 = vunpack.c.l.b16 %v2425
      %v2462 = vunpack.c.l.b16 %v2426
      %v2463 = vunpack.c.l.b16 %v2427
      %v2464 = vunpack.c.l.b16 %v2428
      %v2465 = vunpack.c.l.b16 %v2429
      %v2466 = vunpack.c.l.b16 %v2430
      %v2467 = vunpack.c.l.b16 %v2431
      %v2468 = vunpack.c.l.b16 %v2432
      %v2469 = vunpack.c.l.b16 %v2433
      %v2470 = vpack.c.b16 %v2454, %v2453
      %v2471 = vpack.c.b16 %v2456, %v2455
      %v2472 = vpack.c.b16 %v2458, %v2457
      %v2473 = vpack.c.b16 %v2460, %v2459
      %v2474 = vpack.c.b16 %v2462, %v2461
      %v2475 = vpack.c.b16 %v2464, %v2463
      %v2476 = vpack.c.b16 %v2466, %v2465
      %v2477 = vpack.c.b16 %v2468, %v2467
      %v2478 = vpack.c.b16 %v2469, %v2469
      %vm2479 = vsmask.f32 7424
      %v2481 = vshrl.u32 %v2470, 16
      %v2483 = vshll.u32 %v2470, 16
      %v2485 = vrot.slane %v2483, 1
      %v2486 = vor.u32 %v2481, %v2485
      %v2488 = vshll.u32 %v2471, 16
      %v2490 = vrot.slane %v2488, 1
      %v2491 = vsel %vm2479, %v2486, %v2490
      %v2492 = vshrl.u32 %v2471, 16
      %v2494 = vor.u32 %v2492, %v2490
      %v2496 = vshll.u32 %v2472, 16
      %v2498 = vrot.slane %v2496, 1
      %v2499 = vsel %vm2479, %v2494, %v2498
      %v2500 = vshrl.u32 %v2472, 16
      %v2502 = vor.u32 %v2500, %v2498
      %v2504 = vshll.u32 %v2473, 16
      %v2506 = vrot.slane %v2504, 1
      %v2507 = vsel %vm2479, %v2502, %v2506
      %v2508 = vshrl.u32 %v2473, 16
      %v2510 = vor.u32 %v2508, %v2506
      %v2512 = vshll.u32 %v2474, 16
      %v2514 = vrot.slane %v2512, 1
      %v2515 = vsel %vm2479, %v2510, %v2514
      %v2516 = vshrl.u32 %v2474, 16
      %v2518 = vor.u32 %v2516, %v2514
      %v2520 = vshll.u32 %v2475, 16
      %v2522 = vrot.slane %v2520, 1
      %v2523 = vsel %vm2479, %v2518, %v2522
      %v2524 = vshrl.u32 %v2475, 16
      %v2526 = vor.u32 %v2524, %v2522
      %v2528 = vshll.u32 %v2476, 16
      %v2530 = vrot.slane %v2528, 1
      %v2531 = vsel %vm2479, %v2526, %v2530
      %v2532 = vshrl.u32 %v2476, 16
      %v2534 = vor.u32 %v2532, %v2530
      %v2536 = vshll.u32 %v2477, 16
      %v2538 = vrot.slane %v2536, 1
      %v2539 = vsel %vm2479, %v2534, %v2538
      %v2540 = vshrl.u32 %v2477, 16
      %v2542 = vor.u32 %v2540, %v2538
      %v2544 = vshll.u32 %v2478, 16
      %v2546 = vrot.slane %v2544, 1
      %v2547 = vsel %vm2479, %v2542, %v2546
      %v2549 = vsel %vm1795, %v2491, 0
      %v2552 = vsel %vm1795, %v2499, 0
      %v2555 = vsel %vm1795, %v2507, 0
      %v2558 = vsel %vm1795, %v2515, 0
      %v2561 = vsel %vm1795, %v2523, 0
      %v2564 = vsel %vm1795, %v2531, 0
      %v2567 = vsel %vm1795, %v2539, 0
      %v2570 = vsel %vm1795, %v2547, 0
      %v2573 = vsel %vm1820, %v2435, 0
      %2575 = vmatpush.bf16.msra.mxu0 0
      %2576 = vmatpush.bf16.msra.mxu0 0
      %2577 = vmatpush.bf16.msra.mxu0 0
      %2578 = vmatpush.bf16.msra.mxu0 0
      %2579 = vmatpush.bf16.msra.mxu0 0
      %2580 = vmatpush.bf16.msra.mxu0 0
      %2581 = vmatpush.bf16.msra.mxu0 0
      %2582 = vmatpush.bf16.msra.mxu0 %v2573
      %2583 = vmatmul.bf16.gmra.mxu0 %v2549
      %v2584 = vpop.f32.mrf.mxu0
      %v2585 = vadd.f32 0.0, %v2584
      %v2586 = vpop.f32.mrf.mxu0
      %v2587 = vadd.f32 0.0, %v2586
      %2588 = vmatmul.bf16.gmra.mxu0 %v2552
      %v2589 = vpop.f32.mrf.mxu0
      %v2590 = vadd.f32 0.0, %v2589
      %v2591 = vpop.f32.mrf.mxu0
      %v2592 = vadd.f32 0.0, %v2591
      %2593 = vmatmul.bf16.gmra.mxu0 %v2555
      %v2594 = vpop.f32.mrf.mxu0
      %v2595 = vadd.f32 0.0, %v2594
      %v2596 = vpop.f32.mrf.mxu0
      %v2597 = vadd.f32 0.0, %v2596
      %2598 = vmatmul.bf16.gmra.mxu0 %v2558
      %v2599 = vpop.f32.mrf.mxu0
      %v2600 = vadd.f32 0.0, %v2599
      %v2601 = vpop.f32.mrf.mxu0
      %v2602 = vadd.f32 0.0, %v2601
      %2603 = vmatmul.bf16.gmra.mxu0 %v2561
      %v2604 = vpop.f32.mrf.mxu0
      %v2605 = vadd.f32 0.0, %v2604
      %v2606 = vpop.f32.mrf.mxu0
      %v2607 = vadd.f32 0.0, %v2606
      %2608 = vmatmul.bf16.gmra.mxu0 %v2564
      %v2609 = vpop.f32.mrf.mxu0
      %v2610 = vadd.f32 0.0, %v2609
      %v2611 = vpop.f32.mrf.mxu0
      %v2612 = vadd.f32 0.0, %v2611
      %2613 = vmatmul.bf16.gmra.mxu0 %v2567
      %v2614 = vpop.f32.mrf.mxu0
      %v2615 = vadd.f32 0.0, %v2614
      %v2616 = vpop.f32.mrf.mxu0
      %v2617 = vadd.f32 0.0, %v2616
      %2618 = vmatmul.bf16.gmra.mxu0 %v2570
      %v2619 = vpop.f32.mrf.mxu0
      %v2620 = vadd.f32 0.0, %v2619
      %v2621 = vpop.f32.mrf.mxu0
      %v2622 = vadd.f32 0.0, %v2621
      %2623 = vdwg.mxu0
      %v2624 = vld [vmem:[#allocation3] sm:$0xff]
      %v2625 = vld [vmem:[#allocation3 + $0x8] sm:$0xff]
      %v2626 = vld [vmem:[#allocation3 + $0x10] sm:$0xff]
      %v2627 = vld [vmem:[#allocation3 + $0x18] sm:$0xff]
      %v2628 = vld [vmem:[#allocation3 + $0x20] sm:$0xff]
      %v2629 = vld [vmem:[#allocation3 + $0x28] sm:$0xff]
      %v2630 = vld [vmem:[#allocation3 + $0x30] sm:$0xff]
      %v2631 = vld [vmem:[#allocation3 + $0x38] sm:$0xff]
      %v2632 = vld [vmem:[#allocation3 + $0x40] sm:$0xff]
      %v2633 = vld [vmem:[#allocation3 + $0x48] sm:$0xff]
      %v2634 = vld [vmem:[#allocation3 + $0x50] sm:$0xff]
      %v2635 = vld [vmem:[#allocation3 + $0x58] sm:$0xff]
      %v2636 = vld [vmem:[#allocation3 + $0x60] sm:$0xff]
      %v2637 = vld [vmem:[#allocation3 + $0x68] sm:$0xff]
      %v2638 = vld [vmem:[#allocation3 + $0x70] sm:$0xff]
      %v2639 = vld [vmem:[#allocation3 + $0x78] sm:$0xff]
      %v2640 = vadd.f32 %v2624, %v2585
      %v2641 = vadd.f32 %v2625, %v2587
      %v2642 = vadd.f32 %v2626, %v2590
      %v2643 = vadd.f32 %v2627, %v2592
      %v2644 = vadd.f32 %v2628, %v2595
      %v2645 = vadd.f32 %v2629, %v2597
      %v2646 = vadd.f32 %v2630, %v2600
      %v2647 = vadd.f32 %v2631, %v2602
      %v2648 = vadd.f32 %v2632, %v2605
      %v2649 = vadd.f32 %v2633, %v2607
      %v2650 = vadd.f32 %v2634, %v2610
      %v2651 = vadd.f32 %v2635, %v2612
      %v2652 = vadd.f32 %v2636, %v2615
      %v2653 = vadd.f32 %v2637, %v2617
      %v2654 = vadd.f32 %v2638, %v2620
      %v2655 = vadd.f32 %v2639, %v2622
      %2656 = vst.msk [vmem:[#allocation3] sm:$0xff] %vm481, %v2640
      %2657 = vst.msk [vmem:[#allocation3 + $0x8] sm:$0xff] %vm481, %v2641
      %2658 = vst.msk [vmem:[#allocation3 + $0x10] sm:$0xff] %vm481, %v2642
      %2659 = vst.msk [vmem:[#allocation3 + $0x18] sm:$0xff] %vm481, %v2643
      %2660 = vst.msk [vmem:[#allocation3 + $0x20] sm:$0xff] %vm481, %v2644
      %2661 = vst.msk [vmem:[#allocation3 + $0x28] sm:$0xff] %vm481, %v2645
      %2662 = vst.msk [vmem:[#allocation3 + $0x30] sm:$0xff] %vm481, %v2646
      %2663 = vst.msk [vmem:[#allocation3 + $0x38] sm:$0xff] %vm481, %v2647
      %2664 = vst.msk [vmem:[#allocation3 + $0x40] sm:$0xff] %vm481, %v2648
      %2665 = vst.msk [vmem:[#allocation3 + $0x48] sm:$0xff] %vm481, %v2649
      %2666 = vst.msk [vmem:[#allocation3 + $0x50] sm:$0xff] %vm481, %v2650
      %2667 = vst.msk [vmem:[#allocation3 + $0x58] sm:$0xff] %vm481, %v2651
      %2668 = vst.msk [vmem:[#allocation3 + $0x60] sm:$0xff] %vm481, %v2652
      %2669 = vst.msk [vmem:[#allocation3 + $0x68] sm:$0xff] %vm481, %v2653
      %2670 = vst.msk [vmem:[#allocation3 + $0x70] sm:$0xff] %vm481, %v2654
      %2671 = vst.msk [vmem:[#allocation3 + $0x78] sm:$0xff] %vm481, %v2655
      %v2672 = vld [vmem:[#allocation2 + $0x8] sm:$0x8]
      %v2673 = vld [vmem:[#allocation2 + $0xc] sm:$0xf]
      %v2674 = vld [vmem:[#allocation2 + $0x10] sm:$0xf]
      %v2675 = vld [vmem:[#allocation2 + $0x14] sm:$0xf]
      %v2676 = vld [vmem:[#allocation2 + $0x18] sm:$0xf]
      %v2677 = vld [vmem:[#allocation2 + $0x1c] sm:$0xf]
      %v2678 = vld [vmem:[#allocation2 + $0x20] sm:$0xf]
      %v2679 = vld [vmem:[#allocation2 + $0x24] sm:$0xf]
      %v2680 = vld [vmem:[#allocation2 + $0x28] sm:$0xf]
      %v2681 = vld [vmem:[#allocation2 + $0x2c] sm:$0xf]
      %v2682 = vld [vmem:[#allocation2 + $0x30] sm:$0xf]
      %v2683 = vld [vmem:[#allocation2 + $0x34] sm:$0xf]
      %v2684 = vld [vmem:[#allocation2 + $0x38] sm:$0xf]
      %v2685 = vld [vmem:[#allocation2 + $0x3c] sm:$0xf]
      %v2686 = vld [vmem:[#allocation2 + $0x40] sm:$0xf]
      %v2687 = vld [vmem:[#allocation2 + $0x44] sm:$0xf]
      %v2688 = vld [vmem:[#allocation2 + $0x48] sm:$0xf]
      %v2689 = vsel %vm1540, %v2672, 0
      %v2690 = vsel %vm1547, %v2673, 0
      %v2691 = vsel %vm1554, %v2674, 0
      %v2692 = vsel %vm1561, %v2675, 0
      %v2693 = vsel %vm1568, %v2676, 0
      %v2694 = vsel %vm1575, %v2677, 0
      %v2695 = vsel %vm1582, %v2678, 0
      %v2696 = vsel %vm1589, %v2679, 0
      %v2697 = vsel %vm1596, %v2680, 0
      %v2698 = vsel %vm1603, %v2681, 0
      %v2699 = vsel %vm1610, %v2682, 0
      %v2700 = vsel %vm1617, %v2683, 0
      %v2701 = vsel %vm1624, %v2684, 0
      %v2702 = vsel %vm1631, %v2685, 0
      %v2703 = vsel %vm1638, %v2686, 0
      %v2704 = vsel %vm1645, %v2687, 0
      %v2705 = vsel %vm1652, %v2688, 0
      %s2706 = scalar_lea.vmem %s5, 3
      %v2707 = vld [vmem:[%s2706] sm:$0x1]
      %v2725 = vunpack.c.l.b16 %v2689
      %v2726 = vunpack.c.l.b16 %v2690
      %v2727 = vunpack.c.l.b16 %v2691
      %v2728 = vunpack.c.l.b16 %v2692
      %v2729 = vunpack.c.l.b16 %v2693
      %v2730 = vunpack.c.l.b16 %v2694
      %v2731 = vunpack.c.l.b16 %v2695
      %v2732 = vunpack.c.l.b16 %v2696
      %v2733 = vunpack.c.l.b16 %v2697
      %v2734 = vunpack.c.l.b16 %v2698
      %v2735 = vunpack.c.l.b16 %v2699
      %v2736 = vunpack.c.l.b16 %v2700
      %v2737 = vunpack.c.l.b16 %v2701
      %v2738 = vunpack.c.l.b16 %v2702
      %v2739 = vunpack.c.l.b16 %v2703
      %v2740 = vunpack.c.l.b16 %v2704
      %v2741 = vunpack.c.l.b16 %v2705
      %v2742 = vpack.c.b16 %v2726, %v2725
      %v2743 = vpack.c.b16 %v2728, %v2727
      %v2744 = vpack.c.b16 %v2730, %v2729
      %v2745 = vpack.c.b16 %v2732, %v2731
      %v2746 = vpack.c.b16 %v2734, %v2733
      %v2747 = vpack.c.b16 %v2736, %v2735
      %v2748 = vpack.c.b16 %v2738, %v2737
      %v2749 = vpack.c.b16 %v2740, %v2739
      %v2750 = vpack.c.b16 %v2741, %v2741
      %v2752 = vshrl.u32 %v2742, 16
      %v2754 = vrot.slane %v2752, 3
      %v2755 = vshll.u32 %v2742, 16
      %v2757 = vrot.slane %v2755, 4
      %v2758 = vor.u32 %v2754, %v2757
      %v2760 = vshrl.u32 %v2743, 16
      %v2762 = vrot.slane %v2760, 3
      %v2763 = vshll.u32 %v2743, 16
      %v2765 = vrot.slane %v2763, 4
      %v2766 = vor.u32 %v2762, %v2765
      %v2767 = vsel %vm1714, %v2758, %v2766
      %v2769 = vshrl.u32 %v2744, 16
      %v2771 = vrot.slane %v2769, 3
      %v2772 = vshll.u32 %v2744, 16
      %v2774 = vrot.slane %v2772, 4
      %v2775 = vor.u32 %v2771, %v2774
      %v2776 = vsel %vm1714, %v2766, %v2775
      %v2778 = vshrl.u32 %v2745, 16
      %v2780 = vrot.slane %v2778, 3
      %v2781 = vshll.u32 %v2745, 16
      %v2783 = vrot.slane %v2781, 4
      %v2784 = vor.u32 %v2780, %v2783
      %v2785 = vsel %vm1714, %v2775, %v2784
      %v2787 = vshrl.u32 %v2746, 16
      %v2789 = vrot.slane %v2787, 3
      %v2790 = vshll.u32 %v2746, 16
      %v2792 = vrot.slane %v2790, 4
      %v2793 = vor.u32 %v2789, %v2792
      %v2794 = vsel %vm1714, %v2784, %v2793
      %v2796 = vshrl.u32 %v2747, 16
      %v2798 = vrot.slane %v2796, 3
      %v2799 = vshll.u32 %v2747, 16
      %v2801 = vrot.slane %v2799, 4
      %v2802 = vor.u32 %v2798, %v2801
      %v2803 = vsel %vm1714, %v2793, %v2802
      %v2805 = vshrl.u32 %v2748, 16
      %v2807 = vrot.slane %v2805, 3
      %v2808 = vshll.u32 %v2748, 16
      %v2810 = vrot.slane %v2808, 4
      %v2811 = vor.u32 %v2807, %v2810
      %v2812 = vsel %vm1714, %v2802, %v2811
      %v2814 = vshrl.u32 %v2749, 16
      %v2816 = vrot.slane %v2814, 3
      %v2817 = vshll.u32 %v2749, 16
      %v2819 = vrot.slane %v2817, 4
      %v2820 = vor.u32 %v2816, %v2819
      %v2821 = vsel %vm1714, %v2811, %v2820
      %v2823 = vshrl.u32 %v2750, 16
      %v2825 = vrot.slane %v2823, 3
      %v2826 = vshll.u32 %v2750, 16
      %v2828 = vrot.slane %v2826, 4
      %v2829 = vor.u32 %v2825, %v2828
      %v2830 = vsel %vm1714, %v2820, %v2829
      %v2832 = vsel %vm1795, %v2767, 0
      %v2835 = vsel %vm1795, %v2776, 0
      %v2838 = vsel %vm1795, %v2785, 0
      %v2841 = vsel %vm1795, %v2794, 0
      %v2844 = vsel %vm1795, %v2803, 0
      %v2847 = vsel %vm1795, %v2812, 0
      %v2850 = vsel %vm1795, %v2821, 0
      %v2853 = vsel %vm1795, %v2830, 0
      %v2856 = vsel %vm1820, %v2707, 0
      %2858 = vmatpush.bf16.msra.mxu0 0
      %2859 = vmatpush.bf16.msra.mxu0 0
      %2860 = vmatpush.bf16.msra.mxu0 0
      %2861 = vmatpush.bf16.msra.mxu0 0
      %2862 = vmatpush.bf16.msra.mxu0 0
      %2863 = vmatpush.bf16.msra.mxu0 0
      %2864 = vmatpush.bf16.msra.mxu0 0
      %2865 = vmatpush.bf16.msra.mxu0 %v2856
      %2866 = vmatmul.bf16.gmra.mxu0 %v2832
      %v2867 = vpop.f32.mrf.mxu0
      %v2868 = vadd.f32 0.0, %v2867
      %v2869 = vpop.f32.mrf.mxu0
      %v2870 = vadd.f32 0.0, %v2869
      %2871 = vmatmul.bf16.gmra.mxu0 %v2835
      %v2872 = vpop.f32.mrf.mxu0
      %v2873 = vadd.f32 0.0, %v2872
      %v2874 = vpop.f32.mrf.mxu0
      %v2875 = vadd.f32 0.0, %v2874
      %2876 = vmatmul.bf16.gmra.mxu0 %v2838
      %v2877 = vpop.f32.mrf.mxu0
      %v2878 = vadd.f32 0.0, %v2877
      %v2879 = vpop.f32.mrf.mxu0
      %v2880 = vadd.f32 0.0, %v2879
      %2881 = vmatmul.bf16.gmra.mxu0 %v2841
      %v2882 = vpop.f32.mrf.mxu0
      %v2883 = vadd.f32 0.0, %v2882
      %v2884 = vpop.f32.mrf.mxu0
      %v2885 = vadd.f32 0.0, %v2884
      %2886 = vmatmul.bf16.gmra.mxu0 %v2844
      %v2887 = vpop.f32.mrf.mxu0
      %v2888 = vadd.f32 0.0, %v2887
      %v2889 = vpop.f32.mrf.mxu0
      %v2890 = vadd.f32 0.0, %v2889
      %2891 = vmatmul.bf16.gmra.mxu0 %v2847
      %v2892 = vpop.f32.mrf.mxu0
      %v2893 = vadd.f32 0.0, %v2892
      %v2894 = vpop.f32.mrf.mxu0
      %v2895 = vadd.f32 0.0, %v2894
      %2896 = vmatmul.bf16.gmra.mxu0 %v2850
      %v2897 = vpop.f32.mrf.mxu0
      %v2898 = vadd.f32 0.0, %v2897
      %v2899 = vpop.f32.mrf.mxu0
      %v2900 = vadd.f32 0.0, %v2899
      %2901 = vmatmul.bf16.gmra.mxu0 %v2853
      %v2902 = vpop.f32.mrf.mxu0
      %v2903 = vadd.f32 0.0, %v2902
      %v2904 = vpop.f32.mrf.mxu0
      %v2905 = vadd.f32 0.0, %v2904
      %2906 = vdwg.mxu0
      %v2907 = vld [vmem:[#allocation3] sm:$0xff]
      %v2908 = vld [vmem:[#allocation3 + $0x8] sm:$0xff]
      %v2909 = vld [vmem:[#allocation3 + $0x10] sm:$0xff]
      %v2910 = vld [vmem:[#allocation3 + $0x18] sm:$0xff]
      %v2911 = vld [vmem:[#allocation3 + $0x20] sm:$0xff]
      %v2912 = vld [vmem:[#allocation3 + $0x28] sm:$0xff]
      %v2913 = vld [vmem:[#allocation3 + $0x30] sm:$0xff]
      %v2914 = vld [vmem:[#allocation3 + $0x38] sm:$0xff]
      %v2915 = vld [vmem:[#allocation3 + $0x40] sm:$0xff]
      %v2916 = vld [vmem:[#allocation3 + $0x48] sm:$0xff]
      %v2917 = vld [vmem:[#allocation3 + $0x50] sm:$0xff]
      %v2918 = vld [vmem:[#allocation3 + $0x58] sm:$0xff]
      %v2919 = vld [vmem:[#allocation3 + $0x60] sm:$0xff]
      %v2920 = vld [vmem:[#allocation3 + $0x68] sm:$0xff]
      %v2921 = vld [vmem:[#allocation3 + $0x70] sm:$0xff]
      %v2922 = vld [vmem:[#allocation3 + $0x78] sm:$0xff]
      %v2923 = vadd.f32 %v2907, %v2868
      %v2924 = vadd.f32 %v2908, %v2870
      %v2925 = vadd.f32 %v2909, %v2873
      %v2926 = vadd.f32 %v2910, %v2875
      %v2927 = vadd.f32 %v2911, %v2878
      %v2928 = vadd.f32 %v2912, %v2880
      %v2929 = vadd.f32 %v2913, %v2883
      %v2930 = vadd.f32 %v2914, %v2885
      %v2931 = vadd.f32 %v2915, %v2888
      %v2932 = vadd.f32 %v2916, %v2890
      %v2933 = vadd.f32 %v2917, %v2893
      %v2934 = vadd.f32 %v2918, %v2895
      %v2935 = vadd.f32 %v2919, %v2898
      %v2936 = vadd.f32 %v2920, %v2900
      %v2937 = vadd.f32 %v2921, %v2903
      %v2938 = vadd.f32 %v2922, %v2905
      %2939 = vst.msk [vmem:[#allocation3] sm:$0xff] %vm481, %v2923
      %2940 = vst.msk [vmem:[#allocation3 + $0x8] sm:$0xff] %vm481, %v2924
      %2941 = vst.msk [vmem:[#allocation3 + $0x10] sm:$0xff] %vm481, %v2925
      %2942 = vst.msk [vmem:[#allocation3 + $0x18] sm:$0xff] %vm481, %v2926
      %2943 = vst.msk [vmem:[#allocation3 + $0x20] sm:$0xff] %vm481, %v2927
      %2944 = vst.msk [vmem:[#allocation3 + $0x28] sm:$0xff] %vm481, %v2928
      %2945 = vst.msk [vmem:[#allocation3 + $0x30] sm:$0xff] %vm481, %v2929
      %2946 = vst.msk [vmem:[#allocation3 + $0x38] sm:$0xff] %vm481, %v2930
      %2947 = vst.msk [vmem:[#allocation3 + $0x40] sm:$0xff] %vm481, %v2931
      %2948 = vst.msk [vmem:[#allocation3 + $0x48] sm:$0xff] %vm481, %v2932
      %2949 = vst.msk [vmem:[#allocation3 + $0x50] sm:$0xff] %vm481, %v2933
      %2950 = vst.msk [vmem:[#allocation3 + $0x58] sm:$0xff] %vm481, %v2934
      %2951 = vst.msk [vmem:[#allocation3 + $0x60] sm:$0xff] %vm481, %v2935
      %2952 = vst.msk [vmem:[#allocation3 + $0x68] sm:$0xff] %vm481, %v2936
      %2953 = vst.msk [vmem:[#allocation3 + $0x70] sm:$0xff] %vm481, %v2937
      %2954 = vst.msk [vmem:[#allocation3 + $0x78] sm:$0xff] %vm481, %v2938
      %v2955 = vld [vmem:[#allocation2 + $0xc] sm:$0xf]
      %v2956 = vld [vmem:[#allocation2 + $0x10] sm:$0xf]
      %v2957 = vld [vmem:[#allocation2 + $0x14] sm:$0xf]
      %v2958 = vld [vmem:[#allocation2 + $0x18] sm:$0xf]
      %v2959 = vld [vmem:[#allocation2 + $0x1c] sm:$0xf]
      %v2960 = vld [vmem:[#allocation2 + $0x20] sm:$0xf]
      %v2961 = vld [vmem:[#allocation2 + $0x24] sm:$0xf]
      %v2962 = vld [vmem:[#allocation2 + $0x28] sm:$0xf]
      %v2963 = vld [vmem:[#allocation2 + $0x2c] sm:$0xf]
      %v2964 = vld [vmem:[#allocation2 + $0x30] sm:$0xf]
      %v2965 = vld [vmem:[#allocation2 + $0x34] sm:$0xf]
      %v2966 = vld [vmem:[#allocation2 + $0x38] sm:$0xf]
      %v2967 = vld [vmem:[#allocation2 + $0x3c] sm:$0xf]
      %v2968 = vld [vmem:[#allocation2 + $0x40] sm:$0xf]
      %v2969 = vld [vmem:[#allocation2 + $0x44] sm:$0xf]
      %v2970 = vld [vmem:[#allocation2 + $0x48] sm:$0xf]
      %s2971 = scalar_lea.vmem %s5, 4
      %v2972 = vld [vmem:[%s2971] sm:$0x1]
      %v2989 = vunpack.c.l.b16 %v2955
      %v2990 = vunpack.c.l.b16 %v2956
      %v2991 = vunpack.c.l.b16 %v2957
      %v2992 = vunpack.c.l.b16 %v2958
      %v2993 = vunpack.c.l.b16 %v2959
      %v2994 = vunpack.c.l.b16 %v2960
      %v2995 = vunpack.c.l.b16 %v2961
      %v2996 = vunpack.c.l.b16 %v2962
      %v2997 = vunpack.c.l.b16 %v2963
      %v2998 = vunpack.c.l.b16 %v2964
      %v2999 = vunpack.c.l.b16 %v2965
      %v3000 = vunpack.c.l.b16 %v2966
      %v3001 = vunpack.c.l.b16 %v2967
      %v3002 = vunpack.c.l.b16 %v2968
      %v3003 = vunpack.c.l.b16 %v2969
      %v3004 = vunpack.c.l.b16 %v2970
      %v3005 = vpack.c.b16 %v2990, %v2989
      %v3006 = vpack.c.b16 %v2992, %v2991
      %v3007 = vpack.c.b16 %v2994, %v2993
      %v3008 = vpack.c.b16 %v2996, %v2995
      %v3009 = vpack.c.b16 %v2998, %v2997
      %v3010 = vpack.c.b16 %v3000, %v2999
      %v3011 = vpack.c.b16 %v3002, %v3001
      %v3012 = vpack.c.b16 %v3004, %v3003
      %v3014 = vsel %vm1795, %v3005, 0
      %v3017 = vsel %vm1795, %v3006, 0
      %v3020 = vsel %vm1795, %v3007, 0
      %v3023 = vsel %vm1795, %v3008, 0
      %v3026 = vsel %vm1795, %v3009, 0
      %v3029 = vsel %vm1795, %v3010, 0
      %v3032 = vsel %vm1795, %v3011, 0
      %v3035 = vsel %vm1795, %v3012, 0
      %v3038 = vsel %vm1820, %v2972, 0
      %3040 = vmatpush.bf16.msra.mxu0 0
      %3041 = vmatpush.bf16.msra.mxu0 0
      %3042 = vmatpush.bf16.msra.mxu0 0
      %3043 = vmatpush.bf16.msra.mxu0 0
      %3044 = vmatpush.bf16.msra.mxu0 0
      %3045 = vmatpush.bf16.msra.mxu0 0
      %3046 = vmatpush.bf16.msra.mxu0 0
      %3047 = vmatpush.bf16.msra.mxu0 %v3038
      %3048 = vmatmul.bf16.gmra.mxu0 %v3014
      %v3049 = vpop.f32.mrf.mxu0
      %v3050 = vadd.f32 0.0, %v3049
      %v3051 = vpop.f32.mrf.mxu0
      %v3052 = vadd.f32 0.0, %v3051
      %3053 = vmatmul.bf16.gmra.mxu0 %v3017
      %v3054 = vpop.f32.mrf.mxu0
      %v3055 = vadd.f32 0.0, %v3054
      %v3056 = vpop.f32.mrf.mxu0
      %v3057 = vadd.f32 0.0, %v3056
      %3058 = vmatmul.bf16.gmra.mxu0 %v3020
      %v3059 = vpop.f32.mrf.mxu0
      %v3060 = vadd.f32 0.0, %v3059
      %v3061 = vpop.f32.mrf.mxu0
      %v3062 = vadd.f32 0.0, %v3061
      %3063 = vmatmul.bf16.gmra.mxu0 %v3023
      %v3064 = vpop.f32.mrf.mxu0
      %v3065 = vadd.f32 0.0, %v3064
      %v3066 = vpop.f32.mrf.mxu0
      %v3067 = vadd.f32 0.0, %v3066
      %3068 = vmatmul.bf16.gmra.mxu0 %v3026
      %v3069 = vpop.f32.mrf.mxu0
      %v3070 = vadd.f32 0.0, %v3069
      %v3071 = vpop.f32.mrf.mxu0
      %v3072 = vadd.f32 0.0, %v3071
      %3073 = vmatmul.bf16.gmra.mxu0 %v3029
      %v3074 = vpop.f32.mrf.mxu0
      %v3075 = vadd.f32 0.0, %v3074
      %v3076 = vpop.f32.mrf.mxu0
      %v3077 = vadd.f32 0.0, %v3076
      %3078 = vmatmul.bf16.gmra.mxu0 %v3032
      %v3079 = vpop.f32.mrf.mxu0
      %v3080 = vadd.f32 0.0, %v3079
      %v3081 = vpop.f32.mrf.mxu0
      %v3082 = vadd.f32 0.0, %v3081
      %3083 = vmatmul.bf16.gmra.mxu0 %v3035
      %v3084 = vpop.f32.mrf.mxu0
      %v3085 = vadd.f32 0.0, %v3084
      %v3086 = vpop.f32.mrf.mxu0
      %v3087 = vadd.f32 0.0, %v3086
      %3088 = vdwg.mxu0
      %v3089 = vld [vmem:[#allocation3] sm:$0xff]
      %v3090 = vld [vmem:[#allocation3 + $0x8] sm:$0xff]
      %v3091 = vld [vmem:[#allocation3 + $0x10] sm:$0xff]
      %v3092 = vld [vmem:[#allocation3 + $0x18] sm:$0xff]
      %v3093 = vld [vmem:[#allocation3 + $0x20] sm:$0xff]
      %v3094 = vld [vmem:[#allocation3 + $0x28] sm:$0xff]
      %v3095 = vld [vmem:[#allocation3 + $0x30] sm:$0xff]
      %v3096 = vld [vmem:[#allocation3 + $0x38] sm:$0xff]
      %v3097 = vld [vmem:[#allocation3 + $0x40] sm:$0xff]
      %v3098 = vld [vmem:[#allocation3 + $0x48] sm:$0xff]
      %v3099 = vld [vmem:[#allocation3 + $0x50] sm:$0xff]
      %v3100 = vld [vmem:[#allocation3 + $0x58] sm:$0xff]
      %v3101 = vld [vmem:[#allocation3 + $0x60] sm:$0xff]
      %v3102 = vld [vmem:[#allocation3 + $0x68] sm:$0xff]
      %v3103 = vld [vmem:[#allocation3 + $0x70] sm:$0xff]
      %v3104 = vld [vmem:[#allocation3 + $0x78] sm:$0xff]
      %v3105 = vadd.f32 %v3089, %v3050
      %v3106 = vadd.f32 %v3090, %v3052
      %v3107 = vadd.f32 %v3091, %v3055
      %v3108 = vadd.f32 %v3092, %v3057
      %v3109 = vadd.f32 %v3093, %v3060
      %v3110 = vadd.f32 %v3094, %v3062
      %v3111 = vadd.f32 %v3095, %v3065
      %v3112 = vadd.f32 %v3096, %v3067
      %v3113 = vadd.f32 %v3097, %v3070
      %v3114 = vadd.f32 %v3098, %v3072
      %v3115 = vadd.f32 %v3099, %v3075
      %v3116 = vadd.f32 %v3100, %v3077
      %v3117 = vadd.f32 %v3101, %v3080
      %v3118 = vadd.f32 %v3102, %v3082
      %v3119 = vadd.f32 %v3103, %v3085
      %v3120 = vadd.f32 %v3104, %v3087
      %3121 = vst.msk [vmem:[#allocation3] sm:$0xff] %vm481, %v3105
      %3122 = vst.msk [vmem:[#allocation3 + $0x8] sm:$0xff] %vm481, %v3106
      %3123 = vst.msk [vmem:[#allocation3 + $0x10] sm:$0xff] %vm481, %v3107
      %3124 = vst.msk [vmem:[#allocation3 + $0x18] sm:$0xff] %vm481, %v3108
      %3125 = vst.msk [vmem:[#allocation3 + $0x20] sm:$0xff] %vm481, %v3109
      %3126 = vst.msk [vmem:[#allocation3 + $0x28] sm:$0xff] %vm481, %v3110
      %3127 = vst.msk [vmem:[#allocation3 + $0x30] sm:$0xff] %vm481, %v3111
      %3128 = vst.msk [vmem:[#allocation3 + $0x38] sm:$0xff] %vm481, %v3112
      %3129 = vst.msk [vmem:[#allocation3 + $0x40] sm:$0xff] %vm481, %v3113
      %3130 = vst.msk [vmem:[#allocation3 + $0x48] sm:$0xff] %vm481, %v3114
      %3131 = vst.msk [vmem:[#allocation3 + $0x50] sm:$0xff] %vm481, %v3115
      %3132 = vst.msk [vmem:[#allocation3 + $0x58] sm:$0xff] %vm481, %v3116
      %3133 = vst.msk [vmem:[#allocation3 + $0x60] sm:$0xff] %vm481, %v3117
      %3134 = vst.msk [vmem:[#allocation3 + $0x68] sm:$0xff] %vm481, %v3118
      %3135 = vst.msk [vmem:[#allocation3 + $0x70] sm:$0xff] %vm481, %v3119
      %3136 = vst.msk [vmem:[#allocation3 + $0x78] sm:$0xff] %vm481, %v3120
      %v3137 = vld [vmem:[#allocation2 + $0xc] sm:$0xf]
      %v3138 = vld [vmem:[#allocation2 + $0x10] sm:$0xf]
      %v3139 = vld [vmem:[#allocation2 + $0x14] sm:$0xf]
      %v3140 = vld [vmem:[#allocation2 + $0x18] sm:$0xf]
      %v3141 = vld [vmem:[#allocation2 + $0x1c] sm:$0xf]
      %v3142 = vld [vmem:[#allocation2 + $0x20] sm:$0xf]
      %v3143 = vld [vmem:[#allocation2 + $0x24] sm:$0xf]
      %v3144 = vld [vmem:[#allocation2 + $0x28] sm:$0xf]
      %v3145 = vld [vmem:[#allocation2 + $0x2c] sm:$0xf]
      %v3146 = vld [vmem:[#allocation2 + $0x30] sm:$0xf]
      %v3147 = vld [vmem:[#allocation2 + $0x34] sm:$0xf]
      %v3148 = vld [vmem:[#allocation2 + $0x38] sm:$0xf]
      %v3149 = vld [vmem:[#allocation2 + $0x3c] sm:$0xf]
      %v3150 = vld [vmem:[#allocation2 + $0x40] sm:$0xf]
      %v3151 = vld [vmem:[#allocation2 + $0x44] sm:$0xf]
      %v3152 = vld [vmem:[#allocation2 + $0x48] sm:$0xf]
      %v3153 = vld [vmem:[#allocation2 + $0x4c] sm:$0x1]
      %v3154 = vsel %vm2304, %v3137, 0
      %v3155 = vsel %vm2311, %v3138, 0
      %v3156 = vsel %vm2318, %v3139, 0
      %v3157 = vsel %vm2325, %v3140, 0
      %v3158 = vsel %vm2332, %v3141, 0
      %v3159 = vsel %vm2339, %v3142, 0
      %v3160 = vsel %vm2346, %v3143, 0
      %v3161 = vsel %vm2353, %v3144, 0
      %v3162 = vsel %vm2360, %v3145, 0
      %v3163 = vsel %vm2367, %v3146, 0
      %v3164 = vsel %vm2374, %v3147, 0
      %v3165 = vsel %vm2381, %v3148, 0
      %v3166 = vsel %vm2388, %v3149, 0
      %v3167 = vsel %vm2395, %v3150, 0
      %v3168 = vsel %vm2402, %v3151, 0
      %v3169 = vsel %vm2409, %v3152, 0
      %v3170 = vsel %vm2416, %v3153, 0
      %s3171 = scalar_lea.vmem %s5, 5
      %v3172 = vld [vmem:[%s3171] sm:$0x1]
      %v3190 = vunpack.c.l.b16 %v3154
      %v3191 = vunpack.c.l.b16 %v3155
      %v3192 = vunpack.c.l.b16 %v3156
      %v3193 = vunpack.c.l.b16 %v3157
      %v3194 = vunpack.c.l.b16 %v3158
      %v3195 = vunpack.c.l.b16 %v3159
      %v3196 = vunpack.c.l.b16 %v3160
      %v3197 = vunpack.c.l.b16 %v3161
      %v3198 = vunpack.c.l.b16 %v3162
      %v3199 = vunpack.c.l.b16 %v3163
      %v3200 = vunpack.c.l.b16 %v3164
      %v3201 = vunpack.c.l.b16 %v3165
      %v3202 = vunpack.c.l.b16 %v3166
      %v3203 = vunpack.c.l.b16 %v3167
      %v3204 = vunpack.c.l.b16 %v3168
      %v3205 = vunpack.c.l.b16 %v3169
      %v3206 = vunpack.c.l.b16 %v3170
      %v3207 = vpack.c.b16 %v3191, %v3190
      %v3208 = vpack.c.b16 %v3193, %v3192
      %v3209 = vpack.c.b16 %v3195, %v3194
      %v3210 = vpack.c.b16 %v3197, %v3196
      %v3211 = vpack.c.b16 %v3199, %v3198
      %v3212 = vpack.c.b16 %v3201, %v3200
      %v3213 = vpack.c.b16 %v3203, %v3202
      %v3214 = vpack.c.b16 %v3205, %v3204
      %v3215 = vpack.c.b16 %v3206, %v3206
      %v3217 = vshrl.u32 %v3207, 16
      %v3219 = vshll.u32 %v3207, 16
      %v3221 = vrot.slane %v3219, 1
      %v3222 = vor.u32 %v3217, %v3221
      %v3224 = vshll.u32 %v3208, 16
      %v3226 = vrot.slane %v3224, 1
      %v3227 = vsel %vm2479, %v3222, %v3226
      %v3228 = vshrl.u32 %v3208, 16
      %v3230 = vor.u32 %v3228, %v3226
      %v3232 = vshll.u32 %v3209, 16
      %v3234 = vrot.slane %v3232, 1
      %v3235 = vsel %vm2479, %v3230, %v3234
      %v3236 = vshrl.u32 %v3209, 16
      %v3238 = vor.u32 %v3236, %v3234
      %v3240 = vshll.u32 %v3210, 16
      %v3242 = vrot.slane %v3240, 1
      %v3243 = vsel %vm2479, %v3238, %v3242
      %v3244 = vshrl.u32 %v3210, 16
      %v3246 = vor.u32 %v3244, %v3242
      %v3248 = vshll.u32 %v3211, 16
      %v3250 = vrot.slane %v3248, 1
      %v3251 = vsel %vm2479, %v3246, %v3250
      %v3252 = vshrl.u32 %v3211, 16
      %v3254 = vor.u32 %v3252, %v3250
      %v3256 = vshll.u32 %v3212, 16
      %v3258 = vrot.slane %v3256, 1
      %v3259 = vsel %vm2479, %v3254, %v3258
      %v3260 = vshrl.u32 %v3212, 16
      %v3262 = vor.u32 %v3260, %v3258
      %v3264 = vshll.u32 %v3213, 16
      %v3266 = vrot.slane %v3264, 1
      %v3267 = vsel %vm2479, %v3262, %v3266
      %v3268 = vshrl.u32 %v3213, 16
      %v3270 = vor.u32 %v3268, %v3266
      %v3272 = vshll.u32 %v3214, 16
      %v3274 = vrot.slane %v3272, 1
      %v3275 = vsel %vm2479, %v3270, %v3274
      %v3276 = vshrl.u32 %v3214, 16
      %v3278 = vor.u32 %v3276, %v3274
      %v3280 = vshll.u32 %v3215, 16
      %v3282 = vrot.slane %v3280, 1
      %v3283 = vsel %vm2479, %v3278, %v3282
      %v3285 = vsel %vm1795, %v3227, 0
      %v3288 = vsel %vm1795, %v3235, 0
      %v3291 = vsel %vm1795, %v3243, 0
      %v3294 = vsel %vm1795, %v3251, 0
      %v3297 = vsel %vm1795, %v3259, 0
      %v3300 = vsel %vm1795, %v3267, 0
      %v3303 = vsel %vm1795, %v3275, 0
      %v3306 = vsel %vm1795, %v3283, 0
      %v3309 = vsel %vm1820, %v3172, 0
      %3311 = vmatpush.bf16.msra.mxu0 0
      %3312 = vmatpush.bf16.msra.mxu0 0
      %3313 = vmatpush.bf16.msra.mxu0 0
      %3314 = vmatpush.bf16.msra.mxu0 0
      %3315 = vmatpush.bf16.msra.mxu0 0
      %3316 = vmatpush.bf16.msra.mxu0 0
      %3317 = vmatpush.bf16.msra.mxu0 0
      %3318 = vmatpush.bf16.msra.mxu0 %v3309
      %3319 = vmatmul.bf16.gmra.mxu0 %v3285
      %v3320 = vpop.f32.mrf.mxu0
      %v3321 = vadd.f32 0.0, %v3320
      %v3322 = vpop.f32.mrf.mxu0
      %v3323 = vadd.f32 0.0, %v3322
      %3324 = vmatmul.bf16.gmra.mxu0 %v3288
      %v3325 = vpop.f32.mrf.mxu0
      %v3326 = vadd.f32 0.0, %v3325
      %v3327 = vpop.f32.mrf.mxu0
      %v3328 = vadd.f32 0.0, %v3327
      %3329 = vmatmul.bf16.gmra.mxu0 %v3291
      %v3330 = vpop.f32.mrf.mxu0
      %v3331 = vadd.f32 0.0, %v3330
      %v3332 = vpop.f32.mrf.mxu0
      %v3333 = vadd.f32 0.0, %v3332
      %3334 = vmatmul.bf16.gmra.mxu0 %v3294
      %v3335 = vpop.f32.mrf.mxu0
      %v3336 = vadd.f32 0.0, %v3335
      %v3337 = vpop.f32.mrf.mxu0
      %v3338 = vadd.f32 0.0, %v3337
      %3339 = vmatmul.bf16.gmra.mxu0 %v3297
      %v3340 = vpop.f32.mrf.mxu0
      %v3341 = vadd.f32 0.0, %v3340
      %v3342 = vpop.f32.mrf.mxu0
      %v3343 = vadd.f32 0.0, %v3342
      %3344 = vmatmul.bf16.gmra.mxu0 %v3300
      %v3345 = vpop.f32.mrf.mxu0
      %v3346 = vadd.f32 0.0, %v3345
      %v3347 = vpop.f32.mrf.mxu0
      %v3348 = vadd.f32 0.0, %v3347
      %3349 = vmatmul.bf16.gmra.mxu0 %v3303
      %v3350 = vpop.f32.mrf.mxu0
      %v3351 = vadd.f32 0.0, %v3350
      %v3352 = vpop.f32.mrf.mxu0
      %v3353 = vadd.f32 0.0, %v3352
      %3354 = vmatmul.bf16.gmra.mxu0 %v3306
      %v3355 = vpop.f32.mrf.mxu0
      %v3356 = vadd.f32 0.0, %v3355
      %v3357 = vpop.f32.mrf.mxu0
      %v3358 = vadd.f32 0.0, %v3357
      %3359 = vdwg.mxu0
      %v3360 = vld [vmem:[#allocation3] sm:$0xff]
      %v3361 = vld [vmem:[#allocation3 + $0x8] sm:$0xff]
      %v3362 = vld [vmem:[#allocation3 + $0x10] sm:$0xff]
      %v3363 = vld [vmem:[#allocation3 + $0x18] sm:$0xff]
      %v3364 = vld [vmem:[#allocation3 + $0x20] sm:$0xff]
      %v3365 = vld [vmem:[#allocation3 + $0x28] sm:$0xff]
      %v3366 = vld [vmem:[#allocation3 + $0x30] sm:$0xff]
      %v3367 = vld [vmem:[#allocation3 + $0x38] sm:$0xff]
      %v3368 = vld [vmem:[#allocation3 + $0x40] sm:$0xff]
      %v3369 = vld [vmem:[#allocation3 + $0x48] sm:$0xff]
      %v3370 = vld [vmem:[#allocation3 + $0x50] sm:$0xff]
      %v3371 = vld [vmem:[#allocation3 + $0x58] sm:$0xff]
      %v3372 = vld [vmem:[#allocation3 + $0x60] sm:$0xff]
      %v3373 = vld [vmem:[#allocation3 + $0x68] sm:$0xff]
      %v3374 = vld [vmem:[#allocation3 + $0x70] sm:$0xff]
      %v3375 = vld [vmem:[#allocation3 + $0x78] sm:$0xff]
      %v3376 = vadd.f32 %v3360, %v3321
      %v3377 = vadd.f32 %v3361, %v3323
      %v3378 = vadd.f32 %v3362, %v3326
      %v3379 = vadd.f32 %v3363, %v3328
      %v3380 = vadd.f32 %v3364, %v3331
      %v3381 = vadd.f32 %v3365, %v3333
      %v3382 = vadd.f32 %v3366, %v3336
      %v3383 = vadd.f32 %v3367, %v3338
      %v3384 = vadd.f32 %v3368, %v3341
      %v3385 = vadd.f32 %v3369, %v3343
      %v3386 = vadd.f32 %v3370, %v3346
      %v3387 = vadd.f32 %v3371, %v3348
      %v3388 = vadd.f32 %v3372, %v3351
      %v3389 = vadd.f32 %v3373, %v3353
      %v3390 = vadd.f32 %v3374, %v3356
      %v3391 = vadd.f32 %v3375, %v3358
      %3392 = vst.msk [vmem:[#allocation3] sm:$0xff] %vm481, %v3376
      %3393 = vst.msk [vmem:[#allocation3 + $0x8] sm:$0xff] %vm481, %v3377
      %3394 = vst.msk [vmem:[#allocation3 + $0x10] sm:$0xff] %vm481, %v3378
      %3395 = vst.msk [vmem:[#allocation3 + $0x18] sm:$0xff] %vm481, %v3379
      %3396 = vst.msk [vmem:[#allocation3 + $0x20] sm:$0xff] %vm481, %v3380
      %3397 = vst.msk [vmem:[#allocation3 + $0x28] sm:$0xff] %vm481, %v3381
      %3398 = vst.msk [vmem:[#allocation3 + $0x30] sm:$0xff] %vm481, %v3382
      %3399 = vst.msk [vmem:[#allocation3 + $0x38] sm:$0xff] %vm481, %v3383
      %3400 = vst.msk [vmem:[#allocation3 + $0x40] sm:$0xff] %vm481, %v3384
      %3401 = vst.msk [vmem:[#allocation3 + $0x48] sm:$0xff] %vm481, %v3385
      %3402 = vst.msk [vmem:[#allocation3 + $0x50] sm:$0xff] %vm481, %v3386
      %3403 = vst.msk [vmem:[#allocation3 + $0x58] sm:$0xff] %vm481, %v3387
      %3404 = vst.msk [vmem:[#allocation3 + $0x60] sm:$0xff] %vm481, %v3388
      %3405 = vst.msk [vmem:[#allocation3 + $0x68] sm:$0xff] %vm481, %v3389
      %3406 = vst.msk [vmem:[#allocation3 + $0x70] sm:$0xff] %vm481, %v3390
      %3407 = vst.msk [vmem:[#allocation3 + $0x78] sm:$0xff] %vm481, %v3391
      %v3408 = vld [vmem:[#allocation2 + $0x10] sm:$0x8]
      %v3409 = vld [vmem:[#allocation2 + $0x14] sm:$0xf]
      %v3410 = vld [vmem:[#allocation2 + $0x18] sm:$0xf]
      %v3411 = vld [vmem:[#allocation2 + $0x1c] sm:$0xf]
      %v3412 = vld [vmem:[#allocation2 + $0x20] sm:$0xf]
      %v3413 = vld [vmem:[#allocation2 + $0x24] sm:$0xf]
      %v3414 = vld [vmem:[#allocation2 + $0x28] sm:$0xf]
      %v3415 = vld [vmem:[#allocation2 + $0x2c] sm:$0xf]
      %v3416 = vld [vmem:[#allocation2 + $0x30] sm:$0xf]
      %v3417 = vld [vmem:[#allocation2 + $0x34] sm:$0xf]
      %v3418 = vld [vmem:[#allocation2 + $0x38] sm:$0xf]
      %v3419 = vld [vmem:[#allocation2 + $0x3c] sm:$0xf]
      %v3420 = vld [vmem:[#allocation2 + $0x40] sm:$0xf]
      %v3421 = vld [vmem:[#allocation2 + $0x44] sm:$0xf]
      %v3422 = vld [vmem:[#allocation2 + $0x48] sm:$0xf]
      %v3423 = vld [vmem:[#allocation2 + $0x4c] sm:$0xf]
      %v3424 = vld [vmem:[#allocation2 + $0x50] sm:$0xf]
      %v3425 = vsel %vm1540, %v3408, 0
      %v3426 = vsel %vm1547, %v3409, 0
      %v3427 = vsel %vm1554, %v3410, 0
      %v3428 = vsel %vm1561, %v3411, 0
      %v3429 = vsel %vm1568, %v3412, 0
      %v3430 = vsel %vm1575, %v3413, 0
      %v3431 = vsel %vm1582, %v3414, 0
      %v3432 = vsel %vm1589, %v3415, 0
      %v3433 = vsel %vm1596, %v3416, 0
      %v3434 = vsel %vm1603, %v3417, 0
      %v3435 = vsel %vm1610, %v3418, 0
      %v3436 = vsel %vm1617, %v3419, 0
      %v3437 = vsel %vm1624, %v3420, 0
      %v3438 = vsel %vm1631, %v3421, 0
      %v3439 = vsel %vm1638, %v3422, 0
      %v3440 = vsel %vm1645, %v3423, 0
      %v3441 = vsel %vm1652, %v3424, 0
      %s3442 = scalar_lea.vmem %s5, 6
      %v3443 = vld [vmem:[%s3442] sm:$0x1]
      %v3461 = vunpack.c.l.b16 %v3425
      %v3462 = vunpack.c.l.b16 %v3426
      %v3463 = vunpack.c.l.b16 %v3427
      %v3464 = vunpack.c.l.b16 %v3428
      %v3465 = vunpack.c.l.b16 %v3429
      %v3466 = vunpack.c.l.b16 %v3430
      %v3467 = vunpack.c.l.b16 %v3431
      %v3468 = vunpack.c.l.b16 %v3432
      %v3469 = vunpack.c.l.b16 %v3433
      %v3470 = vunpack.c.l.b16 %v3434
      %v3471 = vunpack.c.l.b16 %v3435
      %v3472 = vunpack.c.l.b16 %v3436
      %v3473 = vunpack.c.l.b16 %v3437
      %v3474 = vunpack.c.l.b16 %v3438
      %v3475 = vunpack.c.l.b16 %v3439
      %v3476 = vunpack.c.l.b16 %v3440
      %v3477 = vunpack.c.l.b16 %v3441
      %v3478 = vpack.c.b16 %v3462, %v3461
      %v3479 = vpack.c.b16 %v3464, %v3463
      %v3480 = vpack.c.b16 %v3466, %v3465
      %v3481 = vpack.c.b16 %v3468, %v3467
      %v3482 = vpack.c.b16 %v3470, %v3469
      %v3483 = vpack.c.b16 %v3472, %v3471
      %v3484 = vpack.c.b16 %v3474, %v3473
      %v3485 = vpack.c.b16 %v3476, %v3475
      %v3486 = vpack.c.b16 %v3477, %v3477
      %v3488 = vshrl.u32 %v3478, 16
      %v3490 = vrot.slane %v3488, 3
      %v3491 = vshll.u32 %v3478, 16
      %v3493 = vrot.slane %v3491, 4
      %v3494 = vor.u32 %v3490, %v3493
      %v3496 = vshrl.u32 %v3479, 16
      %v3498 = vrot.slane %v3496, 3
      %v3499 = vshll.u32 %v3479, 16
      %v3501 = vrot.slane %v3499, 4
      %v3502 = vor.u32 %v3498, %v3501
      %v3503 = vsel %vm1714, %v3494, %v3502
      %v3505 = vshrl.u32 %v3480, 16
      %v3507 = vrot.slane %v3505, 3
      %v3508 = vshll.u32 %v3480, 16
      %v3510 = vrot.slane %v3508, 4
      %v3511 = vor.u32 %v3507, %v3510
      %v3512 = vsel %vm1714, %v3502, %v3511
      %v3514 = vshrl.u32 %v3481, 16
      %v3516 = vrot.slane %v3514, 3
      %v3517 = vshll.u32 %v3481, 16
      %v3519 = vrot.slane %v3517, 4
      %v3520 = vor.u32 %v3516, %v3519
      %v3521 = vsel %vm1714, %v3511, %v3520
      %v3523 = vshrl.u32 %v3482, 16
      %v3525 = vrot.slane %v3523, 3
      %v3526 = vshll.u32 %v3482, 16
      %v3528 = vrot.slane %v3526, 4
      %v3529 = vor.u32 %v3525, %v3528
      %v3530 = vsel %vm1714, %v3520, %v3529
      %v3532 = vshrl.u32 %v3483, 16
      %v3534 = vrot.slane %v3532, 3
      %v3535 = vshll.u32 %v3483, 16
      %v3537 = vrot.slane %v3535, 4
      %v3538 = vor.u32 %v3534, %v3537
      %v3539 = vsel %vm1714, %v3529, %v3538
      %v3541 = vshrl.u32 %v3484, 16
      %v3543 = vrot.slane %v3541, 3
      %v3544 = vshll.u32 %v3484, 16
      %v3546 = vrot.slane %v3544, 4
      %v3547 = vor.u32 %v3543, %v3546
      %v3548 = vsel %vm1714, %v3538, %v3547
      %v3550 = vshrl.u32 %v3485, 16
      %v3552 = vrot.slane %v3550, 3
      %v3553 = vshll.u32 %v3485, 16
      %v3555 = vrot.slane %v3553, 4
      %v3556 = vor.u32 %v3552, %v3555
      %v3557 = vsel %vm1714, %v3547, %v3556
      %v3559 = vshrl.u32 %v3486, 16
      %v3561 = vrot.slane %v3559, 3
      %v3562 = vshll.u32 %v3486, 16
      %v3564 = vrot.slane %v3562, 4
      %v3565 = vor.u32 %v3561, %v3564
      %v3566 = vsel %vm1714, %v3556, %v3565
      %v3568 = vsel %vm1795, %v3503, 0
      %v3571 = vsel %vm1795, %v3512, 0
      %v3574 = vsel %vm1795, %v3521, 0
      %v3577 = vsel %vm1795, %v3530, 0
      %v3580 = vsel %vm1795, %v3539, 0
      %v3583 = vsel %vm1795, %v3548, 0
      %v3586 = vsel %vm1795, %v3557, 0
      %v3589 = vsel %vm1795, %v3566, 0
      %v3592 = vsel %vm1820, %v3443, 0
      %3594 = vmatpush.bf16.msra.mxu0 0
      %3595 = vmatpush.bf16.msra.mxu0 0
      %3596 = vmatpush.bf16.msra.mxu0 0
      %3597 = vmatpush.bf16.msra.mxu0 0
      %3598 = vmatpush.bf16.msra.mxu0 0
      %3599 = vmatpush.bf16.msra.mxu0 0
      %3600 = vmatpush.bf16.msra.mxu0 0
      %3601 = vmatpush.bf16.msra.mxu0 %v3592
      %3602 = vmatmul.bf16.gmra.mxu0 %v3568
      %v3603 = vpop.f32.mrf.mxu0
      %v3604 = vadd.f32 0.0, %v3603
      %v3605 = vpop.f32.mrf.mxu0
      %v3606 = vadd.f32 0.0, %v3605
      %3607 = vmatmul.bf16.gmra.mxu0 %v3571
      %v3608 = vpop.f32.mrf.mxu0
      %v3609 = vadd.f32 0.0, %v3608
      %v3610 = vpop.f32.mrf.mxu0
      %v3611 = vadd.f32 0.0, %v3610
      %3612 = vmatmul.bf16.gmra.mxu0 %v3574
      %v3613 = vpop.f32.mrf.mxu0
      %v3614 = vadd.f32 0.0, %v3613
      %v3615 = vpop.f32.mrf.mxu0
      %v3616 = vadd.f32 0.0, %v3615
      %3617 = vmatmul.bf16.gmra.mxu0 %v3577
      %v3618 = vpop.f32.mrf.mxu0
      %v3619 = vadd.f32 0.0, %v3618
      %v3620 = vpop.f32.mrf.mxu0
      %v3621 = vadd.f32 0.0, %v3620
      %3622 = vmatmul.bf16.gmra.mxu0 %v3580
      %v3623 = vpop.f32.mrf.mxu0
      %v3624 = vadd.f32 0.0, %v3623
      %v3625 = vpop.f32.mrf.mxu0
      %v3626 = vadd.f32 0.0, %v3625
      %3627 = vmatmul.bf16.gmra.mxu0 %v3583
      %v3628 = vpop.f32.mrf.mxu0
      %v3629 = vadd.f32 0.0, %v3628
      %v3630 = vpop.f32.mrf.mxu0
      %v3631 = vadd.f32 0.0, %v3630
      %3632 = vmatmul.bf16.gmra.mxu0 %v3586
      %v3633 = vpop.f32.mrf.mxu0
      %v3634 = vadd.f32 0.0, %v3633
      %v3635 = vpop.f32.mrf.mxu0
      %v3636 = vadd.f32 0.0, %v3635
      %3637 = vmatmul.bf16.gmra.mxu0 %v3589
      %v3638 = vpop.f32.mrf.mxu0
      %v3639 = vadd.f32 0.0, %v3638
      %v3640 = vpop.f32.mrf.mxu0
      %v3641 = vadd.f32 0.0, %v3640
      %3642 = vdwg.mxu0
      %v3643 = vld [vmem:[#allocation3] sm:$0xff]
      %v3644 = vld [vmem:[#allocation3 + $0x8] sm:$0xff]
      %v3645 = vld [vmem:[#allocation3 + $0x10] sm:$0xff]
      %v3646 = vld [vmem:[#allocation3 + $0x18] sm:$0xff]
      %v3647 = vld [vmem:[#allocation3 + $0x20] sm:$0xff]
      %v3648 = vld [vmem:[#allocation3 + $0x28] sm:$0xff]
      %v3649 = vld [vmem:[#allocation3 + $0x30] sm:$0xff]
      %v3650 = vld [vmem:[#allocation3 + $0x38] sm:$0xff]
      %v3651 = vld [vmem:[#allocation3 + $0x40] sm:$0xff]
      %v3652 = vld [vmem:[#allocation3 + $0x48] sm:$0xff]
      %v3653 = vld [vmem:[#allocation3 + $0x50] sm:$0xff]
      %v3654 = vld [vmem:[#allocation3 + $0x58] sm:$0xff]
      %v3655 = vld [vmem:[#allocation3 + $0x60] sm:$0xff]
      %v3656 = vld [vmem:[#allocation3 + $0x68] sm:$0xff]
      %v3657 = vld [vmem:[#allocation3 + $0x70] sm:$0xff]
      %v3658 = vld [vmem:[#allocation3 + $0x78] sm:$0xff]
      %v3659 = vadd.f32 %v3643, %v3604
      %v3660 = vadd.f32 %v3644, %v3606
      %v3661 = vadd.f32 %v3645, %v3609
      %v3662 = vadd.f32 %v3646, %v3611
      %v3663 = vadd.f32 %v3647, %v3614
      %v3664 = vadd.f32 %v3648, %v3616
      %v3665 = vadd.f32 %v3649, %v3619
      %v3666 = vadd.f32 %v3650, %v3621
      %v3667 = vadd.f32 %v3651, %v3624
      %v3668 = vadd.f32 %v3652, %v3626
      %v3669 = vadd.f32 %v3653, %v3629
      %v3670 = vadd.f32 %v3654, %v3631
      %v3671 = vadd.f32 %v3655, %v3634
      %v3672 = vadd.f32 %v3656, %v3636
      %v3673 = vadd.f32 %v3657, %v3639
      %v3674 = vadd.f32 %v3658, %v3641
      %3675 = vst.msk [vmem:[#allocation3] sm:$0xff] %vm481, %v3659
      %3676 = vst.msk [vmem:[#allocation3 + $0x8] sm:$0xff] %vm481, %v3660
      %3677 = vst.msk [vmem:[#allocation3 + $0x10] sm:$0xff] %vm481, %v3661
      %3678 = vst.msk [vmem:[#allocation3 + $0x18] sm:$0xff] %vm481, %v3662
      %3679 = vst.msk [vmem:[#allocation3 + $0x20] sm:$0xff] %vm481, %v3663
      %3680 = vst.msk [vmem:[#allocation3 + $0x28] sm:$0xff] %vm481, %v3664
      %3681 = vst.msk [vmem:[#allocation3 + $0x30] sm:$0xff] %vm481, %v3665
      %3682 = vst.msk [vmem:[#allocation3 + $0x38] sm:$0xff] %vm481, %v3666
      %3683 = vst.msk [vmem:[#allocation3 + $0x40] sm:$0xff] %vm481, %v3667
      %3684 = vst.msk [vmem:[#allocation3 + $0x48] sm:$0xff] %vm481, %v3668
      %3685 = vst.msk [vmem:[#allocation3 + $0x50] sm:$0xff] %vm481, %v3669
      %3686 = vst.msk [vmem:[#allocation3 + $0x58] sm:$0xff] %vm481, %v3670
      %3687 = vst.msk [vmem:[#allocation3 + $0x60] sm:$0xff] %vm481, %v3671
      %3688 = vst.msk [vmem:[#allocation3 + $0x68] sm:$0xff] %vm481, %v3672
      %3689 = vst.msk [vmem:[#allocation3 + $0x70] sm:$0xff] %vm481, %v3673
      %3690 = vst.msk [vmem:[#allocation3 + $0x78] sm:$0xff] %vm481, %v3674
      %v3691 = vld [vmem:[#allocation2 + $0x14] sm:$0xf]
      %v3692 = vld [vmem:[#allocation2 + $0x18] sm:$0xf]
      %v3693 = vld [vmem:[#allocation2 + $0x1c] sm:$0xf]
      %v3694 = vld [vmem:[#allocation2 + $0x20] sm:$0xf]
      %v3695 = vld [vmem:[#allocation2 + $0x24] sm:$0xf]
      %v3696 = vld [vmem:[#allocation2 + $0x28] sm:$0xf]
      %v3697 = vld [vmem:[#allocation2 + $0x2c] sm:$0xf]
      %v3698 = vld [vmem:[#allocation2 + $0x30] sm:$0xf]
      %v3699 = vld [vmem:[#allocation2 + $0x34] sm:$0xf]
      %v3700 = vld [vmem:[#allocation2 + $0x38] sm:$0xf]
      %v3701 = vld [vmem:[#allocation2 + $0x3c] sm:$0xf]
      %v3702 = vld [vmem:[#allocation2 + $0x40] sm:$0xf]
      %v3703 = vld [vmem:[#allocation2 + $0x44] sm:$0xf]
      %v3704 = vld [vmem:[#allocation2 + $0x48] sm:$0xf]
      %v3705 = vld [vmem:[#allocation2 + $0x4c] sm:$0xf]
      %v3706 = vld [vmem:[#allocation2 + $0x50] sm:$0xf]
      %s3707 = scalar_lea.vmem %s5, 7
      %v3708 = vld [vmem:[%s3707] sm:$0x1]
      %v3725 = vunpack.c.l.b16 %v3691
      %v3726 = vunpack.c.l.b16 %v3692
      %v3727 = vunpack.c.l.b16 %v3693
      %v3728 = vunpack.c.l.b16 %v3694
      %v3729 = vunpack.c.l.b16 %v3695
      %v3730 = vunpack.c.l.b16 %v3696
      %v3731 = vunpack.c.l.b16 %v3697
      %v3732 = vunpack.c.l.b16 %v3698
      %v3733 = vunpack.c.l.b16 %v3699
      %v3734 = vunpack.c.l.b16 %v3700
      %v3735 = vunpack.c.l.b16 %v3701
      %v3736 = vunpack.c.l.b16 %v3702
      %v3737 = vunpack.c.l.b16 %v3703
      %v3738 = vunpack.c.l.b16 %v3704
      %v3739 = vunpack.c.l.b16 %v3705
      %v3740 = vunpack.c.l.b16 %v3706
      %v3741 = vpack.c.b16 %v3726, %v3725
      %v3742 = vpack.c.b16 %v3728, %v3727
      %v3743 = vpack.c.b16 %v3730, %v3729
      %v3744 = vpack.c.b16 %v3732, %v3731
      %v3745 = vpack.c.b16 %v3734, %v3733
      %v3746 = vpack.c.b16 %v3736, %v3735
      %v3747 = vpack.c.b16 %v3738, %v3737
      %v3748 = vpack.c.b16 %v3740, %v3739
      %v3750 = vsel %vm1795, %v3741, 0
      %v3753 = vsel %vm1795, %v3742, 0
      %v3756 = vsel %vm1795, %v3743, 0
      %v3759 = vsel %vm1795, %v3744, 0
      %v3762 = vsel %vm1795, %v3745, 0
      %v3765 = vsel %vm1795, %v3746, 0
      %v3768 = vsel %vm1795, %v3747, 0
      %v3771 = vsel %vm1795, %v3748, 0
      %v3774 = vsel %vm1820, %v3708, 0
      %3776 = vmatpush.bf16.msra.mxu0 0
      %3777 = vmatpush.bf16.msra.mxu0 0
      %3778 = vmatpush.bf16.msra.mxu0 0
      %3779 = vmatpush.bf16.msra.mxu0 0
      %3780 = vmatpush.bf16.msra.mxu0 0
      %3781 = vmatpush.bf16.msra.mxu0 0
      %3782 = vmatpush.bf16.msra.mxu0 0
      %3783 = vmatpush.bf16.msra.mxu0 %v3774
      %3784 = vmatmul.bf16.gmra.mxu0 %v3750
      %v3785 = vpop.f32.mrf.mxu0
      %v3786 = vadd.f32 0.0, %v3785
      %v3787 = vpop.f32.mrf.mxu0
      %v3788 = vadd.f32 0.0, %v3787
      %3789 = vmatmul.bf16.gmra.mxu0 %v3753
      %v3790 = vpop.f32.mrf.mxu0
      %v3791 = vadd.f32 0.0, %v3790
      %v3792 = vpop.f32.mrf.mxu0
      %v3793 = vadd.f32 0.0, %v3792
      %3794 = vmatmul.bf16.gmra.mxu0 %v3756
      %v3795 = vpop.f32.mrf.mxu0
      %v3796 = vadd.f32 0.0, %v3795
      %v3797 = vpop.f32.mrf.mxu0
      %v3798 = vadd.f32 0.0, %v3797
      %3799 = vmatmul.bf16.gmra.mxu0 %v3759
      %v3800 = vpop.f32.mrf.mxu0
      %v3801 = vadd.f32 0.0, %v3800
      %v3802 = vpop.f32.mrf.mxu0
      %v3803 = vadd.f32 0.0, %v3802
      %3804 = vmatmul.bf16.gmra.mxu0 %v3762
      %v3805 = vpop.f32.mrf.mxu0
      %v3806 = vadd.f32 0.0, %v3805
      %v3807 = vpop.f32.mrf.mxu0
      %v3808 = vadd.f32 0.0, %v3807
      %3809 = vmatmul.bf16.gmra.mxu0 %v3765
      %v3810 = vpop.f32.mrf.mxu0
      %v3811 = vadd.f32 0.0, %v3810
      %v3812 = vpop.f32.mrf.mxu0
      %v3813 = vadd.f32 0.0, %v3812
      %3814 = vmatmul.bf16.gmra.mxu0 %v3768
      %v3815 = vpop.f32.mrf.mxu0
      %v3816 = vadd.f32 0.0, %v3815
      %v3817 = vpop.f32.mrf.mxu0
      %v3818 = vadd.f32 0.0, %v3817
      %3819 = vmatmul.bf16.gmra.mxu0 %v3771
      %v3820 = vpop.f32.mrf.mxu0
      %v3821 = vadd.f32 0.0, %v3820
      %v3822 = vpop.f32.mrf.mxu0
      %v3823 = vadd.f32 0.0, %v3822
      %3824 = vdwg.mxu0
      %v3825 = vld [vmem:[#allocation3] sm:$0xff]
      %v3826 = vld [vmem:[#allocation3 + $0x8] sm:$0xff]
      %v3827 = vld [vmem:[#allocation3 + $0x10] sm:$0xff]
      %v3828 = vld [vmem:[#allocation3 + $0x18] sm:$0xff]
      %v3829 = vld [vmem:[#allocation3 + $0x20] sm:$0xff]
      %v3830 = vld [vmem:[#allocation3 + $0x28] sm:$0xff]
      %v3831 = vld [vmem:[#allocation3 + $0x30] sm:$0xff]
      %v3832 = vld [vmem:[#allocation3 + $0x38] sm:$0xff]
      %v3833 = vld [vmem:[#allocation3 + $0x40] sm:$0xff]
      %v3834 = vld [vmem:[#allocation3 + $0x48] sm:$0xff]
      %v3835 = vld [vmem:[#allocation3 + $0x50] sm:$0xff]
      %v3836 = vld [vmem:[#allocation3 + $0x58] sm:$0xff]
      %v3837 = vld [vmem:[#allocation3 + $0x60] sm:$0xff]
      %v3838 = vld [vmem:[#allocation3 + $0x68] sm:$0xff]
      %v3839 = vld [vmem:[#allocation3 + $0x70] sm:$0xff]
      %v3840 = vld [vmem:[#allocation3 + $0x78] sm:$0xff]
      %v3841 = vadd.f32 %v3825, %v3786
      %v3842 = vadd.f32 %v3826, %v3788
      %v3843 = vadd.f32 %v3827, %v3791
      %v3844 = vadd.f32 %v3828, %v3793
      %v3845 = vadd.f32 %v3829, %v3796
      %v3846 = vadd.f32 %v3830, %v3798
      %v3847 = vadd.f32 %v3831, %v3801
      %v3848 = vadd.f32 %v3832, %v3803
      %v3849 = vadd.f32 %v3833, %v3806
      %v3850 = vadd.f32 %v3834, %v3808
      %v3851 = vadd.f32 %v3835, %v3811
      %v3852 = vadd.f32 %v3836, %v3813
      %v3853 = vadd.f32 %v3837, %v3816
      %v3854 = vadd.f32 %v3838, %v3818
      %v3855 = vadd.f32 %v3839, %v3821
      %v3856 = vadd.f32 %v3840, %v3823
      %3857 = vst.msk [vmem:[#allocation3] sm:$0xff] %vm481, %v3841
      %3858 = vst.msk [vmem:[#allocation3 + $0x8] sm:$0xff] %vm481, %v3842
      %3859 = vst.msk [vmem:[#allocation3 + $0x10] sm:$0xff] %vm481, %v3843
      %3860 = vst.msk [vmem:[#allocation3 + $0x18] sm:$0xff] %vm481, %v3844
      %3861 = vst.msk [vmem:[#allocation3 + $0x20] sm:$0xff] %vm481, %v3845
      %3862 = vst.msk [vmem:[#allocation3 + $0x28] sm:$0xff] %vm481, %v3846
      %3863 = vst.msk [vmem:[#allocation3 + $0x30] sm:$0xff] %vm481, %v3847
      %3864 = vst.msk [vmem:[#allocation3 + $0x38] sm:$0xff] %vm481, %v3848
      %3865 = vst.msk [vmem:[#allocation3 + $0x40] sm:$0xff] %vm481, %v3849
      %3866 = vst.msk [vmem:[#allocation3 + $0x48] sm:$0xff] %vm481, %v3850
      %3867 = vst.msk [vmem:[#allocation3 + $0x50] sm:$0xff] %vm481, %v3851
      %3868 = vst.msk [vmem:[#allocation3 + $0x58] sm:$0xff] %vm481, %v3852
      %3869 = vst.msk [vmem:[#allocation3 + $0x60] sm:$0xff] %vm481, %v3853
      %3870 = vst.msk [vmem:[#allocation3 + $0x68] sm:$0xff] %vm481, %v3854
      %3871 = vst.msk [vmem:[#allocation3 + $0x70] sm:$0xff] %vm481, %v3855
      %3872 = vst.msk [vmem:[#allocation3 + $0x78] sm:$0xff] %vm481, %v3856
      %v3873 = vld [vmem:[#allocation2 + $0x14] sm:$0xf]
      %v3874 = vld [vmem:[#allocation2 + $0x18] sm:$0xf]
      %v3875 = vld [vmem:[#allocation2 + $0x1c] sm:$0xf]
      %v3876 = vld [vmem:[#allocation2 + $0x20] sm:$0xf]
      %v3877 = vld [vmem:[#allocation2 + $0x24] sm:$0xf]
      %v3878 = vld [vmem:[#allocation2 + $0x28] sm:$0xf]
      %v3879 = vld [vmem:[#allocation2 + $0x2c] sm:$0xf]
      %v3880 = vld [vmem:[#allocation2 + $0x30] sm:$0xf]
      %v3881 = vld [vmem:[#allocation2 + $0x34] sm:$0xf]
      %v3882 = vld [vmem:[#allocation2 + $0x38] sm:$0xf]
      %v3883 = vld [vmem:[#allocation2 + $0x3c] sm:$0xf]
      %v3884 = vld [vmem:[#allocation2 + $0x40] sm:$0xf]
      %v3885 = vld [vmem:[#allocation2 + $0x44] sm:$0xf]
      %v3886 = vld [vmem:[#allocation2 + $0x48] sm:$0xf]
      %v3887 = vld [vmem:[#allocation2 + $0x4c] sm:$0xf]
      %v3888 = vld [vmem:[#allocation2 + $0x50] sm:$0xf]
      %v3889 = vld [vmem:[#allocation2 + $0x54] sm:$0x1]
      %v3890 = vsel %vm2304, %v3873, 0
      %v3891 = vsel %vm2311, %v3874, 0
      %v3892 = vsel %vm2318, %v3875, 0
      %v3893 = vsel %vm2325, %v3876, 0
      %v3894 = vsel %vm2332, %v3877, 0
      %v3895 = vsel %vm2339, %v3878, 0
      %v3896 = vsel %vm2346, %v3879, 0
      %v3897 = vsel %vm2353, %v3880, 0
      %v3898 = vsel %vm2360, %v3881, 0
      %v3899 = vsel %vm2367, %v3882, 0
      %v3900 = vsel %vm2374, %v3883, 0
      %v3901 = vsel %vm2381, %v3884, 0
      %v3902 = vsel %vm2388, %v3885, 0
      %v3903 = vsel %vm2395, %v3886, 0
      %v3904 = vsel %vm2402, %v3887, 0
      %v3905 = vsel %vm2409, %v3888, 0
      %v3906 = vsel %vm2416, %v3889, 0
      %s3907 = scalar_lea.vmem %s5, 8
      %v3908 = vld [vmem:[%s3907] sm:$0x1]
      %v3926 = vunpack.c.l.b16 %v3890
      %v3927 = vunpack.c.l.b16 %v3891
      %v3928 = vunpack.c.l.b16 %v3892
      %v3929 = vunpack.c.l.b16 %v3893
      %v3930 = vunpack.c.l.b16 %v3894
      %v3931 = vunpack.c.l.b16 %v3895
      %v3932 = vunpack.c.l.b16 %v3896
      %v3933 = vunpack.c.l.b16 %v3897
      %v3934 = vunpack.c.l.b16 %v3898
      %v3935 = vunpack.c.l.b16 %v3899
      %v3936 = vunpack.c.l.b16 %v3900
      %v3937 = vunpack.c.l.b16 %v3901
      %v3938 = vunpack.c.l.b16 %v3902
      %v3939 = vunpack.c.l.b16 %v3903
      %v3940 = vunpack.c.l.b16 %v3904
      %v3941 = vunpack.c.l.b16 %v3905
      %v3942 = vunpack.c.l.b16 %v3906
      %v3943 = vpack.c.b16 %v3927, %v3926
      %v3944 = vpack.c.b16 %v3929, %v3928
      %v3945 = vpack.c.b16 %v3931, %v3930
      %v3946 = vpack.c.b16 %v3933, %v3932
      %v3947 = vpack.c.b16 %v3935, %v3934
      %v3948 = vpack.c.b16 %v3937, %v3936
      %v3949 = vpack.c.b16 %v3939, %v3938
      %v3950 = vpack.c.b16 %v3941, %v3940
      %v3951 = vpack.c.b16 %v3942, %v3942
      %v3953 = vshrl.u32 %v3943, 16
      %v3955 = vshll.u32 %v3943, 16
      %v3957 = vrot.slane %v3955, 1
      %v3958 = vor.u32 %v3953, %v3957
      %v3960 = vshll.u32 %v3944, 16
      %v3962 = vrot.slane %v3960, 1
      %v3963 = vsel %vm2479, %v3958, %v3962
      %v3964 = vshrl.u32 %v3944, 16
      %v3966 = vor.u32 %v3964, %v3962
      %v3968 = vshll.u32 %v3945, 16
      %v3970 = vrot.slane %v3968, 1
      %v3971 = vsel %vm2479, %v3966, %v3970
      %v3972 = vshrl.u32 %v3945, 16
      %v3974 = vor.u32 %v3972, %v3970
      %v3976 = vshll.u32 %v3946, 16
      %v3978 = vrot.slane %v3976, 1
      %v3979 = vsel %vm2479, %v3974, %v3978
      %v3980 = vshrl.u32 %v3946, 16
      %v3982 = vor.u32 %v3980, %v3978
      %v3984 = vshll.u32 %v3947, 16
      %v3986 = vrot.slane %v3984, 1
      %v3987 = vsel %vm2479, %v3982, %v3986
      %v3988 = vshrl.u32 %v3947, 16
      %v3990 = vor.u32 %v3988, %v3986
      %v3992 = vshll.u32 %v3948, 16
      %v3994 = vrot.slane %v3992, 1
      %v3995 = vsel %vm2479, %v3990, %v3994
      %v3996 = vshrl.u32 %v3948, 16
      %v3998 = vor.u32 %v3996, %v3994
      %v4000 = vshll.u32 %v3949, 16
      %v4002 = vrot.slane %v4000, 1
      %v4003 = vsel %vm2479, %v3998, %v4002
      %v4004 = vshrl.u32 %v3949, 16
      %v4006 = vor.u32 %v4004, %v4002
      %v4008 = vshll.u32 %v3950, 16
      %v4010 = vrot.slane %v4008, 1
      %v4011 = vsel %vm2479, %v4006, %v4010
      %v4012 = vshrl.u32 %v3950, 16
      %v4014 = vor.u32 %v4012, %v4010
      %v4016 = vshll.u32 %v3951, 16
      %v4018 = vrot.slane %v4016, 1
      %v4019 = vsel %vm2479, %v4014, %v4018
      %v4021 = vsel %vm1795, %v3963, 0
      %v4024 = vsel %vm1795, %v3971, 0
      %v4027 = vsel %vm1795, %v3979, 0
      %v4030 = vsel %vm1795, %v3987, 0
      %v4033 = vsel %vm1795, %v3995, 0
      %v4036 = vsel %vm1795, %v4003, 0
      %v4039 = vsel %vm1795, %v4011, 0
      %v4042 = vsel %vm1795, %v4019, 0
      %v4045 = vsel %vm1820, %v3908, 0
      %4047 = vmatpush.bf16.msra.mxu0 0
      %4048 = vmatpush.bf16.msra.mxu0 0
      %4049 = vmatpush.bf16.msra.mxu0 0
      %4050 = vmatpush.bf16.msra.mxu0 0
      %4051 = vmatpush.bf16.msra.mxu0 0
      %4052 = vmatpush.bf16.msra.mxu0 0
      %4053 = vmatpush.bf16.msra.mxu0 0
      %4054 = vmatpush.bf16.msra.mxu0 %v4045
      %4055 = vmatmul.bf16.gmra.mxu0 %v4021
      %v4056 = vpop.f32.mrf.mxu0
      %v4057 = vadd.f32 0.0, %v4056
      %v4058 = vpop.f32.mrf.mxu0
      %v4059 = vadd.f32 0.0, %v4058
      %4060 = vmatmul.bf16.gmra.mxu0 %v4024
      %v4061 = vpop.f32.mrf.mxu0
      %v4062 = vadd.f32 0.0, %v4061
      %v4063 = vpop.f32.mrf.mxu0
      %v4064 = vadd.f32 0.0, %v4063
      %4065 = vmatmul.bf16.gmra.mxu0 %v4027
      %v4066 = vpop.f32.mrf.mxu0
      %v4067 = vadd.f32 0.0, %v4066
      %v4068 = vpop.f32.mrf.mxu0
      %v4069 = vadd.f32 0.0, %v4068
      %4070 = vmatmul.bf16.gmra.mxu0 %v4030
      %v4071 = vpop.f32.mrf.mxu0
      %v4072 = vadd.f32 0.0, %v4071
      %v4073 = vpop.f32.mrf.mxu0
      %v4074 = vadd.f32 0.0, %v4073
      %4075 = vmatmul.bf16.gmra.mxu0 %v4033
      %v4076 = vpop.f32.mrf.mxu0
      %v4077 = vadd.f32 0.0, %v4076
      %v4078 = vpop.f32.mrf.mxu0
      %v4079 = vadd.f32 0.0, %v4078
      %4080 = vmatmul.bf16.gmra.mxu0 %v4036
      %v4081 = vpop.f32.mrf.mxu0
      %v4082 = vadd.f32 0.0, %v4081
      %v4083 = vpop.f32.mrf.mxu0
      %v4084 = vadd.f32 0.0, %v4083
      %4085 = vmatmul.bf16.gmra.mxu0 %v4039
      %v4086 = vpop.f32.mrf.mxu0
      %v4087 = vadd.f32 0.0, %v4086
      %v4088 = vpop.f32.mrf.mxu0
      %v4089 = vadd.f32 0.0, %v4088
      %4090 = vmatmul.bf16.gmra.mxu0 %v4042
      %v4091 = vpop.f32.mrf.mxu0
      %v4092 = vadd.f32 0.0, %v4091
      %v4093 = vpop.f32.mrf.mxu0
      %v4094 = vadd.f32 0.0, %v4093
      %4095 = vdwg.mxu0
      %v4096 = vld [vmem:[#allocation3] sm:$0xff]
      %v4097 = vld [vmem:[#allocation3 + $0x8] sm:$0xff]
      %v4098 = vld [vmem:[#allocation3 + $0x10] sm:$0xff]
      %v4099 = vld [vmem:[#allocation3 + $0x18] sm:$0xff]
      %v4100 = vld [vmem:[#allocation3 + $0x20] sm:$0xff]
      %v4101 = vld [vmem:[#allocation3 + $0x28] sm:$0xff]
      %v4102 = vld [vmem:[#allocation3 + $0x30] sm:$0xff]
      %v4103 = vld [vmem:[#allocation3 + $0x38] sm:$0xff]
      %v4104 = vld [vmem:[#allocation3 + $0x40] sm:$0xff]
      %v4105 = vld [vmem:[#allocation3 + $0x48] sm:$0xff]
      %v4106 = vld [vmem:[#allocation3 + $0x50] sm:$0xff]
      %v4107 = vld [vmem:[#allocation3 + $0x58] sm:$0xff]
      %v4108 = vld [vmem:[#allocation3 + $0x60] sm:$0xff]
      %v4109 = vld [vmem:[#allocation3 + $0x68] sm:$0xff]
      %v4110 = vld [vmem:[#allocation3 + $0x70] sm:$0xff]
      %v4111 = vld [vmem:[#allocation3 + $0x78] sm:$0xff]
      %v4112 = vadd.f32 %v4096, %v4057
      %v4113 = vadd.f32 %v4097, %v4059
      %v4114 = vadd.f32 %v4098, %v4062
      %v4115 = vadd.f32 %v4099, %v4064
      %v4116 = vadd.f32 %v4100, %v4067
      %v4117 = vadd.f32 %v4101, %v4069
      %v4118 = vadd.f32 %v4102, %v4072
      %v4119 = vadd.f32 %v4103, %v4074
      %v4120 = vadd.f32 %v4104, %v4077
      %v4121 = vadd.f32 %v4105, %v4079
      %v4122 = vadd.f32 %v4106, %v4082
      %v4123 = vadd.f32 %v4107, %v4084
      %v4124 = vadd.f32 %v4108, %v4087
      %v4125 = vadd.f32 %v4109, %v4089
      %v4126 = vadd.f32 %v4110, %v4092
      %v4127 = vadd.f32 %v4111, %v4094
      %4128 = vst.msk [vmem:[#allocation3] sm:$0xff] %vm481, %v4112
      %4129 = vst.msk [vmem:[#allocation3 + $0x8] sm:$0xff] %vm481, %v4113
      %4130 = vst.msk [vmem:[#allocation3 + $0x10] sm:$0xff] %vm481, %v4114
      %4131 = vst.msk [vmem:[#allocation3 + $0x18] sm:$0xff] %vm481, %v4115
      %4132 = vst.msk [vmem:[#allocation3 + $0x20] sm:$0xff] %vm481, %v4116
      %4133 = vst.msk [vmem:[#allocation3 + $0x28] sm:$0xff] %vm481, %v4117
      %4134 = vst.msk [vmem:[#allocation3 + $0x30] sm:$0xff] %vm481, %v4118
      %4135 = vst.msk [vmem:[#allocation3 + $0x38] sm:$0xff] %vm481, %v4119
      %4136 = vst.msk [vmem:[#allocation3 + $0x40] sm:$0xff] %vm481, %v4120
      %4137 = vst.msk [vmem:[#allocation3 + $0x48] sm:$0xff] %vm481, %v4121
      %4138 = vst.msk [vmem:[#allocation3 + $0x50] sm:$0xff] %vm481, %v4122
      %4139 = vst.msk [vmem:[#allocation3 + $0x58] sm:$0xff] %vm481, %v4123
      %4140 = vst.msk [vmem:[#allocation3 + $0x60] sm:$0xff] %vm481, %v4124
      %4141 = vst.msk [vmem:[#allocation3 + $0x68] sm:$0xff] %vm481, %v4125
      %4142 = vst.msk [vmem:[#allocation3 + $0x70] sm:$0xff] %vm481, %v4126
      %4143 = vst.msk [vmem:[#allocation3 + $0x78] sm:$0xff] %vm481, %v4127
      %v4144 = vld [vmem:[#allocation3] sm:$0xff]
      %v4145 = vld [vmem:[#allocation3 + $0x8] sm:$0xff]
      %v4146 = vld [vmem:[#allocation3 + $0x10] sm:$0xff]
      %v4147 = vld [vmem:[#allocation3 + $0x18] sm:$0xff]
      %v4148 = vld [vmem:[#allocation3 + $0x20] sm:$0xff]
      %v4149 = vld [vmem:[#allocation3 + $0x28] sm:$0xff]
      %v4150 = vld [vmem:[#allocation3 + $0x30] sm:$0xff]
      %v4151 = vld [vmem:[#allocation3 + $0x38] sm:$0xff]
      %v4152 = vld [vmem:[#allocation3 + $0x40] sm:$0xff]
      %v4153 = vld [vmem:[#allocation3 + $0x48] sm:$0xff]
      %v4154 = vld [vmem:[#allocation3 + $0x50] sm:$0xff]
      %v4155 = vld [vmem:[#allocation3 + $0x58] sm:$0xff]
      %v4156 = vld [vmem:[#allocation3 + $0x60] sm:$0xff]
      %v4157 = vld [vmem:[#allocation3 + $0x68] sm:$0xff]
      %v4158 = vld [vmem:[#allocation3 + $0x70] sm:$0xff]
      %v4159 = vld [vmem:[#allocation3 + $0x78] sm:$0xff]
      %v4160 = vld [vmem:[%s6] sm:$0x1]
      %v4162 = vperm.slane %v4160, 0
      %v4164 = vadd.f32 %v4144, %v4162
      %v4165 = vadd.f32 %v4145, %v4162
      %v4166 = vadd.f32 %v4146, %v4162
      %v4167 = vadd.f32 %v4147, %v4162
      %v4168 = vadd.f32 %v4148, %v4162
      %v4169 = vadd.f32 %v4149, %v4162
      %v4170 = vadd.f32 %v4150, %v4162
      %v4171 = vadd.f32 %v4151, %v4162
      %v4172 = vadd.f32 %v4152, %v4162
      %v4173 = vadd.f32 %v4153, %v4162
      %v4174 = vadd.f32 %v4154, %v4162
      %v4175 = vadd.f32 %v4155, %v4162
      %v4176 = vadd.f32 %v4156, %v4162
      %v4177 = vadd.f32 %v4157, %v4162
      %v4178 = vadd.f32 %v4158, %v4162
      %v4179 = vadd.f32 %v4159, %v4162
      %v4180 = vxor.u32 %v4164, 2147483648
      %v4181 = vxor.u32 %v4165, 2147483648
      %v4182 = vxor.u32 %v4166, 2147483648
      %v4183 = vxor.u32 %v4167, 2147483648
      %v4184 = vxor.u32 %v4168, 2147483648
      %v4185 = vxor.u32 %v4169, 2147483648
      %v4186 = vxor.u32 %v4170, 2147483648
      %v4187 = vxor.u32 %v4171, 2147483648
      %v4188 = vxor.u32 %v4172, 2147483648
      %v4189 = vxor.u32 %v4173, 2147483648
      %v4190 = vxor.u32 %v4174, 2147483648
      %v4191 = vxor.u32 %v4175, 2147483648
      %v4192 = vxor.u32 %v4176, 2147483648
      %v4193 = vxor.u32 %v4177, 2147483648
      %v4194 = vxor.u32 %v4178, 2147483648
      %v4195 = vxor.u32 %v4179, 2147483648
      %v4196 = vmul.f32 %v4180, 1.442695
      %v4197 = vpow.pop %v4196
      %v4198 = vmul.f32 %v4181, 1.442695
      %v4199 = vpow.pop %v4198
      %v4200 = vmul.f32 %v4182, 1.442695
      %v4201 = vpow.pop %v4200
      %v4202 = vmul.f32 %v4183, 1.442695
      %v4203 = vpow.pop %v4202
      %v4204 = vmul.f32 %v4184, 1.442695
      %v4205 = vpow.pop %v4204
      %v4206 = vmul.f32 %v4185, 1.442695
      %v4207 = vpow.pop %v4206
      %v4208 = vmul.f32 %v4186, 1.442695
      %v4209 = vpow.pop %v4208
      %v4210 = vmul.f32 %v4187, 1.442695
      %v4211 = vpow.pop %v4210
      %v4212 = vmul.f32 %v4188, 1.442695
      %v4213 = vpow.pop %v4212
      %v4214 = vmul.f32 %v4189, 1.442695
      %v4215 = vpow.pop %v4214
      %v4216 = vmul.f32 %v4190, 1.442695
      %v4217 = vpow.pop %v4216
      %v4218 = vmul.f32 %v4191, 1.442695
      %v4219 = vpow.pop %v4218
      %v4220 = vmul.f32 %v4192, 1.442695
      %v4221 = vpow.pop %v4220
      %v4222 = vmul.f32 %v4193, 1.442695
      %v4223 = vpow.pop %v4222
      %v4224 = vmul.f32 %v4194, 1.442695
      %v4225 = vpow.pop %v4224
      %v4226 = vmul.f32 %v4195, 1.442695
      %v4227 = vpow.pop %v4226
      %v4228 = vadd.f32 %v4197, 1.0
      %v4229 = vadd.f32 %v4199, 1.0
      %v4230 = vadd.f32 %v4201, 1.0
      %v4231 = vadd.f32 %v4203, 1.0
      %v4232 = vadd.f32 %v4205, 1.0
      %v4233 = vadd.f32 %v4207, 1.0
      %v4234 = vadd.f32 %v4209, 1.0
      %v4235 = vadd.f32 %v4211, 1.0
      %v4236 = vadd.f32 %v4213, 1.0
      %v4237 = vadd.f32 %v4215, 1.0
      %v4238 = vadd.f32 %v4217, 1.0
      %v4239 = vadd.f32 %v4219, 1.0
      %v4240 = vadd.f32 %v4221, 1.0
      %v4241 = vadd.f32 %v4223, 1.0
      %v4242 = vadd.f32 %v4225, 1.0
      %v4243 = vadd.f32 %v4227, 1.0
      %v4244 = vrcp.pop %v4228
      %v4245 = vmul.f32 %v4228, %v4244
      %v4246 = vsub.f32 1.0, %v4245
      %v4247 = vmul.f32 %v4244, %v4246
      %v4248 = vadd.f32 %v4244, %v4247
      %vm4249 = vweird.f32 %v4228
      %vm4250 = vweird.f32 %v4244
      %vm4251 = vmor %vm4249, %vm4250
      %v4252 = vsel %vm4251, %v4244, %v4248
      %v4253 = vand.u32 2147483647, %v4228
      %vm4254 = vcmp.eq.f32.partialorder %v4253, 8.507059e+37
      %v4255 = vand.u32 %v4228, 2147483648
      %v4256 = vor.u32 1.1754944e-38, %v4255
      %v4257 = vsel %vm4254, %v4256, %v4252
      %v4258 = vmul.f32 1.0, %v4257
      %v4259 = vrcp.pop %v4229
      %v4260 = vmul.f32 %v4229, %v4259
      %v4261 = vsub.f32 1.0, %v4260
      %v4262 = vmul.f32 %v4259, %v4261
      %v4263 = vadd.f32 %v4259, %v4262
      %vm4264 = vweird.f32 %v4229
      %vm4265 = vweird.f32 %v4259
      %vm4266 = vmor %vm4264, %vm4265
      %v4267 = vsel %vm4266, %v4259, %v4263
      %v4268 = vand.u32 2147483647, %v4229
      %vm4269 = vcmp.eq.f32.partialorder %v4268, 8.507059e+37
      %v4270 = vand.u32 %v4229, 2147483648
      %v4271 = vor.u32 1.1754944e-38, %v4270
      %v4272 = vsel %vm4269, %v4271, %v4267
      %v4273 = vmul.f32 1.0, %v4272
      %v4274 = vrcp.pop %v4230
      %v4275 = vmul.f32 %v4230, %v4274
      %v4276 = vsub.f32 1.0, %v4275
      %v4277 = vmul.f32 %v4274, %v4276
      %v4278 = vadd.f32 %v4274, %v4277
      %vm4279 = vweird.f32 %v4230
      %vm4280 = vweird.f32 %v4274
      %vm4281 = vmor %vm4279, %vm4280
      %v4282 = vsel %vm4281, %v4274, %v4278
      %v4283 = vand.u32 2147483647, %v4230
      %vm4284 = vcmp.eq.f32.partialorder %v4283, 8.507059e+37
      %v4285 = vand.u32 %v4230, 2147483648
      %v4286 = vor.u32 1.1754944e-38, %v4285
      %v4287 = vsel %vm4284, %v4286, %v4282
      %v4288 = vmul.f32 1.0, %v4287
      %v4289 = vrcp.pop %v4231
      %v4290 = vmul.f32 %v4231, %v4289
      %v4291 = vsub.f32 1.0, %v4290
      %v4292 = vmul.f32 %v4289, %v4291
      %v4293 = vadd.f32 %v4289, %v4292
      %vm4294 = vweird.f32 %v4231
      %vm4295 = vweird.f32 %v4289
      %vm4296 = vmor %vm4294, %vm4295
      %v4297 = vsel %vm4296, %v4289, %v4293
      %v4298 = vand.u32 2147483647, %v4231
      %vm4299 = vcmp.eq.f32.partialorder %v4298, 8.507059e+37
      %v4300 = vand.u32 %v4231, 2147483648
      %v4301 = vor.u32 1.1754944e-38, %v4300
      %v4302 = vsel %vm4299, %v4301, %v4297
      %v4303 = vmul.f32 1.0, %v4302
      %v4304 = vrcp.pop %v4232
      %v4305 = vmul.f32 %v4232, %v4304
      %v4306 = vsub.f32 1.0, %v4305
      %v4307 = vmul.f32 %v4304, %v4306
      %v4308 = vadd.f32 %v4304, %v4307
      %vm4309 = vweird.f32 %v4232
      %vm4310 = vweird.f32 %v4304
      %vm4311 = vmor %vm4309, %vm4310
      %v4312 = vsel %vm4311, %v4304, %v4308
      %v4313 = vand.u32 2147483647, %v4232
      %vm4314 = vcmp.eq.f32.partialorder %v4313, 8.507059e+37
      %v4315 = vand.u32 %v4232, 2147483648
      %v4316 = vor.u32 1.1754944e-38, %v4315
      %v4317 = vsel %vm4314, %v4316, %v4312
      %v4318 = vmul.f32 1.0, %v4317
      %v4319 = vrcp.pop %v4233
      %v4320 = vmul.f32 %v4233, %v4319
      %v4321 = vsub.f32 1.0, %v4320
      %v4322 = vmul.f32 %v4319, %v4321
      %v4323 = vadd.f32 %v4319, %v4322
      %vm4324 = vweird.f32 %v4233
      %vm4325 = vweird.f32 %v4319
      %vm4326 = vmor %vm4324, %vm4325
      %v4327 = vsel %vm4326, %v4319, %v4323
      %v4328 = vand.u32 2147483647, %v4233
      %vm4329 = vcmp.eq.f32.partialorder %v4328, 8.507059e+37
      %v4330 = vand.u32 %v4233, 2147483648
      %v4331 = vor.u32 1.1754944e-38, %v4330
      %v4332 = vsel %vm4329, %v4331, %v4327
      %v4333 = vmul.f32 1.0, %v4332
      %v4334 = vrcp.pop %v4234
      %v4335 = vmul.f32 %v4234, %v4334
      %v4336 = vsub.f32 1.0, %v4335
      %v4337 = vmul.f32 %v4334, %v4336
      %v4338 = vadd.f32 %v4334, %v4337
      %vm4339 = vweird.f32 %v4234
      %vm4340 = vweird.f32 %v4334
      %vm4341 = vmor %vm4339, %vm4340
      %v4342 = vsel %vm4341, %v4334, %v4338
      %v4343 = vand.u32 2147483647, %v4234
      %vm4344 = vcmp.eq.f32.partialorder %v4343, 8.507059e+37
      %v4345 = vand.u32 %v4234, 2147483648
      %v4346 = vor.u32 1.1754944e-38, %v4345
      %v4347 = vsel %vm4344, %v4346, %v4342
      %v4348 = vmul.f32 1.0, %v4347
      %v4349 = vrcp.pop %v4235
      %v4350 = vmul.f32 %v4235, %v4349
      %v4351 = vsub.f32 1.0, %v4350
      %v4352 = vmul.f32 %v4349, %v4351
      %v4353 = vadd.f32 %v4349, %v4352
      %vm4354 = vweird.f32 %v4235
      %vm4355 = vweird.f32 %v4349
      %vm4356 = vmor %vm4354, %vm4355
      %v4357 = vsel %vm4356, %v4349, %v4353
      %v4358 = vand.u32 2147483647, %v4235
      %vm4359 = vcmp.eq.f32.partialorder %v4358, 8.507059e+37
      %v4360 = vand.u32 %v4235, 2147483648
      %v4361 = vor.u32 1.1754944e-38, %v4360
      %v4362 = vsel %vm4359, %v4361, %v4357
      %v4363 = vmul.f32 1.0, %v4362
      %v4364 = vrcp.pop %v4236
      %v4365 = vmul.f32 %v4236, %v4364
      %v4366 = vsub.f32 1.0, %v4365
      %v4367 = vmul.f32 %v4364, %v4366
      %v4368 = vadd.f32 %v4364, %v4367
      %vm4369 = vweird.f32 %v4236
      %vm4370 = vweird.f32 %v4364
      %vm4371 = vmor %vm4369, %vm4370
      %v4372 = vsel %vm4371, %v4364, %v4368
      %v4373 = vand.u32 2147483647, %v4236
      %vm4374 = vcmp.eq.f32.partialorder %v4373, 8.507059e+37
      %v4375 = vand.u32 %v4236, 2147483648
      %v4376 = vor.u32 1.1754944e-38, %v4375
      %v4377 = vsel %vm4374, %v4376, %v4372
      %v4378 = vmul.f32 1.0, %v4377
      %v4379 = vrcp.pop %v4237
      %v4380 = vmul.f32 %v4237, %v4379
      %v4381 = vsub.f32 1.0, %v4380
      %v4382 = vmul.f32 %v4379, %v4381
      %v4383 = vadd.f32 %v4379, %v4382
      %vm4384 = vweird.f32 %v4237
      %vm4385 = vweird.f32 %v4379
      %vm4386 = vmor %vm4384, %vm4385
      %v4387 = vsel %vm4386, %v4379, %v4383
      %v4388 = vand.u32 2147483647, %v4237
      %vm4389 = vcmp.eq.f32.partialorder %v4388, 8.507059e+37
      %v4390 = vand.u32 %v4237, 2147483648
      %v4391 = vor.u32 1.1754944e-38, %v4390
      %v4392 = vsel %vm4389, %v4391, %v4387
      %v4393 = vmul.f32 1.0, %v4392
      %v4394 = vrcp.pop %v4238
      %v4395 = vmul.f32 %v4238, %v4394
      %v4396 = vsub.f32 1.0, %v4395
      %v4397 = vmul.f32 %v4394, %v4396
      %v4398 = vadd.f32 %v4394, %v4397
      %vm4399 = vweird.f32 %v4238
      %vm4400 = vweird.f32 %v4394
      %vm4401 = vmor %vm4399, %vm4400
      %v4402 = vsel %vm4401, %v4394, %v4398
      %v4403 = vand.u32 2147483647, %v4238
      %vm4404 = vcmp.eq.f32.partialorder %v4403, 8.507059e+37
      %v4405 = vand.u32 %v4238, 2147483648
      %v4406 = vor.u32 1.1754944e-38, %v4405
      %v4407 = vsel %vm4404, %v4406, %v4402
      %v4408 = vmul.f32 1.0, %v4407
      %v4409 = vrcp.pop %v4239
      %v4410 = vmul.f32 %v4239, %v4409
      %v4411 = vsub.f32 1.0, %v4410
      %v4412 = vmul.f32 %v4409, %v4411
      %v4413 = vadd.f32 %v4409, %v4412
      %vm4414 = vweird.f32 %v4239
      %vm4415 = vweird.f32 %v4409
      %vm4416 = vmor %vm4414, %vm4415
      %v4417 = vsel %vm4416, %v4409, %v4413
      %v4418 = vand.u32 2147483647, %v4239
      %vm4419 = vcmp.eq.f32.partialorder %v4418, 8.507059e+37
      %v4420 = vand.u32 %v4239, 2147483648
      %v4421 = vor.u32 1.1754944e-38, %v4420
      %v4422 = vsel %vm4419, %v4421, %v4417
      %v4423 = vmul.f32 1.0, %v4422
      %v4424 = vrcp.pop %v4240
      %v4425 = vmul.f32 %v4240, %v4424
      %v4426 = vsub.f32 1.0, %v4425
      %v4427 = vmul.f32 %v4424, %v4426
      %v4428 = vadd.f32 %v4424, %v4427
      %vm4429 = vweird.f32 %v4240
      %vm4430 = vweird.f32 %v4424
      %vm4431 = vmor %vm4429, %vm4430
      %v4432 = vsel %vm4431, %v4424, %v4428
      %v4433 = vand.u32 2147483647, %v4240
      %vm4434 = vcmp.eq.f32.partialorder %v4433, 8.507059e+37
      %v4435 = vand.u32 %v4240, 2147483648
      %v4436 = vor.u32 1.1754944e-38, %v4435
      %v4437 = vsel %vm4434, %v4436, %v4432
      %v4438 = vmul.f32 1.0, %v4437
      %v4439 = vrcp.pop %v4241
      %v4440 = vmul.f32 %v4241, %v4439
      %v4441 = vsub.f32 1.0, %v4440
      %v4442 = vmul.f32 %v4439, %v4441
      %v4443 = vadd.f32 %v4439, %v4442
      %vm4444 = vweird.f32 %v4241
      %vm4445 = vweird.f32 %v4439
      %vm4446 = vmor %vm4444, %vm4445
      %v4447 = vsel %vm4446, %v4439, %v4443
      %v4448 = vand.u32 2147483647, %v4241
      %vm4449 = vcmp.eq.f32.partialorder %v4448, 8.507059e+37
      %v4450 = vand.u32 %v4241, 2147483648
      %v4451 = vor.u32 1.1754944e-38, %v4450
      %v4452 = vsel %vm4449, %v4451, %v4447
      %v4453 = vmul.f32 1.0, %v4452
      %v4454 = vrcp.pop %v4242
      %v4455 = vmul.f32 %v4242, %v4454
      %v4456 = vsub.f32 1.0, %v4455
      %v4457 = vmul.f32 %v4454, %v4456
      %v4458 = vadd.f32 %v4454, %v4457
      %vm4459 = vweird.f32 %v4242
      %vm4460 = vweird.f32 %v4454
      %vm4461 = vmor %vm4459, %vm4460
      %v4462 = vsel %vm4461, %v4454, %v4458
      %v4463 = vand.u32 2147483647, %v4242
      %vm4464 = vcmp.eq.f32.partialorder %v4463, 8.507059e+37
      %v4465 = vand.u32 %v4242, 2147483648
      %v4466 = vor.u32 1.1754944e-38, %v4465
      %v4467 = vsel %vm4464, %v4466, %v4462
      %v4468 = vmul.f32 1.0, %v4467
      %v4469 = vrcp.pop %v4243
      %v4470 = vmul.f32 %v4243, %v4469
      %v4471 = vsub.f32 1.0, %v4470
      %v4472 = vmul.f32 %v4469, %v4471
      %v4473 = vadd.f32 %v4469, %v4472
      %vm4474 = vweird.f32 %v4243
      %vm4475 = vweird.f32 %v4469
      %vm4476 = vmor %vm4474, %vm4475
      %v4477 = vsel %vm4476, %v4469, %v4473
      %v4478 = vand.u32 2147483647, %v4243
      %vm4479 = vcmp.eq.f32.partialorder %v4478, 8.507059e+37
      %v4480 = vand.u32 %v4243, 2147483648
      %v4481 = vor.u32 1.1754944e-38, %v4480
      %v4482 = vsel %vm4479, %v4481, %v4477
      %v4483 = vmul.f32 1.0, %v4482
      %v4484 = vmul.f32 %v4164, %v4258
      %v4485 = vmul.f32 %v4165, %v4273
      %v4486 = vmul.f32 %v4166, %v4288
      %v4487 = vmul.f32 %v4167, %v4303
      %v4488 = vmul.f32 %v4168, %v4318
      %v4489 = vmul.f32 %v4169, %v4333
      %v4490 = vmul.f32 %v4170, %v4348
      %v4491 = vmul.f32 %v4171, %v4363
      %v4492 = vmul.f32 %v4172, %v4378
      %v4493 = vmul.f32 %v4173, %v4393
      %v4494 = vmul.f32 %v4174, %v4408
      %v4495 = vmul.f32 %v4175, %v4423
      %v4496 = vmul.f32 %v4176, %v4438
      %v4497 = vmul.f32 %v4177, %v4453
      %v4498 = vmul.f32 %v4178, %v4468
      %v4499 = vmul.f32 %v4179, %v4483
      %v4500 = vadd.f32 %v4484, %v454
      %v4501 = vadd.f32 %v4485, %v455
      %v4502 = vadd.f32 %v4486, %v456
      %v4503 = vadd.f32 %v4487, %v457
      %v4504 = vadd.f32 %v4488, %v458
      %v4505 = vadd.f32 %v4489, %v459
      %v4506 = vadd.f32 %v4490, %v460
      %v4507 = vadd.f32 %v4491, %v461
      %v4508 = vadd.f32 %v4492, %v462
      %v4509 = vadd.f32 %v4493, %v463
      %v4510 = vadd.f32 %v4494, %v464
      %v4511 = vadd.f32 %v4495, %v465
      %v4512 = vadd.f32 %v4496, %v466
      %v4513 = vadd.f32 %v4497, %v467
      %v4514 = vadd.f32 %v4498, %v468
      %v4515 = vadd.f32 %v4499, %v469
      %4516 = vst.msk [vmem:[%s445] sm:$0xff] %vm481, %v4500
      %4517 = vst.msk [vmem:[%s445 + $0x8] sm:$0xff] %vm481, %v4501
      %4518 = vst.msk [vmem:[%s445 + $0x10] sm:$0xff] %vm481, %v4502
      %4519 = vst.msk [vmem:[%s445 + $0x18] sm:$0xff] %vm481, %v4503
      %4520 = vst.msk [vmem:[%s445 + $0x20] sm:$0xff] %vm481, %v4504
      %4521 = vst.msk [vmem:[%s445 + $0x28] sm:$0xff] %vm481, %v4505
      %4522 = vst.msk [vmem:[%s445 + $0x30] sm:$0xff] %vm481, %v4506
      %4523 = vst.msk [vmem:[%s445 + $0x38] sm:$0xff] %vm481, %v4507
      %4524 = vst.msk [vmem:[%s445 + $0x40] sm:$0xff] %vm481, %v4508
      %4525 = vst.msk [vmem:[%s445 + $0x48] sm:$0xff] %vm481, %v4509
      %4526 = vst.msk [vmem:[%s445 + $0x50] sm:$0xff] %vm481, %v4510
      %4527 = vst.msk [vmem:[%s445 + $0x58] sm:$0xff] %vm481, %v4511
      %4528 = vst.msk [vmem:[%s445 + $0x60] sm:$0xff] %vm481, %v4512
      %4529 = vst.msk [vmem:[%s445 + $0x68] sm:$0xff] %vm481, %v4513
      %4530 = vst.msk [vmem:[%s445 + $0x70] sm:$0xff] %vm481, %v4514
      %4531 = vst.msk [vmem:[%s445 + $0x78] sm:$0xff] %vm481, %v4515
      %s4532 = smul.u32 8, %s23
      %p4533 = scmp.lt.s32.totalorder %s22, 1
      %s4534 = scalar_select %p4533, %s22, 1
      %p4535 = scmp.lt.s32.totalorder %s4532, 15
      %s4536 = scalar_select %p4535, %s4532, 15
      %s4537 = smul.addr %s4536, 2
      %s4538 = smul.addr %s4534, 32
      %s4539 = sadd.s32 %s4537, %s4538
      %s4540 = smul.addr %s4539, 8
      %s4541 = scalar_lea.vmem %s7, %s4540
      // Predicated region
      $region49: #{tpu_custom_call.1} parent=47 // pred_check
        %p4542 = pneg %p234
      $region50: #{tpu_custom_call.1} parent=47 // pred_check_branch
        %4544 = sbr.rel (%p4542) target = $region52
      $region51: #{tpu_custom_call.1} parent=47 // pred_region
        %s4545 = smul.u32 8, %s23
      $region52: #{tpu_custom_call.1} parent=47 // pred_fallthru
        _
    $region48: #{tpu_custom_call.1} parent=5 // pred_fallthru
      _
    %p4546 = scmp.le.s32.totalorder 2, %s13
    // Predicated region
    $region53: #{tpu_custom_call.1} parent=5 // pred_check
      %p4547 = pneg %p4546
    $region54: #{tpu_custom_call.1} parent=5 // pred_check_branch
      %4549 = sbr.rel (%p4547) target = $region56
    $region55: #{tpu_custom_call.1} parent=5 // pred_region
      %s4550 = ssub.s32 %s13, 2
      // Predicated region
      $region57: #{tpu_custom_call.1} parent=55 // pred_check
        %p4551 = pneg %p240
      $region58: #{tpu_custom_call.1} parent=55 // pred_check_branch
        %4553 = sbr.rel (%p4551) target = $region60
      $region59: #{tpu_custom_call.1} parent=55 // pred_region
        %s4554 = smul.u32 8, %s25
        %p4555 = scmp.lt.s32.totalorder %s24, 1
        %s4556 = scalar_select %p4555, %s24, 1
        %p4557 = scmp.lt.s32.totalorder %s4554, 15
        %s4558 = scalar_select %p4557, %s4554, 15
        %s4559 = smul.addr %s4558, 2
        %s4560 = smul.addr %s4556, 32
        %s4561 = sadd.s32 %s4559, %s4560
        %s4562 = smul.addr %s4561, 8
        %s4563 = scalar_lea.vmem %s7, %s4562
      $region60: #{tpu_custom_call.1} parent=55 // pred_fallthru
        _
    $region56: #{tpu_custom_call.1} parent=5 // pred_fallthru
      _
  $region6: #{tpu_custom_call.1} parent=0 // loop_footer
    %s17 = sadd.s32 1, %s13
  $region7: #{tpu_custom_call.1} parent=0 // loop_footer_branch
    %12 = sbr.rel target = $region3
  $region8: #{tpu_custom_call.1} parent=0 // loop_exit
    _

</llo_original>
